<compile_context>
chip_gen: v5e
topology: v5e:2x2
jax: 0.10.0
libtpu: 0.0.40
codegen_flags: <defaults>
</compile_context>

<pallas_src>
import functools
import math

import jax
import jax.numpy as jnp
from jax.experimental import pallas as pl
from jax.experimental.pallas import tpu as pltpu

_EPS = 1e-5          # nn.LayerNorm default eps
_NUM_HEADS = 4       # fixed by the module


def _layernorm(y, g, b):
    # one-pass stats over the channel (lane) axis, fp32
    m = jnp.mean(y, axis=-1, keepdims=True)
    msq = jnp.mean(y * y, axis=-1, keepdims=True)
    var = msq - m * m
    return (y - m) * jax.lax.rsqrt(var + _EPS) * g + b


# ----------------------------------------------------------------------------
# Single fused kernel: (C,S)->(S,C) -> LN -> MHA -> +x -> LN -> MLP -> +res
#                      -> (S,C)->(C,S)
# ----------------------------------------------------------------------------
def _self_attention_kernel(x_ref, vec_ref, bqkv_ref, wqkv_ref, wo_ref,
                           w1_ref, w2_ref, o_ref, *, num_heads, batch_per_step):
    Bt = batch_per_step
    C = x_ref.shape[1]
    S = x_ref.shape[2]
    hd = C // num_heads

    # packed fp32 gain/bias vectors: one load, cheap sublane row slices
    vec = vec_ref[...]                       # (7, C)
    ln_g, ln_b = vec[0:1], vec[1:2]
    ffg, ffb = vec[2:3], vec[3:4]
    bo, b1, b2 = vec[4:5], vec[5:6], vec[6:7]

    # ---- NCHW transpose folded in-kernel: (Bt, C, S) -> (Bt*S, C) ---------
    xs = [x_ref[b].T for b in range(Bt)]                        # Bt x (S, C)
    x = xs[0] if Bt == 1 else jnp.concatenate(xs, axis=0)       # (Bt*S, C) fp32

    # ---- LayerNorm (pre-attention) + fused QKV projection ------------------
    # 1/sqrt(head_dim) is already folded into the Q columns of wqkv/bqkv.
    x_ln = _layernorm(x, ln_g, ln_b)
    qkv = jnp.dot(x_ln.astype(jnp.bfloat16), wqkv_ref[...],
                  preferred_element_type=jnp.float32) + bqkv_ref[...]  # (Bt*S, 3C)
    qkv_bf = qkv.astype(jnp.bfloat16)        # single full-width cast

    # ---- multi-head attention; out-projection accumulated per head ---------
    wo = wo_ref[...]                         # (C, C) bf16
    attn_chunks = []
    for b in range(Bt):
        r0 = b * S
        acc = jnp.zeros((S, C), jnp.float32)
        for h in range(num_heads):
            lo = h * hd
            qh = qkv_bf[r0:r0 + S, lo:lo + hd]                      # (S, hd)
            kh = qkv_bf[r0:r0 + S, C + lo:C + lo + hd]              # (S, hd)
            vh = qkv_bf[r0:r0 + S, 2 * C + lo:2 * C + lo + hd]      # (S, hd)
            # q @ k^T without materializing a transpose (contract lane dims)
            s = jax.lax.dot_general(qh, kh, (((1,), (1,)), ((), ())),
                                    preferred_element_type=jnp.float32)  # (S, S)
            # NOTE(perf-review): max-subtraction is optional at these
            # magnitudes; kept for robustness (cheap XLU reduce + VPU sub).
            s = s - jnp.max(s, axis=-1, keepdims=True)
            p = jnp.exp(s)
            p = p * pl.reciprocal(jnp.sum(p, axis=-1, keepdims=True), approx=True)
            ctx = jnp.dot(p.astype(jnp.bfloat16), vh,
                          preferred_element_type=jnp.float32)            # (S, hd)
            # accumulate out-projection per head: tiny extra MXU pass instead
            # of a lane-axis concatenate
            acc = acc + jnp.dot(ctx.astype(jnp.bfloat16), wo[lo:lo + hd, :],
                                preferred_element_type=jnp.float32)      # (S, C)
        attn_chunks.append(acc)
    attn = (attn_chunks[0] if Bt == 1
            else jnp.concatenate(attn_chunks, axis=0)) + bo
    h1 = attn + x                                               # residual 1

    # ---- feed-forward: LN -> Linear -> ReLU -> Linear, + residual 2 --------
    hf = _layernorm(h1, ffg, ffb)
    f = jnp.dot(hf.astype(jnp.bfloat16), w1_ref[...],
                preferred_element_type=jnp.float32) + b1
    f = jnp.maximum(f, 0.0)
    f = jnp.dot(f.astype(jnp.bfloat16), w2_ref[...],
                preferred_element_type=jnp.float32) + b2
    out = f + h1                                                # (Bt*S, C)

    # ---- write back in (C, S) layout (transpose folded in-kernel) ----------
    for b in range(Bt):
        o_ref[b] = out[b * S:(b + 1) * S, :].T                  # (C, S)


# ----------------------------------------------------------------------------
# Wrapper: NCHW in/out (PyTorch convention); no XLA transposes outside
# ----------------------------------------------------------------------------
def _default_batch_per_step(batch):
    try:
        kind = jax.devices()[0].device_kind.lower()
    except Exception:
        kind = ""
    if "v7" in kind and batch % 2 == 0:
        # v7x: two TensorCores per chip -> keep a >=2-way 'parallel' grid axis.
        return batch // 2
    # single-TensorCore parts (v5e/v6e): one grid step, batch flattened into
    # the projection matmuls (better MXU row fill, no per-step overhead).
    return batch


def self_attention_forward(kp, x_nchw, batch_per_step=None):
    B, C, H, W = x_nchw.shape
    assert C % _NUM_HEADS == 0
    S = H * W
    if batch_per_step is None:
        batch_per_step = _default_batch_per_step(B)
    if B % batch_per_step != 0:
        batch_per_step = 1
    Bt = batch_per_step

    xs = x_nchw.reshape(B, C, S)          # free view; transpose happens in-kernel

    vec, bqkv = kp["vec"], kp["bqkv"]
    wqkv, wo, w1, w2 = kp["wqkv"], kp["wo"], kp["w1"], kp["w2"]

    out = pl.pallas_call(
        functools.partial(_self_attention_kernel,
                          num_heads=_NUM_HEADS, batch_per_step=Bt),
        out_shape=jax.ShapeDtypeStruct((B, C, S), jnp.float32),
        grid_spec=pltpu.PrefetchScalarGridSpec(
            num_scalar_prefetch=0,
            grid=(B // Bt,),
            in_specs=[
                pl.BlockSpec((Bt, C, S), lambda g: (g, 0, 0)),
                pl.BlockSpec(vec.shape, lambda g: (0, 0)),
                pl.BlockSpec(bqkv.shape, lambda g: (0, 0)),
                pl.BlockSpec(wqkv.shape, lambda g: (0, 0)),
                pl.BlockSpec(wo.shape, lambda g: (0, 0)),
                pl.BlockSpec(w1.shape, lambda g: (0, 0)),
                pl.BlockSpec(w2.shape, lambda g: (0, 0)),
            ],
            out_specs=pl.BlockSpec((Bt, C, S), lambda g: (g, 0, 0)),
        ),
        compiler_params=pltpu.CompilerParams(
            dimension_semantics=("parallel",)),
    )(xs, vec, bqkv, wqkv, wo, w1, w2)

    return out.reshape(B, C, H, W)        # free view back to NCHW


# ----------------------------------------------------------------------------
# Deterministic parameter init (PyTorch shapes) + conversion to kernel layout
# ----------------------------------------------------------------------------
def init_params(key, c):
    ks = jax.random.split(key, 12)
    inv = 1.0 / math.sqrt(c)
    p = {}
    p["ln_g"] = 1.0 + 0.1 * jax.random.normal(ks[0], (c,), jnp.float32)
    p["ln_b"] = 0.1 * jax.random.normal(ks[1], (c,), jnp.float32)
    p["in_w"] = jax.random.normal(ks[2], (3 * c, c), jnp.float32) * inv   # in_proj_weight
    p["in_b"] = 0.1 * jax.random.normal(ks[3], (3 * c,), jnp.float32)     # in_proj_bias
    p["out_w"] = jax.random.normal(ks[4], (c, c), jnp.float32) * inv      # out_proj.weight
    p["out_b"] = 0.1 * jax.random.normal(ks[5], (c,), jnp.float32)        # out_proj.bias
    p["ffln_g"] = 1.0 + 0.1 * jax.random.normal(ks[6], (c,), jnp.float32)
    p["ffln_b"] = 0.1 * jax.random.normal(ks[7], (c,), jnp.float32)
    p["ff_w1"] = jax.random.normal(ks[8], (c, c), jnp.float32) * inv
    p["ff_b1"] = 0.1 * jax.random.normal(ks[9], (c,), jnp.float32)
    p["ff_w2"] = jax.random.normal(ks[10], (c, c), jnp.float32) * inv
    p["ff_b2"] = 0.1 * jax.random.normal(ks[11], (c,), jnp.float32)
    return p


def to_kernel_params(p):
    c = p["out_w"].shape[0]
    hd = c // _NUM_HEADS
    scale = 1.0 / math.sqrt(hd)

    # Fold the 1/sqrt(head_dim) attention scale into the Q projection rows.
    in_w = jnp.concatenate([p["in_w"][:c] * scale, p["in_w"][c:]], axis=0)  # (3C, C)
    in_b = jnp.concatenate([p["in_b"][:c] * scale, p["in_b"][c:]], axis=0)  # (3C,)

    kp = {}
    # packed fp32 gain/bias vectors: rows [ln_g, ln_b, ffg, ffb, bo, b1, b2]
    kp["vec"] = jnp.stack([p["ln_g"], p["ln_b"], p["ffln_g"], p["ffln_b"],
                           p["out_b"], p["ff_b1"], p["ff_b2"]],
                          axis=0).astype(jnp.float32)             # (7, C)
    kp["bqkv"] = in_b.reshape(1, 3 * c).astype(jnp.float32)       # (1, 3C)
    kp["wqkv"] = jnp.transpose(in_w).astype(jnp.bfloat16)         # (C, 3C)
    kp["wo"] = jnp.transpose(p["out_w"]).astype(jnp.bfloat16)     # (C, C)
    kp["w1"] = jnp.transpose(p["ff_w1"]).astype(jnp.bfloat16)     # (C, C)
    kp["w2"] = jnp.transpose(p["ff_w2"]).astype(jnp.bfloat16)     # (C, C)
    return kp


# ----------------------------------------------------------------------------
# Pure-JAX fp32 reference mirroring the PyTorch forward, for validation
# ----------------------------------------------------------------------------
def ref_self_attention(p, x):
    B, C, H, W = x.shape
    S = H * W
    nh = _NUM_HEADS
    hd = C // nh
    xs = jnp.transpose(x.reshape(B, C, S), (0, 2, 1))          # (B, S, C)

    def ln(y, g, b):
        m = jnp.mean(y, -1, keepdims=True)
        v = jnp.mean((y - m) ** 2, -1, keepdims=True)
        return (y - m) / jnp.sqrt(v + _EPS) * g + b

    x_ln = ln(xs, p["ln_g"], p["ln_b"])
    qkv = x_ln @ p["in_w"].T + p["in_b"]                        # (B, S, 3C)
    q, k, v = jnp.split(qkv, 3, axis=-1)

    def heads(z):                                               # (B,S,C)->(B,nh,S,hd)
        return jnp.transpose(z.reshape(B, S, nh, hd), (0, 2, 1, 3))

    q, k, v = heads(q), heads(k), heads(v)
    s = jnp.einsum("bhqd,bhkd->bhqk", q, k) / math.sqrt(hd)
    pattn = jax.nn.softmax(s, axis=-1)
    ctx = jnp.einsum("bhqk,bhkd->bhqd", pattn, v)
    ctx = jnp.transpose(ctx, (0, 2, 1, 3)).reshape(B, S, C)
    attn = ctx @ p["out_w"].T + p["out_b"]
    h1 = attn + xs
    hf = ln(h1, p["ffln_g"], p["ffln_b"])
    f = jax.nn.relu(hf @ p["ff_w1"].T + p["ff_b1"]) @ p["ff_w2"].T + p["ff_b2"]
    out = f + h1
    return jnp.transpose(out, (0, 2, 1)).reshape(B, C, H, W)


if __name__ == "__main__":
    key = jax.random.PRNGKey(0)
    kx, kparam = jax.random.split(key)

    # channels=32 (4 heads x head_dim 8), size=8 -> seq len 64, batch 2
    B, C, SIZE = 2, 32, 8
    x = jax.random.normal(kx, (B, C, SIZE, SIZE), jnp.float32)

    params = init_params(kparam, C)
    kparams = to_kernel_params(params)

    out = jax.jit(self_attention_forward)(kparams, x)
    out = jax.block_until_ready(out)
    assert out.shape == (B, C, SIZE, SIZE), out.shape

    ref = ref_self_attention(params, x)
    max_err = float(jnp.max(jnp.abs(out - ref)))
    mean_err = float(jnp.mean(jnp.abs(out - ref)))
    ref_scale = float(jnp.max(jnp.abs(ref)))
    # bf16 MXU operands with fp32 accumulation: tolerance sized for bf16,
    # still far below the O(1) errors a semantic bug would produce.
    if max_err > 0.05 * ref_scale + 0.05 or mean_err > 0.02:
        raise SystemExit(
            f"mismatch vs reference: max abs err = {max_err}, mean abs err = {mean_err}")

    print("KERNEL_OK")
</pallas_src>

<mosaic_0001>
module attributes {stable_mosaic.version = 11 : i64} {
  func.func @_self_attention_kernel(%arg0: i32, %arg1: memref<2x32x64xf32, #tpu.memory_space<vmem>>, %arg2: memref<7x32xf32, #tpu.memory_space<vmem>>, %arg3: memref<1x96xf32, #tpu.memory_space<vmem>>, %arg4: memref<32x96xbf16, #tpu.memory_space<vmem>>, %arg5: memref<32x32xbf16, #tpu.memory_space<vmem>>, %arg6: memref<32x32xbf16, #tpu.memory_space<vmem>>, %arg7: memref<32x32xbf16, #tpu.memory_space<vmem>>, %arg8: memref<2x32x64xf32, #tpu.memory_space<vmem>>) attributes {dimension_semantics = [#tpu.dimension_semantics<parallel>], iteration_bounds = array<i64: 1>, scalar_prefetch = 0 : i64, scratch_operands = 0 : i64, tpu.core_type = #tpu.core_type<tc>, window_params = [{transform_indices = @transform_0, window_bounds = array<i64: 2, 32, 64>}, {pipeline_mode = #tpu.pipeline_mode<synchronous>, transform_indices = @transform_1, window_bounds = array<i64: 7, 32>}, {pipeline_mode = #tpu.pipeline_mode<synchronous>, transform_indices = @transform_2, window_bounds = array<i64: 1, 96>}, {pipeline_mode = #tpu.pipeline_mode<synchronous>, transform_indices = @transform_3, window_bounds = array<i64: 32, 96>}, {pipeline_mode = #tpu.pipeline_mode<synchronous>, transform_indices = @transform_4, window_bounds = array<i64: 32, 32>}, {pipeline_mode = #tpu.pipeline_mode<synchronous>, transform_indices = @transform_5, window_bounds = array<i64: 32, 32>}, {pipeline_mode = #tpu.pipeline_mode<synchronous>, transform_indices = @transform_6, window_bounds = array<i64: 32, 32>}, {transform_indices = @transform_7, window_bounds = array<i64: 2, 32, 64>}]} {
    %c0 = arith.constant 0 : index
    %c0_0 = arith.constant 0 : index
    %0 = vector.load %arg2[%c0, %c0_0] : memref<7x32xf32, #tpu.memory_space<vmem>>, vector<7x32xf32>
    %1 = vector.extract_strided_slice %0 {offsets = [0, 0], sizes = [1, 32], strides = [1, 1]} : vector<7x32xf32> to vector<1x32xf32>
    %2 = vector.extract_strided_slice %0 {offsets = [1, 0], sizes = [1, 32], strides = [1, 1]} : vector<7x32xf32> to vector<1x32xf32>
    %3 = vector.extract_strided_slice %0 {offsets = [2, 0], sizes = [1, 32], strides = [1, 1]} : vector<7x32xf32> to vector<1x32xf32>
    %4 = vector.extract_strided_slice %0 {offsets = [3, 0], sizes = [1, 32], strides = [1, 1]} : vector<7x32xf32> to vector<1x32xf32>
    %5 = vector.extract_strided_slice %0 {offsets = [4, 0], sizes = [1, 32], strides = [1, 1]} : vector<7x32xf32> to vector<1x32xf32>
    %6 = vector.extract_strided_slice %0 {offsets = [5, 0], sizes = [1, 32], strides = [1, 1]} : vector<7x32xf32> to vector<1x32xf32>
    %7 = vector.extract_strided_slice %0 {offsets = [6, 0], sizes = [1, 32], strides = [1, 1]} : vector<7x32xf32> to vector<1x32xf32>
    %c0_1 = arith.constant 0 : index
    %c0_2 = arith.constant 0 : index
    %c0_3 = arith.constant 0 : index
    %8 = vector.load %arg1[%c0_1, %c0_2, %c0_3] : memref<2x32x64xf32, #tpu.memory_space<vmem>>, vector<1x32x64xf32>
    %9 = vector.shape_cast %8 : vector<1x32x64xf32> to vector<32x64xf32>
    %10 = tpu.transpose %9, [1, 0] : vector<32x64xf32> -> vector<64x32xf32>
    %c1 = arith.constant 1 : index
    %c0_4 = arith.constant 0 : index
    %c0_5 = arith.constant 0 : index
    %11 = vector.load %arg1[%c1, %c0_4, %c0_5] : memref<2x32x64xf32, #tpu.memory_space<vmem>>, vector<1x32x64xf32>
    %12 = vector.shape_cast %11 : vector<1x32x64xf32> to vector<32x64xf32>
    %13 = tpu.transpose %12, [1, 0] : vector<32x64xf32> -> vector<64x32xf32>
    %14 = tpu.concatenate %10, %13 in 0 : vector<64x32xf32>, vector<64x32xf32> -> vector<128x32xf32>
    %cst = arith.constant dense<0.000000e+00> : vector<128xf32>
    %15 = vector.multi_reduction <add>, %14, %cst [1] : vector<128x32xf32> to vector<128xf32>
    %16 = vector.shape_cast %15 : vector<128xf32> to vector<128x1xf32>
    %cst_6 = arith.constant 3.200000e+01 : f32
    %17 = vector.broadcast %cst_6 : f32 to vector<128x1xf32>
    %18 = arith.divf %16, %17 : vector<128x1xf32>
    %19 = arith.mulf %14, %14 : vector<128x32xf32>
    %cst_7 = arith.constant dense<0.000000e+00> : vector<128xf32>
    %20 = vector.multi_reduction <add>, %19, %cst_7 [1] : vector<128x32xf32> to vector<128xf32>
    %21 = vector.shape_cast %20 : vector<128xf32> to vector<128x1xf32>
    %cst_8 = arith.constant 3.200000e+01 : f32
    %22 = vector.broadcast %cst_8 : f32 to vector<128x1xf32>
    %23 = arith.divf %21, %22 : vector<128x1xf32>
    %24 = arith.mulf %18, %18 : vector<128x1xf32>
    %25 = arith.subf %23, %24 : vector<128x1xf32>
    %26 = vector.broadcast %18 : vector<128x1xf32> to vector<128x32xf32>
    %27 = arith.subf %14, %26 : vector<128x32xf32>
    %cst_9 = arith.constant 9.99999974E-6 : f32
    %28 = vector.broadcast %cst_9 : f32 to vector<128x1xf32>
    %29 = arith.addf %25, %28 : vector<128x1xf32>
    %30 = math.rsqrt %29 : vector<128x1xf32>
    %31 = vector.broadcast %30 : vector<128x1xf32> to vector<128x32xf32>
    %32 = arith.mulf %27, %31 : vector<128x32xf32>
    %33 = vector.broadcast %1 : vector<1x32xf32> to vector<128x32xf32>
    %34 = arith.mulf %32, %33 : vector<128x32xf32>
    %35 = vector.broadcast %2 : vector<1x32xf32> to vector<128x32xf32>
    %36 = arith.addf %34, %35 : vector<128x32xf32>
    %37 = arith.truncf %36 : vector<128x32xf32> to vector<128x32xbf16>
    %c0_10 = arith.constant 0 : index
    %c0_11 = arith.constant 0 : index
    %38 = vector.load %arg4[%c0_10, %c0_11] : memref<32x96xbf16, #tpu.memory_space<vmem>>, vector<32x96xbf16>
    %cst_12 = arith.constant dense<0.000000e+00> : vector<128x96xf32>
    %39 = tpu.matmul %37, %38, %cst_12 {dimension_numbers = #tpu.dot_dimension_numbers<[1], [0], [0], [1], [0, 0, 1, 1], [], []>} : vector<128x32xbf16>, vector<32x96xbf16>, vector<128x96xf32> -> vector<128x96xf32>
    %c0_13 = arith.constant 0 : index
    %c0_14 = arith.constant 0 : index
    %40 = vector.load %arg3[%c0_13, %c0_14] : memref<1x96xf32, #tpu.memory_space<vmem>>, vector<1x96xf32>
    %41 = vector.broadcast %40 : vector<1x96xf32> to vector<128x96xf32>
    %42 = arith.addf %39, %41 : vector<128x96xf32>
    %43 = arith.truncf %42 : vector<128x96xf32> to vector<128x96xbf16>
    %c0_15 = arith.constant 0 : index
    %c0_16 = arith.constant 0 : index
    %44 = vector.load %arg5[%c0_15, %c0_16] : memref<32x32xbf16, #tpu.memory_space<vmem>>, vector<32x32xbf16>
    %cst_17 = arith.constant 0.000000e+00 : f32
    %45 = vector.broadcast %cst_17 : f32 to vector<64x32xf32>
    %46 = vector.extract_strided_slice %43 {offsets = [0, 0], sizes = [64, 8], strides = [1, 1]} : vector<128x96xbf16> to vector<64x8xbf16>
    %47 = vector.extract_strided_slice %43 {offsets = [0, 32], sizes = [64, 8], strides = [1, 1]} : vector<128x96xbf16> to vector<64x8xbf16>
    %48 = vector.extract_strided_slice %43 {offsets = [0, 64], sizes = [64, 8], strides = [1, 1]} : vector<128x96xbf16> to vector<64x8xbf16>
    %cst_18 = arith.constant dense<0.000000e+00> : vector<64x64xf32>
    %49 = tpu.matmul %46, %47, %cst_18 {dimension_numbers = #tpu.dot_dimension_numbers<[1], [1], [0], [0], [0, 0, 1, 0], [], []>} : vector<64x8xbf16>, vector<64x8xbf16>, vector<64x64xf32> -> vector<64x64xf32>
    %cst_19 = arith.constant dense<0xFF800000> : vector<64xf32>
    %50 = vector.multi_reduction <maximumf>, %49, %cst_19 [1] : vector<64x64xf32> to vector<64xf32>
    %51 = vector.shape_cast %50 : vector<64xf32> to vector<64x1xf32>
    %52 = vector.broadcast %51 : vector<64x1xf32> to vector<64x64xf32>
    %53 = arith.subf %49, %52 : vector<64x64xf32>
    %54 = math.exp %53 : vector<64x64xf32>
    %cst_20 = arith.constant dense<0.000000e+00> : vector<64xf32>
    %55 = vector.multi_reduction <add>, %54, %cst_20 [1] : vector<64x64xf32> to vector<64xf32>
    %56 = vector.shape_cast %55 : vector<64xf32> to vector<64x1xf32>
    %57 = tpu.reciprocal %56 {approx = true} : vector<64x1xf32> -> vector<64x1xf32>
    %58 = vector.broadcast %57 : vector<64x1xf32> to vector<64x64xf32>
    %59 = arith.mulf %54, %58 : vector<64x64xf32>
    %60 = arith.truncf %59 : vector<64x64xf32> to vector<64x64xbf16>
    %cst_21 = arith.constant dense<0.000000e+00> : vector<64x8xf32>
    %61 = tpu.matmul %60, %48, %cst_21 {dimension_numbers = #tpu.dot_dimension_numbers<[1], [0], [0], [1], [0, 0, 1, 1], [], []>} : vector<64x64xbf16>, vector<64x8xbf16>, vector<64x8xf32> -> vector<64x8xf32>
    %62 = arith.truncf %61 : vector<64x8xf32> to vector<64x8xbf16>
    %63 = vector.extract_strided_slice %44 {offsets = [0, 0], sizes = [8, 32], strides = [1, 1]} : vector<32x32xbf16> to vector<8x32xbf16>
    %cst_22 = arith.constant dense<0.000000e+00> : vector<64x32xf32>
    %64 = tpu.matmul %62, %63, %cst_22 {dimension_numbers = #tpu.dot_dimension_numbers<[1], [0], [0], [1], [0, 0, 1, 1], [], []>} : vector<64x8xbf16>, vector<8x32xbf16>, vector<64x32xf32> -> vector<64x32xf32>
    %65 = arith.addf %45, %64 : vector<64x32xf32>
    %66 = vector.extract_strided_slice %43 {offsets = [0, 8], sizes = [64, 8], strides = [1, 1]} : vector<128x96xbf16> to vector<64x8xbf16>
    %67 = vector.extract_strided_slice %43 {offsets = [0, 40], sizes = [64, 8], strides = [1, 1]} : vector<128x96xbf16> to vector<64x8xbf16>
    %68 = vector.extract_strided_slice %43 {offsets = [0, 72], sizes = [64, 8], strides = [1, 1]} : vector<128x96xbf16> to vector<64x8xbf16>
    %cst_23 = arith.constant dense<0.000000e+00> : vector<64x64xf32>
    %69 = tpu.matmul %66, %67, %cst_23 {dimension_numbers = #tpu.dot_dimension_numbers<[1], [1], [0], [0], [0, 0, 1, 0], [], []>} : vector<64x8xbf16>, vector<64x8xbf16>, vector<64x64xf32> -> vector<64x64xf32>
    %cst_24 = arith.constant dense<0xFF800000> : vector<64xf32>
    %70 = vector.multi_reduction <maximumf>, %69, %cst_24 [1] : vector<64x64xf32> to vector<64xf32>
    %71 = vector.shape_cast %70 : vector<64xf32> to vector<64x1xf32>
    %72 = vector.broadcast %71 : vector<64x1xf32> to vector<64x64xf32>
    %73 = arith.subf %69, %72 : vector<64x64xf32>
    %74 = math.exp %73 : vector<64x64xf32>
    %cst_25 = arith.constant dense<0.000000e+00> : vector<64xf32>
    %75 = vector.multi_reduction <add>, %74, %cst_25 [1] : vector<64x64xf32> to vector<64xf32>
    %76 = vector.shape_cast %75 : vector<64xf32> to vector<64x1xf32>
    %77 = tpu.reciprocal %76 {approx = true} : vector<64x1xf32> -> vector<64x1xf32>
    %78 = vector.broadcast %77 : vector<64x1xf32> to vector<64x64xf32>
    %79 = arith.mulf %74, %78 : vector<64x64xf32>
    %80 = arith.truncf %79 : vector<64x64xf32> to vector<64x64xbf16>
    %cst_26 = arith.constant dense<0.000000e+00> : vector<64x8xf32>
    %81 = tpu.matmul %80, %68, %cst_26 {dimension_numbers = #tpu.dot_dimension_numbers<[1], [0], [0], [1], [0, 0, 1, 1], [], []>} : vector<64x64xbf16>, vector<64x8xbf16>, vector<64x8xf32> -> vector<64x8xf32>
    %82 = arith.truncf %81 : vector<64x8xf32> to vector<64x8xbf16>
    %83 = vector.extract_strided_slice %44 {offsets = [8, 0], sizes = [8, 32], strides = [1, 1]} : vector<32x32xbf16> to vector<8x32xbf16>
    %cst_27 = arith.constant dense<0.000000e+00> : vector<64x32xf32>
    %84 = tpu.matmul %82, %83, %cst_27 {dimension_numbers = #tpu.dot_dimension_numbers<[1], [0], [0], [1], [0, 0, 1, 1], [], []>} : vector<64x8xbf16>, vector<8x32xbf16>, vector<64x32xf32> -> vector<64x32xf32>
    %85 = arith.addf %65, %84 : vector<64x32xf32>
    %86 = vector.extract_strided_slice %43 {offsets = [0, 16], sizes = [64, 8], strides = [1, 1]} : vector<128x96xbf16> to vector<64x8xbf16>
    %87 = vector.extract_strided_slice %43 {offsets = [0, 48], sizes = [64, 8], strides = [1, 1]} : vector<128x96xbf16> to vector<64x8xbf16>
    %88 = vector.extract_strided_slice %43 {offsets = [0, 80], sizes = [64, 8], strides = [1, 1]} : vector<128x96xbf16> to vector<64x8xbf16>
    %cst_28 = arith.constant dense<0.000000e+00> : vector<64x64xf32>
    %89 = tpu.matmul %86, %87, %cst_28 {dimension_numbers = #tpu.dot_dimension_numbers<[1], [1], [0], [0], [0, 0, 1, 0], [], []>} : vector<64x8xbf16>, vector<64x8xbf16>, vector<64x64xf32> -> vector<64x64xf32>
    %cst_29 = arith.constant dense<0xFF800000> : vector<64xf32>
    %90 = vector.multi_reduction <maximumf>, %89, %cst_29 [1] : vector<64x64xf32> to vector<64xf32>
    %91 = vector.shape_cast %90 : vector<64xf32> to vector<64x1xf32>
    %92 = vector.broadcast %91 : vector<64x1xf32> to vector<64x64xf32>
    %93 = arith.subf %89, %92 : vector<64x64xf32>
    %94 = math.exp %93 : vector<64x64xf32>
    %cst_30 = arith.constant dense<0.000000e+00> : vector<64xf32>
    %95 = vector.multi_reduction <add>, %94, %cst_30 [1] : vector<64x64xf32> to vector<64xf32>
    %96 = vector.shape_cast %95 : vector<64xf32> to vector<64x1xf32>
    %97 = tpu.reciprocal %96 {approx = true} : vector<64x1xf32> -> vector<64x1xf32>
    %98 = vector.broadcast %97 : vector<64x1xf32> to vector<64x64xf32>
    %99 = arith.mulf %94, %98 : vector<64x64xf32>
    %100 = arith.truncf %99 : vector<64x64xf32> to vector<64x64xbf16>
    %cst_31 = arith.constant dense<0.000000e+00> : vector<64x8xf32>
    %101 = tpu.matmul %100, %88, %cst_31 {dimension_numbers = #tpu.dot_dimension_numbers<[1], [0], [0], [1], [0, 0, 1, 1], [], []>} : vector<64x64xbf16>, vector<64x8xbf16>, vector<64x8xf32> -> vector<64x8xf32>
    %102 = arith.truncf %101 : vector<64x8xf32> to vector<64x8xbf16>
    %103 = vector.extract_strided_slice %44 {offsets = [16, 0], sizes = [8, 32], strides = [1, 1]} : vector<32x32xbf16> to vector<8x32xbf16>
    %cst_32 = arith.constant dense<0.000000e+00> : vector<64x32xf32>
    %104 = tpu.matmul %102, %103, %cst_32 {dimension_numbers = #tpu.dot_dimension_numbers<[1], [0], [0], [1], [0, 0, 1, 1], [], []>} : vector<64x8xbf16>, vector<8x32xbf16>, vector<64x32xf32> -> vector<64x32xf32>
    %105 = arith.addf %85, %104 : vector<64x32xf32>
    %106 = vector.extract_strided_slice %43 {offsets = [0, 24], sizes = [64, 8], strides = [1, 1]} : vector<128x96xbf16> to vector<64x8xbf16>
    %107 = vector.extract_strided_slice %43 {offsets = [0, 56], sizes = [64, 8], strides = [1, 1]} : vector<128x96xbf16> to vector<64x8xbf16>
    %108 = vector.extract_strided_slice %43 {offsets = [0, 88], sizes = [64, 8], strides = [1, 1]} : vector<128x96xbf16> to vector<64x8xbf16>
    %cst_33 = arith.constant dense<0.000000e+00> : vector<64x64xf32>
    %109 = tpu.matmul %106, %107, %cst_33 {dimension_numbers = #tpu.dot_dimension_numbers<[1], [1], [0], [0], [0, 0, 1, 0], [], []>} : vector<64x8xbf16>, vector<64x8xbf16>, vector<64x64xf32> -> vector<64x64xf32>
    %cst_34 = arith.constant dense<0xFF800000> : vector<64xf32>
    %110 = vector.multi_reduction <maximumf>, %109, %cst_34 [1] : vector<64x64xf32> to vector<64xf32>
    %111 = vector.shape_cast %110 : vector<64xf32> to vector<64x1xf32>
    %112 = vector.broadcast %111 : vector<64x1xf32> to vector<64x64xf32>
    %113 = arith.subf %109, %112 : vector<64x64xf32>
    %114 = math.exp %113 : vector<64x64xf32>
    %cst_35 = arith.constant dense<0.000000e+00> : vector<64xf32>
    %115 = vector.multi_reduction <add>, %114, %cst_35 [1] : vector<64x64xf32> to vector<64xf32>
    %116 = vector.shape_cast %115 : vector<64xf32> to vector<64x1xf32>
    %117 = tpu.reciprocal %116 {approx = true} : vector<64x1xf32> -> vector<64x1xf32>
    %118 = vector.broadcast %117 : vector<64x1xf32> to vector<64x64xf32>
    %119 = arith.mulf %114, %118 : vector<64x64xf32>
    %120 = arith.truncf %119 : vector<64x64xf32> to vector<64x64xbf16>
    %cst_36 = arith.constant dense<0.000000e+00> : vector<64x8xf32>
    %121 = tpu.matmul %120, %108, %cst_36 {dimension_numbers = #tpu.dot_dimension_numbers<[1], [0], [0], [1], [0, 0, 1, 1], [], []>} : vector<64x64xbf16>, vector<64x8xbf16>, vector<64x8xf32> -> vector<64x8xf32>
    %122 = arith.truncf %121 : vector<64x8xf32> to vector<64x8xbf16>
    %123 = vector.extract_strided_slice %44 {offsets = [24, 0], sizes = [8, 32], strides = [1, 1]} : vector<32x32xbf16> to vector<8x32xbf16>
    %cst_37 = arith.constant dense<0.000000e+00> : vector<64x32xf32>
    %124 = tpu.matmul %122, %123, %cst_37 {dimension_numbers = #tpu.dot_dimension_numbers<[1], [0], [0], [1], [0, 0, 1, 1], [], []>} : vector<64x8xbf16>, vector<8x32xbf16>, vector<64x32xf32> -> vector<64x32xf32>
    %125 = arith.addf %105, %124 : vector<64x32xf32>
    %cst_38 = arith.constant 0.000000e+00 : f32
    %126 = vector.broadcast %cst_38 : f32 to vector<64x32xf32>
    %127 = vector.extract_strided_slice %43 {offsets = [64, 0], sizes = [64, 8], strides = [1, 1]} : vector<128x96xbf16> to vector<64x8xbf16>
    %128 = vector.extract_strided_slice %43 {offsets = [64, 32], sizes = [64, 8], strides = [1, 1]} : vector<128x96xbf16> to vector<64x8xbf16>
    %129 = vector.extract_strided_slice %43 {offsets = [64, 64], sizes = [64, 8], strides = [1, 1]} : vector<128x96xbf16> to vector<64x8xbf16>
    %cst_39 = arith.constant dense<0.000000e+00> : vector<64x64xf32>
    %130 = tpu.matmul %127, %128, %cst_39 {dimension_numbers = #tpu.dot_dimension_numbers<[1], [1], [0], [0], [0, 0, 1, 0], [], []>} : vector<64x8xbf16>, vector<64x8xbf16>, vector<64x64xf32> -> vector<64x64xf32>
    %cst_40 = arith.constant dense<0xFF800000> : vector<64xf32>
    %131 = vector.multi_reduction <maximumf>, %130, %cst_40 [1] : vector<64x64xf32> to vector<64xf32>
    %132 = vector.shape_cast %131 : vector<64xf32> to vector<64x1xf32>
    %133 = vector.broadcast %132 : vector<64x1xf32> to vector<64x64xf32>
    %134 = arith.subf %130, %133 : vector<64x64xf32>
    %135 = math.exp %134 : vector<64x64xf32>
    %cst_41 = arith.constant dense<0.000000e+00> : vector<64xf32>
    %136 = vector.multi_reduction <add>, %135, %cst_41 [1] : vector<64x64xf32> to vector<64xf32>
    %137 = vector.shape_cast %136 : vector<64xf32> to vector<64x1xf32>
    %138 = tpu.reciprocal %137 {approx = true} : vector<64x1xf32> -> vector<64x1xf32>
    %139 = vector.broadcast %138 : vector<64x1xf32> to vector<64x64xf32>
    %140 = arith.mulf %135, %139 : vector<64x64xf32>
    %141 = arith.truncf %140 : vector<64x64xf32> to vector<64x64xbf16>
    %cst_42 = arith.constant dense<0.000000e+00> : vector<64x8xf32>
    %142 = tpu.matmul %141, %129, %cst_42 {dimension_numbers = #tpu.dot_dimension_numbers<[1], [0], [0], [1], [0, 0, 1, 1], [], []>} : vector<64x64xbf16>, vector<64x8xbf16>, vector<64x8xf32> -> vector<64x8xf32>
    %143 = arith.truncf %142 : vector<64x8xf32> to vector<64x8xbf16>
    %144 = vector.extract_strided_slice %44 {offsets = [0, 0], sizes = [8, 32], strides = [1, 1]} : vector<32x32xbf16> to vector<8x32xbf16>
    %cst_43 = arith.constant dense<0.000000e+00> : vector<64x32xf32>
    %145 = tpu.matmul %143, %144, %cst_43 {dimension_numbers = #tpu.dot_dimension_numbers<[1], [0], [0], [1], [0, 0, 1, 1], [], []>} : vector<64x8xbf16>, vector<8x32xbf16>, vector<64x32xf32> -> vector<64x32xf32>
    %146 = arith.addf %126, %145 : vector<64x32xf32>
    %147 = vector.extract_strided_slice %43 {offsets = [64, 8], sizes = [64, 8], strides = [1, 1]} : vector<128x96xbf16> to vector<64x8xbf16>
    %148 = vector.extract_strided_slice %43 {offsets = [64, 40], sizes = [64, 8], strides = [1, 1]} : vector<128x96xbf16> to vector<64x8xbf16>
    %149 = vector.extract_strided_slice %43 {offsets = [64, 72], sizes = [64, 8], strides = [1, 1]} : vector<128x96xbf16> to vector<64x8xbf16>
    %cst_44 = arith.constant dense<0.000000e+00> : vector<64x64xf32>
    %150 = tpu.matmul %147, %148, %cst_44 {dimension_numbers = #tpu.dot_dimension_numbers<[1], [1], [0], [0], [0, 0, 1, 0], [], []>} : vector<64x8xbf16>, vector<64x8xbf16>, vector<64x64xf32> -> vector<64x64xf32>
    %cst_45 = arith.constant dense<0xFF800000> : vector<64xf32>
    %151 = vector.multi_reduction <maximumf>, %150, %cst_45 [1] : vector<64x64xf32> to vector<64xf32>
    %152 = vector.shape_cast %151 : vector<64xf32> to vector<64x1xf32>
    %153 = vector.broadcast %152 : vector<64x1xf32> to vector<64x64xf32>
    %154 = arith.subf %150, %153 : vector<64x64xf32>
    %155 = math.exp %154 : vector<64x64xf32>
    %cst_46 = arith.constant dense<0.000000e+00> : vector<64xf32>
    %156 = vector.multi_reduction <add>, %155, %cst_46 [1] : vector<64x64xf32> to vector<64xf32>
    %157 = vector.shape_cast %156 : vector<64xf32> to vector<64x1xf32>
    %158 = tpu.reciprocal %157 {approx = true} : vector<64x1xf32> -> vector<64x1xf32>
    %159 = vector.broadcast %158 : vector<64x1xf32> to vector<64x64xf32>
    %160 = arith.mulf %155, %159 : vector<64x64xf32>
    %161 = arith.truncf %160 : vector<64x64xf32> to vector<64x64xbf16>
    %cst_47 = arith.constant dense<0.000000e+00> : vector<64x8xf32>
    %162 = tpu.matmul %161, %149, %cst_47 {dimension_numbers = #tpu.dot_dimension_numbers<[1], [0], [0], [1], [0, 0, 1, 1], [], []>} : vector<64x64xbf16>, vector<64x8xbf16>, vector<64x8xf32> -> vector<64x8xf32>
    %163 = arith.truncf %162 : vector<64x8xf32> to vector<64x8xbf16>
    %164 = vector.extract_strided_slice %44 {offsets = [8, 0], sizes = [8, 32], strides = [1, 1]} : vector<32x32xbf16> to vector<8x32xbf16>
    %cst_48 = arith.constant dense<0.000000e+00> : vector<64x32xf32>
    %165 = tpu.matmul %163, %164, %cst_48 {dimension_numbers = #tpu.dot_dimension_numbers<[1], [0], [0], [1], [0, 0, 1, 1], [], []>} : vector<64x8xbf16>, vector<8x32xbf16>, vector<64x32xf32> -> vector<64x32xf32>
    %166 = arith.addf %146, %165 : vector<64x32xf32>
    %167 = vector.extract_strided_slice %43 {offsets = [64, 16], sizes = [64, 8], strides = [1, 1]} : vector<128x96xbf16> to vector<64x8xbf16>
    %168 = vector.extract_strided_slice %43 {offsets = [64, 48], sizes = [64, 8], strides = [1, 1]} : vector<128x96xbf16> to vector<64x8xbf16>
    %169 = vector.extract_strided_slice %43 {offsets = [64, 80], sizes = [64, 8], strides = [1, 1]} : vector<128x96xbf16> to vector<64x8xbf16>
    %cst_49 = arith.constant dense<0.000000e+00> : vector<64x64xf32>
    %170 = tpu.matmul %167, %168, %cst_49 {dimension_numbers = #tpu.dot_dimension_numbers<[1], [1], [0], [0], [0, 0, 1, 0], [], []>} : vector<64x8xbf16>, vector<64x8xbf16>, vector<64x64xf32> -> vector<64x64xf32>
    %cst_50 = arith.constant dense<0xFF800000> : vector<64xf32>
    %171 = vector.multi_reduction <maximumf>, %170, %cst_50 [1] : vector<64x64xf32> to vector<64xf32>
    %172 = vector.shape_cast %171 : vector<64xf32> to vector<64x1xf32>
    %173 = vector.broadcast %172 : vector<64x1xf32> to vector<64x64xf32>
    %174 = arith.subf %170, %173 : vector<64x64xf32>
    %175 = math.exp %174 : vector<64x64xf32>
    %cst_51 = arith.constant dense<0.000000e+00> : vector<64xf32>
    %176 = vector.multi_reduction <add>, %175, %cst_51 [1] : vector<64x64xf32> to vector<64xf32>
    %177 = vector.shape_cast %176 : vector<64xf32> to vector<64x1xf32>
    %178 = tpu.reciprocal %177 {approx = true} : vector<64x1xf32> -> vector<64x1xf32>
    %179 = vector.broadcast %178 : vector<64x1xf32> to vector<64x64xf32>
    %180 = arith.mulf %175, %179 : vector<64x64xf32>
    %181 = arith.truncf %180 : vector<64x64xf32> to vector<64x64xbf16>
    %cst_52 = arith.constant dense<0.000000e+00> : vector<64x8xf32>
    %182 = tpu.matmul %181, %169, %cst_52 {dimension_numbers = #tpu.dot_dimension_numbers<[1], [0], [0], [1], [0, 0, 1, 1], [], []>} : vector<64x64xbf16>, vector<64x8xbf16>, vector<64x8xf32> -> vector<64x8xf32>
    %183 = arith.truncf %182 : vector<64x8xf32> to vector<64x8xbf16>
    %184 = vector.extract_strided_slice %44 {offsets = [16, 0], sizes = [8, 32], strides = [1, 1]} : vector<32x32xbf16> to vector<8x32xbf16>
    %cst_53 = arith.constant dense<0.000000e+00> : vector<64x32xf32>
    %185 = tpu.matmul %183, %184, %cst_53 {dimension_numbers = #tpu.dot_dimension_numbers<[1], [0], [0], [1], [0, 0, 1, 1], [], []>} : vector<64x8xbf16>, vector<8x32xbf16>, vector<64x32xf32> -> vector<64x32xf32>
    %186 = arith.addf %166, %185 : vector<64x32xf32>
    %187 = vector.extract_strided_slice %43 {offsets = [64, 24], sizes = [64, 8], strides = [1, 1]} : vector<128x96xbf16> to vector<64x8xbf16>
    %188 = vector.extract_strided_slice %43 {offsets = [64, 56], sizes = [64, 8], strides = [1, 1]} : vector<128x96xbf16> to vector<64x8xbf16>
    %189 = vector.extract_strided_slice %43 {offsets = [64, 88], sizes = [64, 8], strides = [1, 1]} : vector<128x96xbf16> to vector<64x8xbf16>
    %cst_54 = arith.constant dense<0.000000e+00> : vector<64x64xf32>
    %190 = tpu.matmul %187, %188, %cst_54 {dimension_numbers = #tpu.dot_dimension_numbers<[1], [1], [0], [0], [0, 0, 1, 0], [], []>} : vector<64x8xbf16>, vector<64x8xbf16>, vector<64x64xf32> -> vector<64x64xf32>
    %cst_55 = arith.constant dense<0xFF800000> : vector<64xf32>
    %191 = vector.multi_reduction <maximumf>, %190, %cst_55 [1] : vector<64x64xf32> to vector<64xf32>
    %192 = vector.shape_cast %191 : vector<64xf32> to vector<64x1xf32>
    %193 = vector.broadcast %192 : vector<64x1xf32> to vector<64x64xf32>
    %194 = arith.subf %190, %193 : vector<64x64xf32>
    %195 = math.exp %194 : vector<64x64xf32>
    %cst_56 = arith.constant dense<0.000000e+00> : vector<64xf32>
    %196 = vector.multi_reduction <add>, %195, %cst_56 [1] : vector<64x64xf32> to vector<64xf32>
    %197 = vector.shape_cast %196 : vector<64xf32> to vector<64x1xf32>
    %198 = tpu.reciprocal %197 {approx = true} : vector<64x1xf32> -> vector<64x1xf32>
    %199 = vector.broadcast %198 : vector<64x1xf32> to vector<64x64xf32>
    %200 = arith.mulf %195, %199 : vector<64x64xf32>
    %201 = arith.truncf %200 : vector<64x64xf32> to vector<64x64xbf16>
    %cst_57 = arith.constant dense<0.000000e+00> : vector<64x8xf32>
    %202 = tpu.matmul %201, %189, %cst_57 {dimension_numbers = #tpu.dot_dimension_numbers<[1], [0], [0], [1], [0, 0, 1, 1], [], []>} : vector<64x64xbf16>, vector<64x8xbf16>, vector<64x8xf32> -> vector<64x8xf32>
    %203 = arith.truncf %202 : vector<64x8xf32> to vector<64x8xbf16>
    %204 = vector.extract_strided_slice %44 {offsets = [24, 0], sizes = [8, 32], strides = [1, 1]} : vector<32x32xbf16> to vector<8x32xbf16>
    %cst_58 = arith.constant dense<0.000000e+00> : vector<64x32xf32>
    %205 = tpu.matmul %203, %204, %cst_58 {dimension_numbers = #tpu.dot_dimension_numbers<[1], [0], [0], [1], [0, 0, 1, 1], [], []>} : vector<64x8xbf16>, vector<8x32xbf16>, vector<64x32xf32> -> vector<64x32xf32>
    %206 = arith.addf %186, %205 : vector<64x32xf32>
    %207 = tpu.concatenate %125, %206 in 0 : vector<64x32xf32>, vector<64x32xf32> -> vector<128x32xf32>
    %208 = vector.broadcast %5 : vector<1x32xf32> to vector<128x32xf32>
    %209 = arith.addf %207, %208 : vector<128x32xf32>
    %210 = arith.addf %209, %14 : vector<128x32xf32>
    %cst_59 = arith.constant dense<0.000000e+00> : vector<128xf32>
    %211 = vector.multi_reduction <add>, %210, %cst_59 [1] : vector<128x32xf32> to vector<128xf32>
    %212 = vector.shape_cast %211 : vector<128xf32> to vector<128x1xf32>
    %cst_60 = arith.constant 3.200000e+01 : f32
    %213 = vector.broadcast %cst_60 : f32 to vector<128x1xf32>
    %214 = arith.divf %212, %213 : vector<128x1xf32>
    %215 = arith.mulf %210, %210 : vector<128x32xf32>
    %cst_61 = arith.constant dense<0.000000e+00> : vector<128xf32>
    %216 = vector.multi_reduction <add>, %215, %cst_61 [1] : vector<128x32xf32> to vector<128xf32>
    %217 = vector.shape_cast %216 : vector<128xf32> to vector<128x1xf32>
    %cst_62 = arith.constant 3.200000e+01 : f32
    %218 = vector.broadcast %cst_62 : f32 to vector<128x1xf32>
    %219 = arith.divf %217, %218 : vector<128x1xf32>
    %220 = arith.mulf %214, %214 : vector<128x1xf32>
    %221 = arith.subf %219, %220 : vector<128x1xf32>
    %222 = vector.broadcast %214 : vector<128x1xf32> to vector<128x32xf32>
    %223 = arith.subf %210, %222 : vector<128x32xf32>
    %cst_63 = arith.constant 9.99999974E-6 : f32
    %224 = vector.broadcast %cst_63 : f32 to vector<128x1xf32>
    %225 = arith.addf %221, %224 : vector<128x1xf32>
    %226 = math.rsqrt %225 : vector<128x1xf32>
    %227 = vector.broadcast %226 : vector<128x1xf32> to vector<128x32xf32>
    %228 = arith.mulf %223, %227 : vector<128x32xf32>
    %229 = vector.broadcast %3 : vector<1x32xf32> to vector<128x32xf32>
    %230 = arith.mulf %228, %229 : vector<128x32xf32>
    %231 = vector.broadcast %4 : vector<1x32xf32> to vector<128x32xf32>
    %232 = arith.addf %230, %231 : vector<128x32xf32>
    %233 = arith.truncf %232 : vector<128x32xf32> to vector<128x32xbf16>
    %c0_64 = arith.constant 0 : index
    %c0_65 = arith.constant 0 : index
    %234 = vector.load %arg6[%c0_64, %c0_65] : memref<32x32xbf16, #tpu.memory_space<vmem>>, vector<32x32xbf16>
    %cst_66 = arith.constant dense<0.000000e+00> : vector<128x32xf32>
    %235 = tpu.matmul %233, %234, %cst_66 {dimension_numbers = #tpu.dot_dimension_numbers<[1], [0], [0], [1], [0, 0, 1, 1], [], []>} : vector<128x32xbf16>, vector<32x32xbf16>, vector<128x32xf32> -> vector<128x32xf32>
    %236 = vector.broadcast %6 : vector<1x32xf32> to vector<128x32xf32>
    %237 = arith.addf %235, %236 : vector<128x32xf32>
    %cst_67 = arith.constant 0.000000e+00 : f32
    %238 = vector.broadcast %cst_67 : f32 to vector<128x32xf32>
    %239 = arith.maximumf %237, %238 : vector<128x32xf32>
    %240 = arith.truncf %239 : vector<128x32xf32> to vector<128x32xbf16>
    %c0_68 = arith.constant 0 : index
    %c0_69 = arith.constant 0 : index
    %241 = vector.load %arg7[%c0_68, %c0_69] : memref<32x32xbf16, #tpu.memory_space<vmem>>, vector<32x32xbf16>
    %cst_70 = arith.constant dense<0.000000e+00> : vector<128x32xf32>
    %242 = tpu.matmul %240, %241, %cst_70 {dimension_numbers = #tpu.dot_dimension_numbers<[1], [0], [0], [1], [0, 0, 1, 1], [], []>} : vector<128x32xbf16>, vector<32x32xbf16>, vector<128x32xf32> -> vector<128x32xf32>
    %243 = vector.broadcast %7 : vector<1x32xf32> to vector<128x32xf32>
    %244 = arith.addf %242, %243 : vector<128x32xf32>
    %245 = arith.addf %244, %210 : vector<128x32xf32>
    %246 = vector.extract_strided_slice %245 {offsets = [0, 0], sizes = [64, 32], strides = [1, 1]} : vector<128x32xf32> to vector<64x32xf32>
    %247 = tpu.transpose %246, [1, 0] : vector<64x32xf32> -> vector<32x64xf32>
    %c0_71 = arith.constant 0 : index
    %c0_72 = arith.constant 0 : index
    %c0_73 = arith.constant 0 : index
    %248 = vector.load %arg8[%c0_71, %c0_72, %c0_73] : memref<2x32x64xf32, #tpu.memory_space<vmem>>, vector<1x32x64xf32>
    %249 = vector.shape_cast %248 : vector<1x32x64xf32> to vector<32x64xf32>
    %250 = vector.shape_cast %247 : vector<32x64xf32> to vector<1x32x64xf32>
    tpu.vector_store %arg8[%c0_71, %c0_72, %c0_73], %250 {strides = array<i32>} : memref<2x32x64xf32, #tpu.memory_space<vmem>>, vector<1x32x64xf32>,
    %251 = vector.extract_strided_slice %245 {offsets = [64, 0], sizes = [64, 32], strides = [1, 1]} : vector<128x32xf32> to vector<64x32xf32>
    %252 = tpu.transpose %251, [1, 0] : vector<64x32xf32> -> vector<32x64xf32>
    %c1_74 = arith.constant 1 : index
    %c0_75 = arith.constant 0 : index
    %c0_76 = arith.constant 0 : index
    %253 = vector.load %arg8[%c1_74, %c0_75, %c0_76] : memref<2x32x64xf32, #tpu.memory_space<vmem>>, vector<1x32x64xf32>
    %254 = vector.shape_cast %253 : vector<1x32x64xf32> to vector<32x64xf32>
    %255 = vector.shape_cast %252 : vector<32x64xf32> to vector<1x32x64xf32>
    tpu.vector_store %arg8[%c1_74, %c0_75, %c0_76], %255 {strides = array<i32>} : memref<2x32x64xf32, #tpu.memory_space<vmem>>, vector<1x32x64xf32>,
    return
  }
  func.func @transform_0(%arg0: i32) -> (i32, i32, i32) {
    %c0_i32 = arith.constant 0 : i32
    %c0_i32_0 = arith.constant 0 : i32
    %c0_i32_1 = arith.constant 0 : i32
    return %arg0, %c0_i32, %c0_i32_0 : i32, i32, i32
  }
  func.func @transform_1(%arg0: i32) -> (i32, i32) {
    %c0_i32 = arith.constant 0 : i32
    %c0_i32_0 = arith.constant 0 : i32
    %c0_i32_1 = arith.constant 0 : i32
    return %c0_i32, %c0_i32_0 : i32, i32
  }
  func.func @transform_2(%arg0: i32) -> (i32, i32) {
    %c0_i32 = arith.constant 0 : i32
    %c0_i32_0 = arith.constant 0 : i32
    %c0_i32_1 = arith.constant 0 : i32
    return %c0_i32, %c0_i32_0 : i32, i32
  }
  func.func @transform_3(%arg0: i32) -> (i32, i32) {
    %c0_i32 = arith.constant 0 : i32
    %c0_i32_0 = arith.constant 0 : i32
    %c0_i32_1 = arith.constant 0 : i32
    return %c0_i32, %c0_i32_0 : i32, i32
  }
  func.func @transform_4(%arg0: i32) -> (i32, i32) {
    %c0_i32 = arith.constant 0 : i32
    %c0_i32_0 = arith.constant 0 : i32
    %c0_i32_1 = arith.constant 0 : i32
    return %c0_i32, %c0_i32_0 : i32, i32
  }
  func.func @transform_5(%arg0: i32) -> (i32, i32) {
    %c0_i32 = arith.constant 0 : i32
    %c0_i32_0 = arith.constant 0 : i32
    %c0_i32_1 = arith.constant 0 : i32
    return %c0_i32, %c0_i32_0 : i32, i32
  }
  func.func @transform_6(%arg0: i32) -> (i32, i32) {
    %c0_i32 = arith.constant 0 : i32
    %c0_i32_0 = arith.constant 0 : i32
    %c0_i32_1 = arith.constant 0 : i32
    return %c0_i32, %c0_i32_0 : i32, i32
  }
  func.func @transform_7(%arg0: i32) -> (i32, i32, i32) {
    %c0_i32 = arith.constant 0 : i32
    %c0_i32_0 = arith.constant 0 : i32
    %c0_i32_1 = arith.constant 0 : i32
    return %arg0, %c0_i32, %c0_i32_0 : i32, i32, i32
  }
}

</mosaic_0001>

<llo_original>
// kernel: self_attention_forward.1
$region0: #{self_attention_forward.1}
  #allocation0 [shape = 'u32[]', space=smem, size = 0x4, offset = 0x4, fixed_abs, tag = 'smem constant byte address 0x4 - core index']
  #allocation1 [shape = 'u32[72,128]{1,0:T(1,128)}', space=vmem, size = 0x9000, scoped, tag = 'internal scratch']
  %s0 = inlined_call_operand.vmem [shape: f32[2,32,64], index: 0, kind: input, shape index: {}]
  %s1 = inlined_call_operand.vmem [shape: f32[7,32], index: 1, kind: input, shape index: {}]
  %s2 = inlined_call_operand.vmem [shape: f32[1,96], index: 2, kind: input, shape index: {}]
  %s3 = inlined_call_operand.vmem [shape: bf16[32,96], index: 3, kind: input, shape index: {}]
  %s4 = inlined_call_operand.vmem [shape: bf16[32,32], index: 4, kind: input, shape index: {}]
  %s5 = inlined_call_operand.vmem [shape: bf16[32,32], index: 5, kind: input, shape index: {}]
  %s6 = inlined_call_operand.vmem [shape: bf16[32,32], index: 6, kind: input, shape index: {}]
  %s7 = inlined_call_operand.vmem [shape: f32[2,32,64], index: 7, kind: output, shape index: {}]
  %s8 = sld [smem:[#allocation0]]
  $region38: #{self_attention_forward.1} parent=0
    _
  %s10 = ssub.s32 1, %s8
  %s11 = scalar_select 0, %s10, %s8
  // Predicated region
  $region2: #{self_attention_forward.1} parent=0 // pred_check
    _
  $region3: #{self_attention_forward.1} parent=0 // pred_check_branch
    %13 = sbr.rel (0) target = $region5
  $region4: #{self_attention_forward.1} parent=0 // pred_region
    _
  $region5: #{self_attention_forward.1} parent=0 // pred_fallthru
    _
  // Predicated region
  $region6: #{self_attention_forward.1} parent=0 // pred_check
    _
  $region7: #{self_attention_forward.1} parent=0 // pred_check_branch
    %15 = sbr.rel (0) target = $region9
  $region8: #{self_attention_forward.1} parent=0 // pred_region
    _
  $region9: #{self_attention_forward.1} parent=0 // pred_fallthru
    _
  // Predicated region
  $region10: #{self_attention_forward.1} parent=0 // pred_check
    _
  $region11: #{self_attention_forward.1} parent=0 // pred_check_branch
    %17 = sbr.rel (0) target = $region13
  $region12: #{self_attention_forward.1} parent=0 // pred_region
    _
  $region13: #{self_attention_forward.1} parent=0 // pred_fallthru
    _
  // Predicated region
  $region14: #{self_attention_forward.1} parent=0 // pred_check
    _
  $region15: #{self_attention_forward.1} parent=0 // pred_check_branch
    %19 = sbr.rel (0) target = $region17
  $region16: #{self_attention_forward.1} parent=0 // pred_region
    _
  $region17: #{self_attention_forward.1} parent=0 // pred_fallthru
    _
  // Predicated region
  $region18: #{self_attention_forward.1} parent=0 // pred_check
    _
  $region19: #{self_attention_forward.1} parent=0 // pred_check_branch
    %21 = sbr.rel (0) target = $region21
  $region20: #{self_attention_forward.1} parent=0 // pred_region
    _
  $region21: #{self_attention_forward.1} parent=0 // pred_fallthru
    _
  // Predicated region
  $region22: #{self_attention_forward.1} parent=0 // pred_check
    _
  $region23: #{self_attention_forward.1} parent=0 // pred_check_branch
    %23 = sbr.rel (0) target = $region25
  $region24: #{self_attention_forward.1} parent=0 // pred_region
    _
  $region25: #{self_attention_forward.1} parent=0 // pred_fallthru
    _
  // Predicated region
  $region26: #{self_attention_forward.1} parent=0 // pred_check
    _
  $region27: #{self_attention_forward.1} parent=0 // pred_check_branch
    %25 = sbr.rel (0) target = $region29
  $region28: #{self_attention_forward.1} parent=0 // pred_region
    _
  $region29: #{self_attention_forward.1} parent=0 // pred_fallthru
    _
  %v27 = vld [vmem:[%s1] sm:$0x7f]
  %v28 = vld [vmem:[%s0] sm:$0xff]
  %v29 = vld [vmem:[%s0 + $0x8] sm:$0xff]
  %v30 = vld [vmem:[%s0 + $0x10] sm:$0xff]
  %v31 = vld [vmem:[%s0 + $0x18] sm:$0xff]
  %32 = vxpose.xlu0.b32.start [1/16] %v28, 128
  %33 = vxpose.xlu0.b32.cont [2/16] %v29, 128
  %34 = vxpose.xlu0.b32.cont [3/16] %v30, 128
  %35 = vxpose.xlu0.b32.cont [4/16] %v31, 128
  %36 = vxpose.xlu0.b32.cont [5/16] 0.0, 128
  %37 = vxpose.xlu0.b32.cont [6/16] 0.0, 128
  %38 = vxpose.xlu0.b32.cont [7/16] 0.0, 128
  %39 = vxpose.xlu0.b32.cont [8/16] 0.0, 128
  %40 = vxpose.xlu0.b32.cont [9/16] 0.0, 128
  %41 = vxpose.xlu0.b32.cont [10/16] 0.0, 128
  %42 = vxpose.xlu0.b32.cont [11/16] 0.0, 128
  %43 = vxpose.xlu0.b32.cont [12/16] 0.0, 128
  %44 = vxpose.xlu0.b32.cont [13/16] 0.0, 128
  %45 = vxpose.xlu0.b32.cont [14/16] 0.0, 128
  %46 = vxpose.xlu0.b32.cont [15/16] 0.0, 128
  %47 = vxpose.xlu0.b32.end [16/16] 0.0, 128
  %v48 = vpop.trf.xlu0
  %v49 = vpop.trf.xlu0
  %v50 = vpop.trf.xlu0
  %v51 = vpop.trf.xlu0
  %v52 = vpop.trf.xlu0
  %v53 = vpop.trf.xlu0
  %v54 = vpop.trf.xlu0
  %v55 = vpop.trf.xlu0
  %v56 = vpop.trf.xlu0
  %v57 = vpop.trf.xlu0
  %v58 = vpop.trf.xlu0
  %v59 = vpop.trf.xlu0
  %v60 = vpop.trf.xlu0
  %v61 = vpop.trf.xlu0
  %v62 = vpop.trf.xlu0
  %v63 = vpop.trf.xlu0
  %s64 = scalar_lea.vmem %s0, 32
  %v65 = vld [vmem:[%s64] sm:$0xff]
  %v66 = vld [vmem:[%s64 + $0x8] sm:$0xff]
  %v67 = vld [vmem:[%s64 + $0x10] sm:$0xff]
  %v68 = vld [vmem:[%s64 + $0x18] sm:$0xff]
  %69 = vxpose.xlu0.b32.start [1/16] %v65, 128
  %70 = vxpose.xlu0.b32.cont [2/16] %v66, 128
  %71 = vxpose.xlu0.b32.cont [3/16] %v67, 128
  %72 = vxpose.xlu0.b32.cont [4/16] %v68, 128
  %73 = vxpose.xlu0.b32.cont [5/16] 0.0, 128
  %74 = vxpose.xlu0.b32.cont [6/16] 0.0, 128
  %75 = vxpose.xlu0.b32.cont [7/16] 0.0, 128
  %76 = vxpose.xlu0.b32.cont [8/16] 0.0, 128
  %77 = vxpose.xlu0.b32.cont [9/16] 0.0, 128
  %78 = vxpose.xlu0.b32.cont [10/16] 0.0, 128
  %79 = vxpose.xlu0.b32.cont [11/16] 0.0, 128
  %80 = vxpose.xlu0.b32.cont [12/16] 0.0, 128
  %81 = vxpose.xlu0.b32.cont [13/16] 0.0, 128
  %82 = vxpose.xlu0.b32.cont [14/16] 0.0, 128
  %83 = vxpose.xlu0.b32.cont [15/16] 0.0, 128
  %84 = vxpose.xlu0.b32.end [16/16] 0.0, 128
  %v85 = vpop.trf.xlu0
  %v86 = vpop.trf.xlu0
  %v87 = vpop.trf.xlu0
  %v88 = vpop.trf.xlu0
  %v89 = vpop.trf.xlu0
  %v90 = vpop.trf.xlu0
  %v91 = vpop.trf.xlu0
  %v92 = vpop.trf.xlu0
  %v93 = vpop.trf.xlu0
  %v94 = vpop.trf.xlu0
  %v95 = vpop.trf.xlu0
  %v96 = vpop.trf.xlu0
  %v97 = vpop.trf.xlu0
  %v98 = vpop.trf.xlu0
  %v99 = vpop.trf.xlu0
  %v100 = vpop.trf.xlu0
  %vm101 = vcmask 261120
  %v102 = vsel %vm101, %v48, 0.0
  %103 = vadd.xlane.f32.xlu0 %v102
  %v104 = vpop.xlane.xlu0 %103
  %v105 = vsel %vm101, %v49, 0.0
  %106 = vadd.xlane.f32.xlu0 %v105
  %v107 = vpop.xlane.xlu0 %106
  %v108 = vsel %vm101, %v50, 0.0
  %109 = vadd.xlane.f32.xlu0 %v108
  %v110 = vpop.xlane.xlu0 %109
  %v111 = vsel %vm101, %v51, 0.0
  %112 = vadd.xlane.f32.xlu0 %v111
  %v113 = vpop.xlane.xlu0 %112
  %v114 = vsel %vm101, %v52, 0.0
  %115 = vadd.xlane.f32.xlu0 %v114
  %v116 = vpop.xlane.xlu0 %115
  %v117 = vsel %vm101, %v53, 0.0
  %118 = vadd.xlane.f32.xlu0 %v117
  %v119 = vpop.xlane.xlu0 %118
  %v120 = vsel %vm101, %v54, 0.0
  %121 = vadd.xlane.f32.xlu0 %v120
  %v122 = vpop.xlane.xlu0 %121
  %v123 = vsel %vm101, %v55, 0.0
  %124 = vadd.xlane.f32.xlu0 %v123
  %v125 = vpop.xlane.xlu0 %124
  %v126 = vsel %vm101, %v85, 0.0
  %127 = vadd.xlane.f32.xlu0 %v126
  %v128 = vpop.xlane.xlu0 %127
  %v129 = vsel %vm101, %v86, 0.0
  %130 = vadd.xlane.f32.xlu0 %v129
  %v131 = vpop.xlane.xlu0 %130
  %v132 = vsel %vm101, %v87, 0.0
  %133 = vadd.xlane.f32.xlu0 %v132
  %v134 = vpop.xlane.xlu0 %133
  %v135 = vsel %vm101, %v88, 0.0
  %136 = vadd.xlane.f32.xlu0 %v135
  %v137 = vpop.xlane.xlu0 %136
  %v138 = vsel %vm101, %v89, 0.0
  %139 = vadd.xlane.f32.xlu0 %v138
  %v140 = vpop.xlane.xlu0 %139
  %v141 = vsel %vm101, %v90, 0.0
  %142 = vadd.xlane.f32.xlu0 %v141
  %v143 = vpop.xlane.xlu0 %142
  %v144 = vsel %vm101, %v91, 0.0
  %145 = vadd.xlane.f32.xlu0 %v144
  %v146 = vpop.xlane.xlu0 %145
  %v147 = vsel %vm101, %v92, 0.0
  %148 = vadd.xlane.f32.xlu0 %v147
  %v149 = vpop.xlane.xlu0 %148
  %v150 = vrcp.pop 32.0
  %v151 = vmul.f32 32.0, %v150
  %v152 = vsub.f32 1.0, %v151
  %v153 = vmul.f32 %v150, %v152
  %v154 = vadd.f32 %v150, %v153
  %vm155 = vweird.f32 %v150
  %v156 = vsel %vm155, %v150, %v154
  %v157 = vmul.f32 %v104, %v156
  %v158 = vmul.f32 %v107, %v156
  %v159 = vmul.f32 %v110, %v156
  %v160 = vmul.f32 %v113, %v156
  %v161 = vmul.f32 %v116, %v156
  %v162 = vmul.f32 %v119, %v156
  %v163 = vmul.f32 %v122, %v156
  %v164 = vmul.f32 %v125, %v156
  %v165 = vmul.f32 %v128, %v156
  %v166 = vmul.f32 %v131, %v156
  %v167 = vmul.f32 %v134, %v156
  %v168 = vmul.f32 %v137, %v156
  %v169 = vmul.f32 %v140, %v156
  %v170 = vmul.f32 %v143, %v156
  %v171 = vmul.f32 %v146, %v156
  %v172 = vmul.f32 %v149, %v156
  %v173 = vmul.f32 %v48, %v48
  %v174 = vmul.f32 %v49, %v49
  %v175 = vmul.f32 %v50, %v50
  %v176 = vmul.f32 %v51, %v51
  %v177 = vmul.f32 %v52, %v52
  %v178 = vmul.f32 %v53, %v53
  %v179 = vmul.f32 %v54, %v54
  %v180 = vmul.f32 %v55, %v55
  %v181 = vmul.f32 %v85, %v85
  %v182 = vmul.f32 %v86, %v86
  %v183 = vmul.f32 %v87, %v87
  %v184 = vmul.f32 %v88, %v88
  %v185 = vmul.f32 %v89, %v89
  %v186 = vmul.f32 %v90, %v90
  %v187 = vmul.f32 %v91, %v91
  %v188 = vmul.f32 %v92, %v92
  %v189 = vsel %vm101, %v173, 0.0
  %190 = vadd.xlane.f32.xlu0 %v189
  %v191 = vpop.xlane.xlu0 %190
  %v192 = vsel %vm101, %v174, 0.0
  %193 = vadd.xlane.f32.xlu0 %v192
  %v194 = vpop.xlane.xlu0 %193
  %v195 = vsel %vm101, %v175, 0.0
  %196 = vadd.xlane.f32.xlu0 %v195
  %v197 = vpop.xlane.xlu0 %196
  %v198 = vsel %vm101, %v176, 0.0
  %199 = vadd.xlane.f32.xlu0 %v198
  %v200 = vpop.xlane.xlu0 %199
  %v201 = vsel %vm101, %v177, 0.0
  %202 = vadd.xlane.f32.xlu0 %v201
  %v203 = vpop.xlane.xlu0 %202
  %v204 = vsel %vm101, %v178, 0.0
  %205 = vadd.xlane.f32.xlu0 %v204
  %v206 = vpop.xlane.xlu0 %205
  %v207 = vsel %vm101, %v179, 0.0
  %208 = vadd.xlane.f32.xlu0 %v207
  %v209 = vpop.xlane.xlu0 %208
  %v210 = vsel %vm101, %v180, 0.0
  %211 = vadd.xlane.f32.xlu0 %v210
  %v212 = vpop.xlane.xlu0 %211
  %v213 = vsel %vm101, %v181, 0.0
  %214 = vadd.xlane.f32.xlu0 %v213
  %v215 = vpop.xlane.xlu0 %214
  %v216 = vsel %vm101, %v182, 0.0
  %217 = vadd.xlane.f32.xlu0 %v216
  %v218 = vpop.xlane.xlu0 %217
  %v219 = vsel %vm101, %v183, 0.0
  %220 = vadd.xlane.f32.xlu0 %v219
  %v221 = vpop.xlane.xlu0 %220
  %v222 = vsel %vm101, %v184, 0.0
  %223 = vadd.xlane.f32.xlu0 %v222
  %v224 = vpop.xlane.xlu0 %223
  %v225 = vsel %vm101, %v185, 0.0
  %226 = vadd.xlane.f32.xlu0 %v225
  %v227 = vpop.xlane.xlu0 %226
  %v228 = vsel %vm101, %v186, 0.0
  %229 = vadd.xlane.f32.xlu0 %v228
  %v230 = vpop.xlane.xlu0 %229
  %v231 = vsel %vm101, %v187, 0.0
  %232 = vadd.xlane.f32.xlu0 %v231
  %v233 = vpop.xlane.xlu0 %232
  %v234 = vsel %vm101, %v188, 0.0
  %235 = vadd.xlane.f32.xlu0 %v234
  %v236 = vpop.xlane.xlu0 %235
  %v237 = vmul.f32 %v191, %v156
  %v238 = vmul.f32 %v194, %v156
  %v239 = vmul.f32 %v197, %v156
  %v240 = vmul.f32 %v200, %v156
  %v241 = vmul.f32 %v203, %v156
  %v242 = vmul.f32 %v206, %v156
  %v243 = vmul.f32 %v209, %v156
  %v244 = vmul.f32 %v212, %v156
  %v245 = vmul.f32 %v215, %v156
  %v246 = vmul.f32 %v218, %v156
  %v247 = vmul.f32 %v221, %v156
  %v248 = vmul.f32 %v224, %v156
  %v249 = vmul.f32 %v227, %v156
  %v250 = vmul.f32 %v230, %v156
  %v251 = vmul.f32 %v233, %v156
  %v252 = vmul.f32 %v236, %v156
  %v253 = vmul.f32 %v157, %v157
  %v254 = vmul.f32 %v158, %v158
  %v255 = vmul.f32 %v159, %v159
  %v256 = vmul.f32 %v160, %v160
  %v257 = vmul.f32 %v161, %v161
  %v258 = vmul.f32 %v162, %v162
  %v259 = vmul.f32 %v163, %v163
  %v260 = vmul.f32 %v164, %v164
  %v261 = vmul.f32 %v165, %v165
  %v262 = vmul.f32 %v166, %v166
  %v263 = vmul.f32 %v167, %v167
  %v264 = vmul.f32 %v168, %v168
  %v265 = vmul.f32 %v169, %v169
  %v266 = vmul.f32 %v170, %v170
  %v267 = vmul.f32 %v171, %v171
  %v268 = vmul.f32 %v172, %v172
  %v269 = vsub.f32 %v237, %v253
  %v270 = vsub.f32 %v238, %v254
  %v271 = vsub.f32 %v239, %v255
  %v272 = vsub.f32 %v240, %v256
  %v273 = vsub.f32 %v241, %v257
  %v274 = vsub.f32 %v242, %v258
  %v275 = vsub.f32 %v243, %v259
  %v276 = vsub.f32 %v244, %v260
  %v277 = vsub.f32 %v245, %v261
  %v278 = vsub.f32 %v246, %v262
  %v279 = vsub.f32 %v247, %v263
  %v280 = vsub.f32 %v248, %v264
  %v281 = vsub.f32 %v249, %v265
  %v282 = vsub.f32 %v250, %v266
  %v283 = vsub.f32 %v251, %v267
  %v284 = vsub.f32 %v252, %v268
  %v285 = vsub.f32 %v48, %v157
  %v286 = vsub.f32 %v49, %v158
  %v287 = vsub.f32 %v50, %v159
  %v288 = vsub.f32 %v51, %v160
  %v289 = vsub.f32 %v52, %v161
  %v290 = vsub.f32 %v53, %v162
  %v291 = vsub.f32 %v54, %v163
  %v292 = vsub.f32 %v55, %v164
  %v293 = vsub.f32 %v85, %v165
  %v294 = vsub.f32 %v86, %v166
  %v295 = vsub.f32 %v87, %v167
  %v296 = vsub.f32 %v88, %v168
  %v297 = vsub.f32 %v89, %v169
  %v298 = vsub.f32 %v90, %v170
  %v299 = vsub.f32 %v91, %v171
  %v300 = vsub.f32 %v92, %v172
  %v301 = vadd.f32 %v269, 1e-05
  %v302 = vadd.f32 %v270, 1e-05
  %v303 = vadd.f32 %v271, 1e-05
  %v304 = vadd.f32 %v272, 1e-05
  %v305 = vadd.f32 %v273, 1e-05
  %v306 = vadd.f32 %v274, 1e-05
  %v307 = vadd.f32 %v275, 1e-05
  %v308 = vadd.f32 %v276, 1e-05
  %v309 = vadd.f32 %v277, 1e-05
  %v310 = vadd.f32 %v278, 1e-05
  %v311 = vadd.f32 %v279, 1e-05
  %v312 = vadd.f32 %v280, 1e-05
  %v313 = vadd.f32 %v281, 1e-05
  %v314 = vadd.f32 %v282, 1e-05
  %v315 = vadd.f32 %v283, 1e-05
  %v316 = vadd.f32 %v284, 1e-05
  %v317 = vrsqrt.pop %v301
  %v318 = vmul.f32 %v317, %v301
  %v319 = vmul.f32 %v318, %v317
  %v320 = vmul.f32 0.5, %v319
  %v321 = vsub.f32 1.5, %v320
  %v322 = vmul.f32 %v317, %v321
  %vm323 = vweird.f32 %v301
  %vm324 = vweird.f32 %v317
  %vm325 = vmor %vm323, %vm324
  %v326 = vsel %vm325, %v317, %v322
  %v327 = vrsqrt.pop %v302
  %v328 = vmul.f32 %v327, %v302
  %v329 = vmul.f32 %v328, %v327
  %v330 = vmul.f32 0.5, %v329
  %v331 = vsub.f32 1.5, %v330
  %v332 = vmul.f32 %v327, %v331
  %vm333 = vweird.f32 %v302
  %vm334 = vweird.f32 %v327
  %vm335 = vmor %vm333, %vm334
  %v336 = vsel %vm335, %v327, %v332
  %v337 = vrsqrt.pop %v303
  %v338 = vmul.f32 %v337, %v303
  %v339 = vmul.f32 %v338, %v337
  %v340 = vmul.f32 0.5, %v339
  %v341 = vsub.f32 1.5, %v340
  %v342 = vmul.f32 %v337, %v341
  %vm343 = vweird.f32 %v303
  %vm344 = vweird.f32 %v337
  %vm345 = vmor %vm343, %vm344
  %v346 = vsel %vm345, %v337, %v342
  %v347 = vrsqrt.pop %v304
  %v348 = vmul.f32 %v347, %v304
  %v349 = vmul.f32 %v348, %v347
  %v350 = vmul.f32 0.5, %v349
  %v351 = vsub.f32 1.5, %v350
  %v352 = vmul.f32 %v347, %v351
  %vm353 = vweird.f32 %v304
  %vm354 = vweird.f32 %v347
  %vm355 = vmor %vm353, %vm354
  %v356 = vsel %vm355, %v347, %v352
  %v357 = vrsqrt.pop %v305
  %v358 = vmul.f32 %v357, %v305
  %v359 = vmul.f32 %v358, %v357
  %v360 = vmul.f32 0.5, %v359
  %v361 = vsub.f32 1.5, %v360
  %v362 = vmul.f32 %v357, %v361
  %vm363 = vweird.f32 %v305
  %vm364 = vweird.f32 %v357
  %vm365 = vmor %vm363, %vm364
  %v366 = vsel %vm365, %v357, %v362
  %v367 = vrsqrt.pop %v306
  %v368 = vmul.f32 %v367, %v306
  %v369 = vmul.f32 %v368, %v367
  %v370 = vmul.f32 0.5, %v369
  %v371 = vsub.f32 1.5, %v370
  %v372 = vmul.f32 %v367, %v371
  %vm373 = vweird.f32 %v306
  %vm374 = vweird.f32 %v367
  %vm375 = vmor %vm373, %vm374
  %v376 = vsel %vm375, %v367, %v372
  %v377 = vrsqrt.pop %v307
  %v378 = vmul.f32 %v377, %v307
  %v379 = vmul.f32 %v378, %v377
  %v380 = vmul.f32 0.5, %v379
  %v381 = vsub.f32 1.5, %v380
  %v382 = vmul.f32 %v377, %v381
  %vm383 = vweird.f32 %v307
  %vm384 = vweird.f32 %v377
  %vm385 = vmor %vm383, %vm384
  %v386 = vsel %vm385, %v377, %v382
  %v387 = vrsqrt.pop %v308
  %v388 = vmul.f32 %v387, %v308
  %v389 = vmul.f32 %v388, %v387
  %v390 = vmul.f32 0.5, %v389
  %v391 = vsub.f32 1.5, %v390
  %v392 = vmul.f32 %v387, %v391
  %vm393 = vweird.f32 %v308
  %vm394 = vweird.f32 %v387
  %vm395 = vmor %vm393, %vm394
  %v396 = vsel %vm395, %v387, %v392
  %v397 = vrsqrt.pop %v309
  %v398 = vmul.f32 %v397, %v309
  %v399 = vmul.f32 %v398, %v397
  %v400 = vmul.f32 0.5, %v399
  %v401 = vsub.f32 1.5, %v400
  %v402 = vmul.f32 %v397, %v401
  %vm403 = vweird.f32 %v309
  %vm404 = vweird.f32 %v397
  %vm405 = vmor %vm403, %vm404
  %v406 = vsel %vm405, %v397, %v402
  %v407 = vrsqrt.pop %v310
  %v408 = vmul.f32 %v407, %v310
  %v409 = vmul.f32 %v408, %v407
  %v410 = vmul.f32 0.5, %v409
  %v411 = vsub.f32 1.5, %v410
  %v412 = vmul.f32 %v407, %v411
  %vm413 = vweird.f32 %v310
  %vm414 = vweird.f32 %v407
  %vm415 = vmor %vm413, %vm414
  %v416 = vsel %vm415, %v407, %v412
  %v417 = vrsqrt.pop %v311
  %v418 = vmul.f32 %v417, %v311
  %v419 = vmul.f32 %v418, %v417
  %v420 = vmul.f32 0.5, %v419
  %v421 = vsub.f32 1.5, %v420
  %v422 = vmul.f32 %v417, %v421
  %vm423 = vweird.f32 %v311
  %vm424 = vweird.f32 %v417
  %vm425 = vmor %vm423, %vm424
  %v426 = vsel %vm425, %v417, %v422
  %v427 = vrsqrt.pop %v312
  %v428 = vmul.f32 %v427, %v312
  %v429 = vmul.f32 %v428, %v427
  %v430 = vmul.f32 0.5, %v429
  %v431 = vsub.f32 1.5, %v430
  %v432 = vmul.f32 %v427, %v431
  %vm433 = vweird.f32 %v312
  %vm434 = vweird.f32 %v427
  %vm435 = vmor %vm433, %vm434
  %v436 = vsel %vm435, %v427, %v432
  %v437 = vrsqrt.pop %v313
  %v438 = vmul.f32 %v437, %v313
  %v439 = vmul.f32 %v438, %v437
  %v440 = vmul.f32 0.5, %v439
  %v441 = vsub.f32 1.5, %v440
  %v442 = vmul.f32 %v437, %v441
  %vm443 = vweird.f32 %v313
  %vm444 = vweird.f32 %v437
  %vm445 = vmor %vm443, %vm444
  %v446 = vsel %vm445, %v437, %v442
  %v447 = vrsqrt.pop %v314
  %v448 = vmul.f32 %v447, %v314
  %v449 = vmul.f32 %v448, %v447
  %v450 = vmul.f32 0.5, %v449
  %v451 = vsub.f32 1.5, %v450
  %v452 = vmul.f32 %v447, %v451
  %vm453 = vweird.f32 %v314
  %vm454 = vweird.f32 %v447
  %vm455 = vmor %vm453, %vm454
  %v456 = vsel %vm455, %v447, %v452
  %v457 = vrsqrt.pop %v315
  %v458 = vmul.f32 %v457, %v315
  %v459 = vmul.f32 %v458, %v457
  %v460 = vmul.f32 0.5, %v459
  %v461 = vsub.f32 1.5, %v460
  %v462 = vmul.f32 %v457, %v461
  %vm463 = vweird.f32 %v315
  %vm464 = vweird.f32 %v457
  %vm465 = vmor %vm463, %vm464
  %v466 = vsel %vm465, %v457, %v462
  %v467 = vrsqrt.pop %v316
  %v468 = vmul.f32 %v467, %v316
  %v469 = vmul.f32 %v468, %v467
  %v470 = vmul.f32 0.5, %v469
  %v471 = vsub.f32 1.5, %v470
  %v472 = vmul.f32 %v467, %v471
  %vm473 = vweird.f32 %v316
  %vm474 = vweird.f32 %v467
  %vm475 = vmor %vm473, %vm474
  %v476 = vsel %vm475, %v467, %v472
  %v477 = vmul.f32 %v285, %v326
  %v478 = vmul.f32 %v286, %v336
  %v479 = vmul.f32 %v287, %v346
  %v480 = vmul.f32 %v288, %v356
  %v481 = vmul.f32 %v289, %v366
  %v482 = vmul.f32 %v290, %v376
  %v483 = vmul.f32 %v291, %v386
  %v484 = vmul.f32 %v292, %v396
  %v485 = vmul.f32 %v293, %v406
  %v486 = vmul.f32 %v294, %v416
  %v487 = vmul.f32 %v295, %v426
  %v488 = vmul.f32 %v296, %v436
  %v489 = vmul.f32 %v297, %v446
  %v490 = vmul.f32 %v298, %v456
  %v491 = vmul.f32 %v299, %v466
  %v492 = vmul.f32 %v300, %v476
  %v493 = vperm.slane %v27, 0
  %v494 = vmul.f32 %v477, %v493
  %v495 = vmul.f32 %v478, %v493
  %v496 = vmul.f32 %v479, %v493
  %v497 = vmul.f32 %v480, %v493
  %v498 = vmul.f32 %v481, %v493
  %v499 = vmul.f32 %v482, %v493
  %v500 = vmul.f32 %v483, %v493
  %v501 = vmul.f32 %v484, %v493
  %v502 = vmul.f32 %v485, %v493
  %v503 = vmul.f32 %v486, %v493
  %v504 = vmul.f32 %v487, %v493
  %v505 = vmul.f32 %v488, %v493
  %v506 = vmul.f32 %v489, %v493
  %v507 = vmul.f32 %v490, %v493
  %v508 = vmul.f32 %v491, %v493
  %v509 = vmul.f32 %v492, %v493
  %v510 = vperm.slane %v27, 1
  %v511 = vadd.f32 %v494, %v510
  %v512 = vadd.f32 %v495, %v510
  %v513 = vadd.f32 %v496, %v510
  %v514 = vadd.f32 %v497, %v510
  %v515 = vadd.f32 %v498, %v510
  %v516 = vadd.f32 %v499, %v510
  %v517 = vadd.f32 %v500, %v510
  %v518 = vadd.f32 %v501, %v510
  %v519 = vadd.f32 %v502, %v510
  %v520 = vadd.f32 %v503, %v510
  %v521 = vadd.f32 %v504, %v510
  %v522 = vadd.f32 %v505, %v510
  %v523 = vadd.f32 %v506, %v510
  %v524 = vadd.f32 %v507, %v510
  %v525 = vadd.f32 %v508, %v510
  %v526 = vadd.f32 %v509, %v510
  %v527 = vpack.c.bf16 %v512, %v511
  %v528 = vpack.c.bf16 %v514, %v513
  %v529 = vpack.c.bf16 %v516, %v515
  %v530 = vpack.c.bf16 %v518, %v517
  %v531 = vpack.c.bf16 %v520, %v519
  %v532 = vpack.c.bf16 %v522, %v521
  %v533 = vpack.c.bf16 %v524, %v523
  %v534 = vpack.c.bf16 %v526, %v525
  %v535 = vld [vmem:[%s3] sm:$0xf]
  %v536 = vld [vmem:[%s3 + $0x4] sm:$0xf]
  %v537 = vld [vmem:[%s3 + $0x8] sm:$0xf]
  %v538 = vld [vmem:[%s3 + $0xc] sm:$0xf]
  %v539 = vld [vmem:[%s2] sm:$0x1]
  %v541 = vperm.slane %v539, 0
  %v547 = vunpack.c.l.b16 %v535
  %v548 = vunpack.c.l.b16 %v536
  %v549 = vunpack.c.l.b16 %v537
  %v550 = vunpack.c.l.b16 %v538
  %v551 = vpack.c.b16 %v548, %v547
  %v552 = vpack.c.b16 %v550, %v549
  %v556 = vsel %vm101, %v527, 0
  %v559 = vsel %vm101, %v528, 0
  %v562 = vsel %vm101, %v529, 0
  %v565 = vsel %vm101, %v530, 0
  %v568 = vsel %vm101, %v531, 0
  %v571 = vsel %vm101, %v532, 0
  %v574 = vsel %vm101, %v533, 0
  %v577 = vsel %vm101, %v534, 0
  %579 = vmatpush.bf16.msra.mxu0 0
  %580 = vmatpush.bf16.msra.mxu0 0
  %581 = vmatpush.bf16.msra.mxu0 0
  %582 = vmatpush.bf16.msra.mxu0 0
  %583 = vmatpush.bf16.msra.mxu0 0
  %584 = vmatpush.bf16.msra.mxu0 0
  %585 = vmatpush.bf16.msra.mxu0 %v552
  %586 = vmatpush.bf16.msra.mxu0 %v551
  %587 = vmatmul.bf16.gmra.mxu0 %v556
  %v588 = vpop.f32.mrf.mxu0
  %v589 = vadd.f32 %v541, %v588
  %v590 = vpop.f32.mrf.mxu0
  %v591 = vadd.f32 %v541, %v590
  %592 = vmatmul.bf16.gmra.mxu0 %v559
  %v593 = vpop.f32.mrf.mxu0
  %v594 = vadd.f32 %v541, %v593
  %v595 = vpop.f32.mrf.mxu0
  %v596 = vadd.f32 %v541, %v595
  %597 = vmatmul.bf16.gmra.mxu0 %v562
  %v598 = vpop.f32.mrf.mxu0
  %v599 = vadd.f32 %v541, %v598
  %v600 = vpop.f32.mrf.mxu0
  %v601 = vadd.f32 %v541, %v600
  %602 = vmatmul.bf16.gmra.mxu0 %v565
  %v603 = vpop.f32.mrf.mxu0
  %v604 = vadd.f32 %v541, %v603
  %v605 = vpop.f32.mrf.mxu0
  %v606 = vadd.f32 %v541, %v605
  %607 = vmatmul.bf16.gmra.mxu0 %v568
  %v608 = vpop.f32.mrf.mxu0
  %v609 = vadd.f32 %v541, %v608
  %v610 = vpop.f32.mrf.mxu0
  %v611 = vadd.f32 %v541, %v610
  %612 = vmatmul.bf16.gmra.mxu0 %v571
  %v613 = vpop.f32.mrf.mxu0
  %v614 = vadd.f32 %v541, %v613
  %v615 = vpop.f32.mrf.mxu0
  %v616 = vadd.f32 %v541, %v615
  %617 = vmatmul.bf16.gmra.mxu0 %v574
  %v618 = vpop.f32.mrf.mxu0
  %v619 = vadd.f32 %v541, %v618
  %v620 = vpop.f32.mrf.mxu0
  %v621 = vadd.f32 %v541, %v620
  %622 = vmatmul.bf16.gmra.mxu0 %v577
  %v623 = vpop.f32.mrf.mxu0
  %v624 = vadd.f32 %v541, %v623
  %v625 = vpop.f32.mrf.mxu0
  %v626 = vadd.f32 %v541, %v625
  %627 = vdwg.mxu0
  %v628 = vpack.c.bf16 %v589, %v589
  %v629 = vpack.c.bf16 %v591, %v591
  %v630 = vpack.c.bf16 %v594, %v594
  %v631 = vpack.c.bf16 %v596, %v596
  %v632 = vpack.c.bf16 %v599, %v599
  %v633 = vpack.c.bf16 %v601, %v601
  %v634 = vpack.c.bf16 %v604, %v604
  %v635 = vpack.c.bf16 %v606, %v606
  %v636 = vpack.c.bf16 %v609, %v609
  %v637 = vpack.c.bf16 %v611, %v611
  %v638 = vpack.c.bf16 %v614, %v614
  %v639 = vpack.c.bf16 %v616, %v616
  %v640 = vpack.c.bf16 %v619, %v619
  %v641 = vpack.c.bf16 %v621, %v621
  %v642 = vpack.c.bf16 %v624, %v624
  %v643 = vpack.c.bf16 %v626, %v626
  %v644 = vld [vmem:[%s4] sm:$0xf]
  %v645 = vld [vmem:[%s4 + $0x4] sm:$0xf]
  %v646 = vld [vmem:[%s4 + $0x8] sm:$0xf]
  %v647 = vld [vmem:[%s4 + $0xc] sm:$0xf]
  %v656 = vunpack.c.l.b16 %v628
  %v657 = vunpack.c.l.b16 %v629
  %v658 = vunpack.c.l.b16 %v630
  %v659 = vunpack.c.l.b16 %v631
  %v660 = vunpack.c.l.b16 %v632
  %v661 = vunpack.c.l.b16 %v633
  %v662 = vunpack.c.l.b16 %v634
  %v663 = vunpack.c.l.b16 %v635
  %v664 = vpack.c.b16 %v657, %v656
  %v665 = vpack.c.b16 %v659, %v658
  %v666 = vpack.c.b16 %v661, %v660
  %v667 = vpack.c.b16 %v663, %v662
  %668 = vrot.lane.b32.xlu0 %v664, 96
  %v669 = vpop.permute.xlu0 %668
  %670 = vrot.lane.b32.xlu0 %v665, 96
  %v671 = vpop.permute.xlu0 %670
  %672 = vrot.lane.b32.xlu0 %v666, 96
  %v673 = vpop.permute.xlu0 %672
  %674 = vrot.lane.b32.xlu0 %v667, 96
  %v675 = vpop.permute.xlu0 %674
  %vm676 = vcmask 64512
  %v678 = vsel %vm676, %v664, 0
  %v681 = vsel %vm676, %v665, 0
  %v684 = vsel %vm676, %v666, 0
  %v687 = vsel %vm676, %v667, 0
  %v690 = vsel %vm676, %v669, 0
  %v693 = vsel %vm676, %v671, 0
  %v696 = vsel %vm676, %v673, 0
  %v699 = vsel %vm676, %v675, 0
  %701 = vmatpush.bf16.xpose.msra.mxu0 0
  %702 = vmatpush.bf16.xpose.msra.mxu0 0
  %703 = vmatpush.bf16.xpose.msra.mxu0 0
  %704 = vmatpush.bf16.xpose.msra.mxu0 0
  %705 = vmatpush.bf16.xpose.msra.mxu0 %v699
  %706 = vmatpush.bf16.xpose.msra.mxu0 %v696
  %707 = vmatpush.bf16.xpose.msra.mxu0 %v693
  %708 = vmatpush.bf16.xpose.msra.mxu0 %v690
  %709 = vmatmul.bf16.gmra.mxu0 %v678
  %v710 = vpop.f32.mrf.mxu0
  %v711 = vadd.f32 0.0, %v710
  %v712 = vpop.f32.mrf.mxu0
  %v713 = vadd.f32 0.0, %v712
  %714 = vmatmul.bf16.gmra.mxu0 %v681
  %v715 = vpop.f32.mrf.mxu0
  %v716 = vadd.f32 0.0, %v715
  %v717 = vpop.f32.mrf.mxu0
  %v718 = vadd.f32 0.0, %v717
  %719 = vmatmul.bf16.gmra.mxu0 %v684
  %v720 = vpop.f32.mrf.mxu0
  %v721 = vadd.f32 0.0, %v720
  %v722 = vpop.f32.mrf.mxu0
  %v723 = vadd.f32 0.0, %v722
  %724 = vmatmul.bf16.gmra.mxu0 %v687
  %v725 = vpop.f32.mrf.mxu0
  %v726 = vadd.f32 0.0, %v725
  %v727 = vpop.f32.mrf.mxu0
  %v728 = vadd.f32 0.0, %v727
  %729 = vdwg.mxu0
  %vm730 = vcmask 523264
  %v731 = vsel %vm730, %v711, -inf
  %732 = vmax.xlane.f32.xlu0 %v731
  %v733 = vpop.xlane.xlu0 %732
  %v734 = vsel %vm730, %v713, -inf
  %735 = vmax.xlane.f32.xlu0 %v734
  %v736 = vpop.xlane.xlu0 %735
  %v737 = vsel %vm730, %v716, -inf
  %738 = vmax.xlane.f32.xlu0 %v737
  %v739 = vpop.xlane.xlu0 %738
  %v740 = vsel %vm730, %v718, -inf
  %741 = vmax.xlane.f32.xlu0 %v740
  %v742 = vpop.xlane.xlu0 %741
  %v743 = vsel %vm730, %v721, -inf
  %744 = vmax.xlane.f32.xlu0 %v743
  %v745 = vpop.xlane.xlu0 %744
  %v746 = vsel %vm730, %v723, -inf
  %747 = vmax.xlane.f32.xlu0 %v746
  %v748 = vpop.xlane.xlu0 %747
  %v749 = vsel %vm730, %v726, -inf
  %750 = vmax.xlane.f32.xlu0 %v749
  %v751 = vpop.xlane.xlu0 %750
  %v752 = vsel %vm730, %v728, -inf
  %753 = vmax.xlane.f32.xlu0 %v752
  %v754 = vpop.xlane.xlu0 %753
  %v755 = vsub.f32 %v711, %v733
  %v756 = vsub.f32 %v713, %v736
  %v757 = vsub.f32 %v716, %v739
  %v758 = vsub.f32 %v718, %v742
  %v759 = vsub.f32 %v721, %v745
  %v760 = vsub.f32 %v723, %v748
  %v761 = vsub.f32 %v726, %v751
  %v762 = vsub.f32 %v728, %v754
  %v763 = vmul.f32 %v755, 1.442695
  %v764 = vpow.pop %v763
  %v765 = vmul.f32 %v756, 1.442695
  %v766 = vpow.pop %v765
  %v767 = vmul.f32 %v757, 1.442695
  %v768 = vpow.pop %v767
  %v769 = vmul.f32 %v758, 1.442695
  %v770 = vpow.pop %v769
  %v771 = vmul.f32 %v759, 1.442695
  %v772 = vpow.pop %v771
  %v773 = vmul.f32 %v760, 1.442695
  %v774 = vpow.pop %v773
  %v775 = vmul.f32 %v761, 1.442695
  %v776 = vpow.pop %v775
  %v777 = vmul.f32 %v762, 1.442695
  %v778 = vpow.pop %v777
  %v779 = vsel %vm730, %v764, 0.0
  %780 = vadd.xlane.f32.xlu0 %v779
  %v781 = vpop.xlane.xlu0 %780
  %v782 = vsel %vm730, %v766, 0.0
  %783 = vadd.xlane.f32.xlu0 %v782
  %v784 = vpop.xlane.xlu0 %783
  %v785 = vsel %vm730, %v768, 0.0
  %786 = vadd.xlane.f32.xlu0 %v785
  %v787 = vpop.xlane.xlu0 %786
  %v788 = vsel %vm730, %v770, 0.0
  %789 = vadd.xlane.f32.xlu0 %v788
  %v790 = vpop.xlane.xlu0 %789
  %v791 = vsel %vm730, %v772, 0.0
  %792 = vadd.xlane.f32.xlu0 %v791
  %v793 = vpop.xlane.xlu0 %792
  %v794 = vsel %vm730, %v774, 0.0
  %795 = vadd.xlane.f32.xlu0 %v794
  %v796 = vpop.xlane.xlu0 %795
  %v797 = vsel %vm730, %v776, 0.0
  %798 = vadd.xlane.f32.xlu0 %v797
  %v799 = vpop.xlane.xlu0 %798
  %v800 = vsel %vm730, %v778, 0.0
  %801 = vadd.xlane.f32.xlu0 %v800
  %v802 = vpop.xlane.xlu0 %801
  %v803 = vrcp.pop %v781
  %v804 = vrcp.pop %v784
  %v805 = vrcp.pop %v787
  %v806 = vrcp.pop %v790
  %v807 = vrcp.pop %v793
  %v808 = vrcp.pop %v796
  %v809 = vrcp.pop %v799
  %v810 = vrcp.pop %v802
  %v811 = vmul.f32 %v764, %v803
  %v812 = vmul.f32 %v766, %v804
  %v813 = vmul.f32 %v768, %v805
  %v814 = vmul.f32 %v770, %v806
  %v815 = vmul.f32 %v772, %v807
  %v816 = vmul.f32 %v774, %v808
  %v817 = vmul.f32 %v776, %v809
  %v818 = vmul.f32 %v778, %v810
  %v819 = vpack.c.bf16 %v812, %v811
  %v820 = vpack.c.bf16 %v814, %v813
  %v821 = vpack.c.bf16 %v816, %v815
  %v822 = vpack.c.bf16 %v818, %v817
  %823 = vrot.lane.b32.xlu0 %v664, 64
  %v824 = vpop.permute.xlu0 %823
  %825 = vrot.lane.b32.xlu0 %v665, 64
  %v826 = vpop.permute.xlu0 %825
  %827 = vrot.lane.b32.xlu0 %v666, 64
  %v828 = vpop.permute.xlu0 %827
  %829 = vrot.lane.b32.xlu0 %v667, 64
  %v830 = vpop.permute.xlu0 %829
  %v836 = vsel %vm730, %v819, 0
  %v839 = vsel %vm730, %v820, 0
  %v842 = vsel %vm730, %v821, 0
  %v845 = vsel %vm730, %v822, 0
  %847 = vmatpush.bf16.msra.mxu0 0
  %848 = vmatpush.bf16.msra.mxu0 0
  %849 = vmatpush.bf16.msra.mxu0 0
  %850 = vmatpush.bf16.msra.mxu0 0
  %851 = vmatpush.bf16.msra.mxu0 %v830
  %852 = vmatpush.bf16.msra.mxu0 %v828
  %853 = vmatpush.bf16.msra.mxu0 %v826
  %854 = vmatpush.bf16.msra.mxu0 %v824
  %855 = vmatmul.bf16.gmra.mxu0 %v836
  %v856 = vpop.f32.mrf.mxu0
  %v857 = vadd.f32 0.0, %v856
  %v858 = vpop.f32.mrf.mxu0
  %v859 = vadd.f32 0.0, %v858
  %860 = vmatmul.bf16.gmra.mxu0 %v839
  %v861 = vpop.f32.mrf.mxu0
  %v862 = vadd.f32 0.0, %v861
  %v863 = vpop.f32.mrf.mxu0
  %v864 = vadd.f32 0.0, %v863
  %865 = vmatmul.bf16.gmra.mxu0 %v842
  %v866 = vpop.f32.mrf.mxu0
  %v867 = vadd.f32 0.0, %v866
  %v868 = vpop.f32.mrf.mxu0
  %v869 = vadd.f32 0.0, %v868
  %870 = vmatmul.bf16.gmra.mxu0 %v845
  %v871 = vpop.f32.mrf.mxu0
  %v872 = vadd.f32 0.0, %v871
  %v873 = vpop.f32.mrf.mxu0
  %v874 = vadd.f32 0.0, %v873
  %875 = vdwg.mxu0
  %v876 = vpack.c.bf16 %v859, %v857
  %v877 = vpack.c.bf16 %v864, %v862
  %v878 = vpack.c.bf16 %v869, %v867
  %v879 = vpack.c.bf16 %v874, %v872
  %880 = vrot.lane.b32.xlu0 %v664, 120
  %v881 = vpop.permute.xlu0 %880
  %882 = vrot.lane.b32.xlu0 %v665, 120
  %v883 = vpop.permute.xlu0 %882
  %884 = vrot.lane.b32.xlu0 %v666, 120
  %v885 = vpop.permute.xlu0 %884
  %886 = vrot.lane.b32.xlu0 %v667, 120
  %v887 = vpop.permute.xlu0 %886
  %888 = vrot.lane.b32.xlu0 %v664, 88
  %v889 = vpop.permute.xlu0 %888
  %890 = vrot.lane.b32.xlu0 %v665, 88
  %v891 = vpop.permute.xlu0 %890
  %892 = vrot.lane.b32.xlu0 %v666, 88
  %v893 = vpop.permute.xlu0 %892
  %894 = vrot.lane.b32.xlu0 %v667, 88
  %v895 = vpop.permute.xlu0 %894
  %v897 = vsel %vm676, %v881, 0
  %v900 = vsel %vm676, %v883, 0
  %v903 = vsel %vm676, %v885, 0
  %v906 = vsel %vm676, %v887, 0
  %v909 = vsel %vm676, %v889, 0
  %v912 = vsel %vm676, %v891, 0
  %v915 = vsel %vm676, %v893, 0
  %v918 = vsel %vm676, %v895, 0
  %920 = vmatpush.bf16.xpose.msra.mxu0 0
  %921 = vmatpush.bf16.xpose.msra.mxu0 0
  %922 = vmatpush.bf16.xpose.msra.mxu0 0
  %923 = vmatpush.bf16.xpose.msra.mxu0 0
  %924 = vmatpush.bf16.xpose.msra.mxu0 %v918
  %925 = vmatpush.bf16.xpose.msra.mxu0 %v915
  %926 = vmatpush.bf16.xpose.msra.mxu0 %v912
  %927 = vmatpush.bf16.xpose.msra.mxu0 %v909
  %928 = vmatmul.bf16.gmra.mxu0 %v897
  %v929 = vpop.f32.mrf.mxu0
  %v930 = vadd.f32 0.0, %v929
  %v931 = vpop.f32.mrf.mxu0
  %v932 = vadd.f32 0.0, %v931
  %933 = vmatmul.bf16.gmra.mxu0 %v900
  %v934 = vpop.f32.mrf.mxu0
  %v935 = vadd.f32 0.0, %v934
  %v936 = vpop.f32.mrf.mxu0
  %v937 = vadd.f32 0.0, %v936
  %938 = vmatmul.bf16.gmra.mxu0 %v903
  %v939 = vpop.f32.mrf.mxu0
  %v940 = vadd.f32 0.0, %v939
  %v941 = vpop.f32.mrf.mxu0
  %v942 = vadd.f32 0.0, %v941
  %943 = vmatmul.bf16.gmra.mxu0 %v906
  %v944 = vpop.f32.mrf.mxu0
  %v945 = vadd.f32 0.0, %v944
  %v946 = vpop.f32.mrf.mxu0
  %v947 = vadd.f32 0.0, %v946
  %948 = vdwg.mxu0
  %v949 = vsel %vm730, %v930, -inf
  %950 = vmax.xlane.f32.xlu0 %v949
  %v951 = vpop.xlane.xlu0 %950
  %v952 = vsel %vm730, %v932, -inf
  %953 = vmax.xlane.f32.xlu0 %v952
  %v954 = vpop.xlane.xlu0 %953
  %v955 = vsel %vm730, %v935, -inf
  %956 = vmax.xlane.f32.xlu0 %v955
  %v957 = vpop.xlane.xlu0 %956
  %v958 = vsel %vm730, %v937, -inf
  %959 = vmax.xlane.f32.xlu0 %v958
  %v960 = vpop.xlane.xlu0 %959
  %v961 = vsel %vm730, %v940, -inf
  %962 = vmax.xlane.f32.xlu0 %v961
  %v963 = vpop.xlane.xlu0 %962
  %v964 = vsel %vm730, %v942, -inf
  %965 = vmax.xlane.f32.xlu0 %v964
  %v966 = vpop.xlane.xlu0 %965
  %v967 = vsel %vm730, %v945, -inf
  %968 = vmax.xlane.f32.xlu0 %v967
  %v969 = vpop.xlane.xlu0 %968
  %v970 = vsel %vm730, %v947, -inf
  %971 = vmax.xlane.f32.xlu0 %v970
  %v972 = vpop.xlane.xlu0 %971
  %v973 = vsub.f32 %v930, %v951
  %v974 = vsub.f32 %v932, %v954
  %v975 = vsub.f32 %v935, %v957
  %v976 = vsub.f32 %v937, %v960
  %v977 = vsub.f32 %v940, %v963
  %v978 = vsub.f32 %v942, %v966
  %v979 = vsub.f32 %v945, %v969
  %v980 = vsub.f32 %v947, %v972
  %v981 = vmul.f32 %v973, 1.442695
  %v982 = vpow.pop %v981
  %v983 = vmul.f32 %v974, 1.442695
  %v984 = vpow.pop %v983
  %v985 = vmul.f32 %v975, 1.442695
  %v986 = vpow.pop %v985
  %v987 = vmul.f32 %v976, 1.442695
  %v988 = vpow.pop %v987
  %v989 = vmul.f32 %v977, 1.442695
  %v990 = vpow.pop %v989
  %v991 = vmul.f32 %v978, 1.442695
  %v992 = vpow.pop %v991
  %v993 = vmul.f32 %v979, 1.442695
  %v994 = vpow.pop %v993
  %v995 = vmul.f32 %v980, 1.442695
  %v996 = vpow.pop %v995
  %v997 = vsel %vm730, %v982, 0.0
  %998 = vadd.xlane.f32.xlu0 %v997
  %v999 = vpop.xlane.xlu0 %998
  %v1000 = vsel %vm730, %v984, 0.0
  %1001 = vadd.xlane.f32.xlu0 %v1000
  %v1002 = vpop.xlane.xlu0 %1001
  %v1003 = vsel %vm730, %v986, 0.0
  %1004 = vadd.xlane.f32.xlu0 %v1003
  %v1005 = vpop.xlane.xlu0 %1004
  %v1006 = vsel %vm730, %v988, 0.0
  %1007 = vadd.xlane.f32.xlu0 %v1006
  %v1008 = vpop.xlane.xlu0 %1007
  %v1009 = vsel %vm730, %v990, 0.0
  %1010 = vadd.xlane.f32.xlu0 %v1009
  %v1011 = vpop.xlane.xlu0 %1010
  %v1012 = vsel %vm730, %v992, 0.0
  %1013 = vadd.xlane.f32.xlu0 %v1012
  %v1014 = vpop.xlane.xlu0 %1013
  %v1015 = vsel %vm730, %v994, 0.0
  %1016 = vadd.xlane.f32.xlu0 %v1015
  %v1017 = vpop.xlane.xlu0 %1016
  %v1018 = vsel %vm730, %v996, 0.0
  %1019 = vadd.xlane.f32.xlu0 %v1018
  %v1020 = vpop.xlane.xlu0 %1019
  %v1021 = vrcp.pop %v999
  %v1022 = vrcp.pop %v1002
  %v1023 = vrcp.pop %v1005
  %v1024 = vrcp.pop %v1008
  %v1025 = vrcp.pop %v1011
  %v1026 = vrcp.pop %v1014
  %v1027 = vrcp.pop %v1017
  %v1028 = vrcp.pop %v1020
  %v1029 = vmul.f32 %v982, %v1021
  %v1030 = vmul.f32 %v984, %v1022
  %v1031 = vmul.f32 %v986, %v1023
  %v1032 = vmul.f32 %v988, %v1024
  %v1033 = vmul.f32 %v990, %v1025
  %v1034 = vmul.f32 %v992, %v1026
  %v1035 = vmul.f32 %v994, %v1027
  %v1036 = vmul.f32 %v996, %v1028
  %v1037 = vpack.c.bf16 %v1030, %v1029
  %v1038 = vpack.c.bf16 %v1032, %v1031
  %v1039 = vpack.c.bf16 %v1034, %v1033
  %v1040 = vpack.c.bf16 %v1036, %v1035
  %1041 = vrot.lane.b32.xlu0 %v664, 56
  %v1042 = vpop.permute.xlu0 %1041
  %1043 = vrot.lane.b32.xlu0 %v665, 56
  %v1044 = vpop.permute.xlu0 %1043
  %1045 = vrot.lane.b32.xlu0 %v666, 56
  %v1046 = vpop.permute.xlu0 %1045
  %1047 = vrot.lane.b32.xlu0 %v667, 56
  %v1048 = vpop.permute.xlu0 %1047
  %v1054 = vsel %vm730, %v1037, 0
  %v1057 = vsel %vm730, %v1038, 0
  %v1060 = vsel %vm730, %v1039, 0
  %v1063 = vsel %vm730, %v1040, 0
  %1065 = vmatpush.bf16.msra.mxu0 0
  %1066 = vmatpush.bf16.msra.mxu0 0
  %1067 = vmatpush.bf16.msra.mxu0 0
  %1068 = vmatpush.bf16.msra.mxu0 0
  %1069 = vmatpush.bf16.msra.mxu0 %v1048
  %1070 = vmatpush.bf16.msra.mxu0 %v1046
  %1071 = vmatpush.bf16.msra.mxu0 %v1044
  %1072 = vmatpush.bf16.msra.mxu0 %v1042
  %1073 = vmatmul.bf16.gmra.mxu0 %v1054
  %v1074 = vpop.f32.mrf.mxu0
  %v1075 = vadd.f32 0.0, %v1074
  %v1076 = vpop.f32.mrf.mxu0
  %v1077 = vadd.f32 0.0, %v1076
  %1078 = vmatmul.bf16.gmra.mxu0 %v1057
  %v1079 = vpop.f32.mrf.mxu0
  %v1080 = vadd.f32 0.0, %v1079
  %v1081 = vpop.f32.mrf.mxu0
  %v1082 = vadd.f32 0.0, %v1081
  %1083 = vmatmul.bf16.gmra.mxu0 %v1060
  %v1084 = vpop.f32.mrf.mxu0
  %v1085 = vadd.f32 0.0, %v1084
  %v1086 = vpop.f32.mrf.mxu0
  %v1087 = vadd.f32 0.0, %v1086
  %1088 = vmatmul.bf16.gmra.mxu0 %v1063
  %v1089 = vpop.f32.mrf.mxu0
  %v1090 = vadd.f32 0.0, %v1089
  %v1091 = vpop.f32.mrf.mxu0
  %v1092 = vadd.f32 0.0, %v1091
  %1093 = vdwg.mxu0
  %v1094 = vpack.c.bf16 %v1077, %v1075
  %v1095 = vpack.c.bf16 %v1082, %v1080
  %v1096 = vpack.c.bf16 %v1087, %v1085
  %v1097 = vpack.c.bf16 %v1092, %v1090
  %v1099 = vsel %vm676, %v1094, 0
  %v1102 = vsel %vm676, %v1095, 0
  %v1105 = vsel %vm676, %v1096, 0
  %v1108 = vsel %vm676, %v1097, 0
  %vm1110 = vcmask 1043456
  %v1112 = vsel %vm1110, %v645, 0
  %1114 = vmatpush.bf16.msra.mxu0 0
  %1115 = vmatpush.bf16.msra.mxu0 0
  %1116 = vmatpush.bf16.msra.mxu0 0
  %1117 = vmatpush.bf16.msra.mxu0 0
  %1118 = vmatpush.bf16.msra.mxu0 0
  %1119 = vmatpush.bf16.msra.mxu0 0
  %1120 = vmatpush.bf16.msra.mxu0 0
  %1121 = vmatpush.bf16.msra.mxu0 %v1112
  %1122 = vmatmul.bf16.gmra.mxu0 %v1099
  %v1123 = vpop.f32.mrf.mxu0
  %v1124 = vadd.f32 0.0, %v1123
  %v1125 = vpop.f32.mrf.mxu0
  %v1126 = vadd.f32 0.0, %v1125
  %1127 = vmatmul.bf16.gmra.mxu0 %v1102
  %v1128 = vpop.f32.mrf.mxu0
  %v1129 = vadd.f32 0.0, %v1128
  %v1130 = vpop.f32.mrf.mxu0
  %v1131 = vadd.f32 0.0, %v1130
  %1132 = vmatmul.bf16.gmra.mxu0 %v1105
  %v1133 = vpop.f32.mrf.mxu0
  %v1134 = vadd.f32 0.0, %v1133
  %v1135 = vpop.f32.mrf.mxu0
  %v1136 = vadd.f32 0.0, %v1135
  %1137 = vmatmul.bf16.gmra.mxu0 %v1108
  %v1138 = vpop.f32.mrf.mxu0
  %v1139 = vadd.f32 0.0, %v1138
  %v1140 = vpop.f32.mrf.mxu0
  %v1141 = vadd.f32 0.0, %v1140
  %1142 = vdwg.mxu0
  %v1144 = vsel %vm676, %v876, 0
  %v1147 = vsel %vm676, %v877, 0
  %v1150 = vsel %vm676, %v878, 0
  %v1153 = vsel %vm676, %v879, 0
  %v1156 = vsel %vm1110, %v644, 0
  %1158 = vmatpush.bf16.msra.mxu0 0
  %1159 = vmatpush.bf16.msra.mxu0 0
  %1160 = vmatpush.bf16.msra.mxu0 0
  %1161 = vmatpush.bf16.msra.mxu0 0
  %1162 = vmatpush.bf16.msra.mxu0 0
  %1163 = vmatpush.bf16.msra.mxu0 0
  %1164 = vmatpush.bf16.msra.mxu0 0
  %1165 = vmatpush.bf16.msra.mxu0 %v1156
  %1166 = vmatmul.bf16.gmra.mxu0 %v1144
  %v1167 = vpop.f32.mrf.mxu0
  %v1168 = vadd.f32 %v1124, %v1167
  %v1169 = vpop.f32.mrf.mxu0
  %v1170 = vadd.f32 %v1126, %v1169
  %1171 = vmatmul.bf16.gmra.mxu0 %v1147
  %v1172 = vpop.f32.mrf.mxu0
  %v1173 = vadd.f32 %v1129, %v1172
  %v1174 = vpop.f32.mrf.mxu0
  %v1175 = vadd.f32 %v1131, %v1174
  %1176 = vmatmul.bf16.gmra.mxu0 %v1150
  %v1177 = vpop.f32.mrf.mxu0
  %v1178 = vadd.f32 %v1134, %v1177
  %v1179 = vpop.f32.mrf.mxu0
  %v1180 = vadd.f32 %v1136, %v1179
  %1181 = vmatmul.bf16.gmra.mxu0 %v1153
  %v1182 = vpop.f32.mrf.mxu0
  %v1183 = vadd.f32 %v1139, %v1182
  %v1184 = vpop.f32.mrf.mxu0
  %v1185 = vadd.f32 %v1141, %v1184
  %1186 = vdwg.mxu0
  %1187 = vrot.lane.b32.xlu0 %v664, 112
  %v1188 = vpop.permute.xlu0 %1187
  %1189 = vrot.lane.b32.xlu0 %v665, 112
  %v1190 = vpop.permute.xlu0 %1189
  %1191 = vrot.lane.b32.xlu0 %v666, 112
  %v1192 = vpop.permute.xlu0 %1191
  %1193 = vrot.lane.b32.xlu0 %v667, 112
  %v1194 = vpop.permute.xlu0 %1193
  %1195 = vrot.lane.b32.xlu0 %v664, 80
  %v1196 = vpop.permute.xlu0 %1195
  %1197 = vrot.lane.b32.xlu0 %v665, 80
  %v1198 = vpop.permute.xlu0 %1197
  %1199 = vrot.lane.b32.xlu0 %v666, 80
  %v1200 = vpop.permute.xlu0 %1199
  %1201 = vrot.lane.b32.xlu0 %v667, 80
  %v1202 = vpop.permute.xlu0 %1201
  %v1204 = vsel %vm676, %v1188, 0
  %v1207 = vsel %vm676, %v1190, 0
  %v1210 = vsel %vm676, %v1192, 0
  %v1213 = vsel %vm676, %v1194, 0
  %v1216 = vsel %vm676, %v1196, 0
  %v1219 = vsel %vm676, %v1198, 0
  %v1222 = vsel %vm676, %v1200, 0
  %v1225 = vsel %vm676, %v1202, 0
  %1227 = vmatpush.bf16.xpose.msra.mxu0 0
  %1228 = vmatpush.bf16.xpose.msra.mxu0 0
  %1229 = vmatpush.bf16.xpose.msra.mxu0 0
  %1230 = vmatpush.bf16.xpose.msra.mxu0 0
  %1231 = vmatpush.bf16.xpose.msra.mxu0 %v1225
  %1232 = vmatpush.bf16.xpose.msra.mxu0 %v1222
  %1233 = vmatpush.bf16.xpose.msra.mxu0 %v1219
  %1234 = vmatpush.bf16.xpose.msra.mxu0 %v1216
  %1235 = vmatmul.bf16.gmra.mxu0 %v1204
  %v1236 = vpop.f32.mrf.mxu0
  %v1237 = vadd.f32 0.0, %v1236
  %v1238 = vpop.f32.mrf.mxu0
  %v1239 = vadd.f32 0.0, %v1238
  %1240 = vmatmul.bf16.gmra.mxu0 %v1207
  %v1241 = vpop.f32.mrf.mxu0
  %v1242 = vadd.f32 0.0, %v1241
  %v1243 = vpop.f32.mrf.mxu0
  %v1244 = vadd.f32 0.0, %v1243
  %1245 = vmatmul.bf16.gmra.mxu0 %v1210
  %v1246 = vpop.f32.mrf.mxu0
  %v1247 = vadd.f32 0.0, %v1246
  %v1248 = vpop.f32.mrf.mxu0
  %v1249 = vadd.f32 0.0, %v1248
  %1250 = vmatmul.bf16.gmra.mxu0 %v1213
  %v1251 = vpop.f32.mrf.mxu0
  %v1252 = vadd.f32 0.0, %v1251
  %v1253 = vpop.f32.mrf.mxu0
  %v1254 = vadd.f32 0.0, %v1253
  %1255 = vdwg.mxu0
  %v1256 = vsel %vm730, %v1237, -inf
  %1257 = vmax.xlane.f32.xlu0 %v1256
  %v1258 = vpop.xlane.xlu0 %1257
  %v1259 = vsel %vm730, %v1239, -inf
  %1260 = vmax.xlane.f32.xlu0 %v1259
  %v1261 = vpop.xlane.xlu0 %1260
  %v1262 = vsel %vm730, %v1242, -inf
  %1263 = vmax.xlane.f32.xlu0 %v1262
  %v1264 = vpop.xlane.xlu0 %1263
  %v1265 = vsel %vm730, %v1244, -inf
  %1266 = vmax.xlane.f32.xlu0 %v1265
  %v1267 = vpop.xlane.xlu0 %1266
  %v1268 = vsel %vm730, %v1247, -inf
  %1269 = vmax.xlane.f32.xlu0 %v1268
  %v1270 = vpop.xlane.xlu0 %1269
  %v1271 = vsel %vm730, %v1249, -inf
  %1272 = vmax.xlane.f32.xlu0 %v1271
  %v1273 = vpop.xlane.xlu0 %1272
  %v1274 = vsel %vm730, %v1252, -inf
  %1275 = vmax.xlane.f32.xlu0 %v1274
  %v1276 = vpop.xlane.xlu0 %1275
  %v1277 = vsel %vm730, %v1254, -inf
  %1278 = vmax.xlane.f32.xlu0 %v1277
  %v1279 = vpop.xlane.xlu0 %1278
  %v1280 = vsub.f32 %v1237, %v1258
  %v1281 = vsub.f32 %v1239, %v1261
  %v1282 = vsub.f32 %v1242, %v1264
  %v1283 = vsub.f32 %v1244, %v1267
  %v1284 = vsub.f32 %v1247, %v1270
  %v1285 = vsub.f32 %v1249, %v1273
  %v1286 = vsub.f32 %v1252, %v1276
  %v1287 = vsub.f32 %v1254, %v1279
  %v1288 = vmul.f32 %v1280, 1.442695
  %v1289 = vpow.pop %v1288
  %v1290 = vmul.f32 %v1281, 1.442695
  %v1291 = vpow.pop %v1290
  %v1292 = vmul.f32 %v1282, 1.442695
  %v1293 = vpow.pop %v1292
  %v1294 = vmul.f32 %v1283, 1.442695
  %v1295 = vpow.pop %v1294
  %v1296 = vmul.f32 %v1284, 1.442695
  %v1297 = vpow.pop %v1296
  %v1298 = vmul.f32 %v1285, 1.442695
  %v1299 = vpow.pop %v1298
  %v1300 = vmul.f32 %v1286, 1.442695
  %v1301 = vpow.pop %v1300
  %v1302 = vmul.f32 %v1287, 1.442695
  %v1303 = vpow.pop %v1302
  %v1304 = vsel %vm730, %v1289, 0.0
  %1305 = vadd.xlane.f32.xlu0 %v1304
  %v1306 = vpop.xlane.xlu0 %1305
  %v1307 = vsel %vm730, %v1291, 0.0
  %1308 = vadd.xlane.f32.xlu0 %v1307
  %v1309 = vpop.xlane.xlu0 %1308
  %v1310 = vsel %vm730, %v1293, 0.0
  %1311 = vadd.xlane.f32.xlu0 %v1310
  %v1312 = vpop.xlane.xlu0 %1311
  %v1313 = vsel %vm730, %v1295, 0.0
  %1314 = vadd.xlane.f32.xlu0 %v1313
  %v1315 = vpop.xlane.xlu0 %1314
  %v1316 = vsel %vm730, %v1297, 0.0
  %1317 = vadd.xlane.f32.xlu0 %v1316
  %v1318 = vpop.xlane.xlu0 %1317
  %v1319 = vsel %vm730, %v1299, 0.0
  %1320 = vadd.xlane.f32.xlu0 %v1319
  %v1321 = vpop.xlane.xlu0 %1320
  %v1322 = vsel %vm730, %v1301, 0.0
  %1323 = vadd.xlane.f32.xlu0 %v1322
  %v1324 = vpop.xlane.xlu0 %1323
  %v1325 = vsel %vm730, %v1303, 0.0
  %1326 = vadd.xlane.f32.xlu0 %v1325
  %v1327 = vpop.xlane.xlu0 %1326
  %v1328 = vrcp.pop %v1306
  %v1329 = vrcp.pop %v1309
  %v1330 = vrcp.pop %v1312
  %v1331 = vrcp.pop %v1315
  %v1332 = vrcp.pop %v1318
  %v1333 = vrcp.pop %v1321
  %v1334 = vrcp.pop %v1324
  %v1335 = vrcp.pop %v1327
  %v1336 = vmul.f32 %v1289, %v1328
  %v1337 = vmul.f32 %v1291, %v1329
  %v1338 = vmul.f32 %v1293, %v1330
  %v1339 = vmul.f32 %v1295, %v1331
  %v1340 = vmul.f32 %v1297, %v1332
  %v1341 = vmul.f32 %v1299, %v1333
  %v1342 = vmul.f32 %v1301, %v1334
  %v1343 = vmul.f32 %v1303, %v1335
  %v1344 = vpack.c.bf16 %v1337, %v1336
  %v1345 = vpack.c.bf16 %v1339, %v1338
  %v1346 = vpack.c.bf16 %v1341, %v1340
  %v1347 = vpack.c.bf16 %v1343, %v1342
  %1348 = vrot.lane.b32.xlu0 %v664, 48
  %v1349 = vpop.permute.xlu0 %1348
  %1350 = vrot.lane.b32.xlu0 %v665, 48
  %v1351 = vpop.permute.xlu0 %1350
  %1352 = vrot.lane.b32.xlu0 %v666, 48
  %v1353 = vpop.permute.xlu0 %1352
  %1354 = vrot.lane.b32.xlu0 %v667, 48
  %v1355 = vpop.permute.xlu0 %1354
  %v1361 = vsel %vm730, %v1344, 0
  %v1364 = vsel %vm730, %v1345, 0
  %v1367 = vsel %vm730, %v1346, 0
  %v1370 = vsel %vm730, %v1347, 0
  %1372 = vmatpush.bf16.msra.mxu0 0
  %1373 = vmatpush.bf16.msra.mxu0 0
  %1374 = vmatpush.bf16.msra.mxu0 0
  %1375 = vmatpush.bf16.msra.mxu0 0
  %1376 = vmatpush.bf16.msra.mxu0 %v1355
  %1377 = vmatpush.bf16.msra.mxu0 %v1353
  %1378 = vmatpush.bf16.msra.mxu0 %v1351
  %1379 = vmatpush.bf16.msra.mxu0 %v1349
  %1380 = vmatmul.bf16.gmra.mxu0 %v1361
  %v1381 = vpop.f32.mrf.mxu0
  %v1382 = vadd.f32 0.0, %v1381
  %v1383 = vpop.f32.mrf.mxu0
  %v1384 = vadd.f32 0.0, %v1383
  %1385 = vmatmul.bf16.gmra.mxu0 %v1364
  %v1386 = vpop.f32.mrf.mxu0
  %v1387 = vadd.f32 0.0, %v1386
  %v1388 = vpop.f32.mrf.mxu0
  %v1389 = vadd.f32 0.0, %v1388
  %1390 = vmatmul.bf16.gmra.mxu0 %v1367
  %v1391 = vpop.f32.mrf.mxu0
  %v1392 = vadd.f32 0.0, %v1391
  %v1393 = vpop.f32.mrf.mxu0
  %v1394 = vadd.f32 0.0, %v1393
  %1395 = vmatmul.bf16.gmra.mxu0 %v1370
  %v1396 = vpop.f32.mrf.mxu0
  %v1397 = vadd.f32 0.0, %v1396
  %v1398 = vpop.f32.mrf.mxu0
  %v1399 = vadd.f32 0.0, %v1398
  %1400 = vdwg.mxu0
  %v1401 = vpack.c.bf16 %v1384, %v1382
  %v1402 = vpack.c.bf16 %v1389, %v1387
  %v1403 = vpack.c.bf16 %v1394, %v1392
  %v1404 = vpack.c.bf16 %v1399, %v1397
  %v1406 = vsel %vm676, %v1401, 0
  %v1409 = vsel %vm676, %v1402, 0
  %v1412 = vsel %vm676, %v1403, 0
  %v1415 = vsel %vm676, %v1404, 0
  %v1418 = vsel %vm1110, %v646, 0
  %1420 = vmatpush.bf16.msra.mxu0 0
  %1421 = vmatpush.bf16.msra.mxu0 0
  %1422 = vmatpush.bf16.msra.mxu0 0
  %1423 = vmatpush.bf16.msra.mxu0 0
  %1424 = vmatpush.bf16.msra.mxu0 0
  %1425 = vmatpush.bf16.msra.mxu0 0
  %1426 = vmatpush.bf16.msra.mxu0 0
  %1427 = vmatpush.bf16.msra.mxu0 %v1418
  %1428 = vmatmul.bf16.gmra.mxu0 %v1406
  %v1429 = vpop.f32.mrf.mxu0
  %v1430 = vadd.f32 0.0, %v1429
  %v1431 = vpop.f32.mrf.mxu0
  %v1432 = vadd.f32 0.0, %v1431
  %1433 = vmatmul.bf16.gmra.mxu0 %v1409
  %v1434 = vpop.f32.mrf.mxu0
  %v1435 = vadd.f32 0.0, %v1434
  %v1436 = vpop.f32.mrf.mxu0
  %v1437 = vadd.f32 0.0, %v1436
  %1438 = vmatmul.bf16.gmra.mxu0 %v1412
  %v1439 = vpop.f32.mrf.mxu0
  %v1440 = vadd.f32 0.0, %v1439
  %v1441 = vpop.f32.mrf.mxu0
  %v1442 = vadd.f32 0.0, %v1441
  %1443 = vmatmul.bf16.gmra.mxu0 %v1415
  %v1444 = vpop.f32.mrf.mxu0
  %v1445 = vadd.f32 0.0, %v1444
  %v1446 = vpop.f32.mrf.mxu0
  %v1447 = vadd.f32 0.0, %v1446
  %1448 = vdwg.mxu0
  %v1449 = vadd.f32 %v1168, %v1430
  %v1450 = vadd.f32 %v1170, %v1432
  %v1451 = vadd.f32 %v1173, %v1435
  %v1452 = vadd.f32 %v1175, %v1437
  %v1453 = vadd.f32 %v1178, %v1440
  %v1454 = vadd.f32 %v1180, %v1442
  %v1455 = vadd.f32 %v1183, %v1445
  %v1456 = vadd.f32 %v1185, %v1447
  %1457 = vrot.lane.b32.xlu0 %v664, 104
  %v1458 = vpop.permute.xlu0 %1457
  %1459 = vrot.lane.b32.xlu0 %v665, 104
  %v1460 = vpop.permute.xlu0 %1459
  %1461 = vrot.lane.b32.xlu0 %v666, 104
  %v1462 = vpop.permute.xlu0 %1461
  %1463 = vrot.lane.b32.xlu0 %v667, 104
  %v1464 = vpop.permute.xlu0 %1463
  %1465 = vrot.lane.b32.xlu0 %v664, 72
  %v1466 = vpop.permute.xlu0 %1465
  %1467 = vrot.lane.b32.xlu0 %v665, 72
  %v1468 = vpop.permute.xlu0 %1467
  %1469 = vrot.lane.b32.xlu0 %v666, 72
  %v1470 = vpop.permute.xlu0 %1469
  %1471 = vrot.lane.b32.xlu0 %v667, 72
  %v1472 = vpop.permute.xlu0 %1471
  %v1474 = vsel %vm676, %v1458, 0
  %v1477 = vsel %vm676, %v1460, 0
  %v1480 = vsel %vm676, %v1462, 0
  %v1483 = vsel %vm676, %v1464, 0
  %v1486 = vsel %vm676, %v1466, 0
  %v1489 = vsel %vm676, %v1468, 0
  %v1492 = vsel %vm676, %v1470, 0
  %v1495 = vsel %vm676, %v1472, 0
  %1497 = vmatpush.bf16.xpose.msra.mxu0 0
  %1498 = vmatpush.bf16.xpose.msra.mxu0 0
  %1499 = vmatpush.bf16.xpose.msra.mxu0 0
  %1500 = vmatpush.bf16.xpose.msra.mxu0 0
  %1501 = vmatpush.bf16.xpose.msra.mxu0 %v1495
  %1502 = vmatpush.bf16.xpose.msra.mxu0 %v1492
  %1503 = vmatpush.bf16.xpose.msra.mxu0 %v1489
  %1504 = vmatpush.bf16.xpose.msra.mxu0 %v1486
  %1505 = vmatmul.bf16.gmra.mxu0 %v1474
  %v1506 = vpop.f32.mrf.mxu0
  %v1507 = vadd.f32 0.0, %v1506
  %v1508 = vpop.f32.mrf.mxu0
  %v1509 = vadd.f32 0.0, %v1508
  %1510 = vmatmul.bf16.gmra.mxu0 %v1477
  %v1511 = vpop.f32.mrf.mxu0
  %v1512 = vadd.f32 0.0, %v1511
  %v1513 = vpop.f32.mrf.mxu0
  %v1514 = vadd.f32 0.0, %v1513
  %1515 = vmatmul.bf16.gmra.mxu0 %v1480
  %v1516 = vpop.f32.mrf.mxu0
  %v1517 = vadd.f32 0.0, %v1516
  %v1518 = vpop.f32.mrf.mxu0
  %v1519 = vadd.f32 0.0, %v1518
  %1520 = vmatmul.bf16.gmra.mxu0 %v1483
  %v1521 = vpop.f32.mrf.mxu0
  %v1522 = vadd.f32 0.0, %v1521
  %v1523 = vpop.f32.mrf.mxu0
  %v1524 = vadd.f32 0.0, %v1523
  %1525 = vdwg.mxu0
  %v1526 = vsel %vm730, %v1507, -inf
  %1527 = vmax.xlane.f32.xlu0 %v1526
  %v1528 = vpop.xlane.xlu0 %1527
  %v1529 = vsel %vm730, %v1509, -inf
  %1530 = vmax.xlane.f32.xlu0 %v1529
  %v1531 = vpop.xlane.xlu0 %1530
  %v1532 = vsel %vm730, %v1512, -inf
  %1533 = vmax.xlane.f32.xlu0 %v1532
  %v1534 = vpop.xlane.xlu0 %1533
  %v1535 = vsel %vm730, %v1514, -inf
  %1536 = vmax.xlane.f32.xlu0 %v1535
  %v1537 = vpop.xlane.xlu0 %1536
  %v1538 = vsel %vm730, %v1517, -inf
  %1539 = vmax.xlane.f32.xlu0 %v1538
  %v1540 = vpop.xlane.xlu0 %1539
  %v1541 = vsel %vm730, %v1519, -inf
  %1542 = vmax.xlane.f32.xlu0 %v1541
  %v1543 = vpop.xlane.xlu0 %1542
  %v1544 = vsel %vm730, %v1522, -inf
  %1545 = vmax.xlane.f32.xlu0 %v1544
  %v1546 = vpop.xlane.xlu0 %1545
  %v1547 = vsel %vm730, %v1524, -inf
  %1548 = vmax.xlane.f32.xlu0 %v1547
  %v1549 = vpop.xlane.xlu0 %1548
  %v1550 = vsub.f32 %v1507, %v1528
  %v1551 = vsub.f32 %v1509, %v1531
  %v1552 = vsub.f32 %v1512, %v1534
  %v1553 = vsub.f32 %v1514, %v1537
  %v1554 = vsub.f32 %v1517, %v1540
  %v1555 = vsub.f32 %v1519, %v1543
  %v1556 = vsub.f32 %v1522, %v1546
  %v1557 = vsub.f32 %v1524, %v1549
  %v1558 = vmul.f32 %v1550, 1.442695
  %v1559 = vpow.pop %v1558
  %v1560 = vmul.f32 %v1551, 1.442695
  %v1561 = vpow.pop %v1560
  %v1562 = vmul.f32 %v1552, 1.442695
  %v1563 = vpow.pop %v1562
  %v1564 = vmul.f32 %v1553, 1.442695
  %v1565 = vpow.pop %v1564
  %v1566 = vmul.f32 %v1554, 1.442695
  %v1567 = vpow.pop %v1566
  %v1568 = vmul.f32 %v1555, 1.442695
  %v1569 = vpow.pop %v1568
  %v1570 = vmul.f32 %v1556, 1.442695
  %v1571 = vpow.pop %v1570
  %v1572 = vmul.f32 %v1557, 1.442695
  %v1573 = vpow.pop %v1572
  %v1574 = vsel %vm730, %v1559, 0.0
  %1575 = vadd.xlane.f32.xlu0 %v1574
  %v1576 = vpop.xlane.xlu0 %1575
  %v1577 = vsel %vm730, %v1561, 0.0
  %1578 = vadd.xlane.f32.xlu0 %v1577
  %v1579 = vpop.xlane.xlu0 %1578
  %v1580 = vsel %vm730, %v1563, 0.0
  %1581 = vadd.xlane.f32.xlu0 %v1580
  %v1582 = vpop.xlane.xlu0 %1581
  %v1583 = vsel %vm730, %v1565, 0.0
  %1584 = vadd.xlane.f32.xlu0 %v1583
  %v1585 = vpop.xlane.xlu0 %1584
  %v1586 = vsel %vm730, %v1567, 0.0
  %1587 = vadd.xlane.f32.xlu0 %v1586
  %v1588 = vpop.xlane.xlu0 %1587
  %v1589 = vsel %vm730, %v1569, 0.0
  %1590 = vadd.xlane.f32.xlu0 %v1589
  %v1591 = vpop.xlane.xlu0 %1590
  %v1592 = vsel %vm730, %v1571, 0.0
  %1593 = vadd.xlane.f32.xlu0 %v1592
  %v1594 = vpop.xlane.xlu0 %1593
  %v1595 = vsel %vm730, %v1573, 0.0
  %1596 = vadd.xlane.f32.xlu0 %v1595
  %v1597 = vpop.xlane.xlu0 %1596
  %v1598 = vrcp.pop %v1576
  %v1599 = vrcp.pop %v1579
  %v1600 = vrcp.pop %v1582
  %v1601 = vrcp.pop %v1585
  %v1602 = vrcp.pop %v1588
  %v1603 = vrcp.pop %v1591
  %v1604 = vrcp.pop %v1594
  %v1605 = vrcp.pop %v1597
  %v1606 = vmul.f32 %v1559, %v1598
  %v1607 = vmul.f32 %v1561, %v1599
  %v1608 = vmul.f32 %v1563, %v1600
  %v1609 = vmul.f32 %v1565, %v1601
  %v1610 = vmul.f32 %v1567, %v1602
  %v1611 = vmul.f32 %v1569, %v1603
  %v1612 = vmul.f32 %v1571, %v1604
  %v1613 = vmul.f32 %v1573, %v1605
  %v1614 = vpack.c.bf16 %v1607, %v1606
  %v1615 = vpack.c.bf16 %v1609, %v1608
  %v1616 = vpack.c.bf16 %v1611, %v1610
  %v1617 = vpack.c.bf16 %v1613, %v1612
  %1618 = vrot.lane.b32.xlu0 %v664, 40
  %v1619 = vpop.permute.xlu0 %1618
  %1620 = vrot.lane.b32.xlu0 %v665, 40
  %v1621 = vpop.permute.xlu0 %1620
  %1622 = vrot.lane.b32.xlu0 %v666, 40
  %v1623 = vpop.permute.xlu0 %1622
  %1624 = vrot.lane.b32.xlu0 %v667, 40
  %v1625 = vpop.permute.xlu0 %1624
  %v1631 = vsel %vm730, %v1614, 0
  %v1634 = vsel %vm730, %v1615, 0
  %v1637 = vsel %vm730, %v1616, 0
  %v1640 = vsel %vm730, %v1617, 0
  %1642 = vmatpush.bf16.msra.mxu0 0
  %1643 = vmatpush.bf16.msra.mxu0 0
  %1644 = vmatpush.bf16.msra.mxu0 0
  %1645 = vmatpush.bf16.msra.mxu0 0
  %1646 = vmatpush.bf16.msra.mxu0 %v1625
  %1647 = vmatpush.bf16.msra.mxu0 %v1623
  %1648 = vmatpush.bf16.msra.mxu0 %v1621
  %1649 = vmatpush.bf16.msra.mxu0 %v1619
  %1650 = vmatmul.bf16.gmra.mxu0 %v1631
  %v1651 = vpop.f32.mrf.mxu0
  %v1652 = vadd.f32 0.0, %v1651
  %v1653 = vpop.f32.mrf.mxu0
  %v1654 = vadd.f32 0.0, %v1653
  %1655 = vmatmul.bf16.gmra.mxu0 %v1634
  %v1656 = vpop.f32.mrf.mxu0
  %v1657 = vadd.f32 0.0, %v1656
  %v1658 = vpop.f32.mrf.mxu0
  %v1659 = vadd.f32 0.0, %v1658
  %1660 = vmatmul.bf16.gmra.mxu0 %v1637
  %v1661 = vpop.f32.mrf.mxu0
  %v1662 = vadd.f32 0.0, %v1661
  %v1663 = vpop.f32.mrf.mxu0
  %v1664 = vadd.f32 0.0, %v1663
  %1665 = vmatmul.bf16.gmra.mxu0 %v1640
  %v1666 = vpop.f32.mrf.mxu0
  %v1667 = vadd.f32 0.0, %v1666
  %v1668 = vpop.f32.mrf.mxu0
  %v1669 = vadd.f32 0.0, %v1668
  %1670 = vdwg.mxu0
  %v1671 = vpack.c.bf16 %v1654, %v1652
  %v1672 = vpack.c.bf16 %v1659, %v1657
  %v1673 = vpack.c.bf16 %v1664, %v1662
  %v1674 = vpack.c.bf16 %v1669, %v1667
  %v1676 = vsel %vm676, %v1671, 0
  %v1679 = vsel %vm676, %v1672, 0
  %v1682 = vsel %vm676, %v1673, 0
  %v1685 = vsel %vm676, %v1674, 0
  %v1688 = vsel %vm1110, %v647, 0
  %1690 = vmatpush.bf16.msra.mxu0 0
  %1691 = vmatpush.bf16.msra.mxu0 0
  %1692 = vmatpush.bf16.msra.mxu0 0
  %1693 = vmatpush.bf16.msra.mxu0 0
  %1694 = vmatpush.bf16.msra.mxu0 0
  %1695 = vmatpush.bf16.msra.mxu0 0
  %1696 = vmatpush.bf16.msra.mxu0 0
  %1697 = vmatpush.bf16.msra.mxu0 %v1688
  %1698 = vmatmul.bf16.gmra.mxu0 %v1676
  %v1699 = vpop.f32.mrf.mxu0
  %v1700 = vadd.f32 0.0, %v1699
  %v1701 = vpop.f32.mrf.mxu0
  %v1702 = vadd.f32 0.0, %v1701
  %1703 = vmatmul.bf16.gmra.mxu0 %v1679
  %v1704 = vpop.f32.mrf.mxu0
  %v1705 = vadd.f32 0.0, %v1704
  %v1706 = vpop.f32.mrf.mxu0
  %v1707 = vadd.f32 0.0, %v1706
  %1708 = vmatmul.bf16.gmra.mxu0 %v1682
  %v1709 = vpop.f32.mrf.mxu0
  %v1710 = vadd.f32 0.0, %v1709
  %v1711 = vpop.f32.mrf.mxu0
  %v1712 = vadd.f32 0.0, %v1711
  %1713 = vmatmul.bf16.gmra.mxu0 %v1685
  %v1714 = vpop.f32.mrf.mxu0
  %v1715 = vadd.f32 0.0, %v1714
  %v1716 = vpop.f32.mrf.mxu0
  %v1717 = vadd.f32 0.0, %v1716
  %1718 = vdwg.mxu0
  %v1719 = vadd.f32 %v1449, %v1700
  %v1720 = vadd.f32 %v1450, %v1702
  %v1721 = vadd.f32 %v1451, %v1705
  %v1722 = vadd.f32 %v1452, %v1707
  %v1723 = vadd.f32 %v1453, %v1710
  %v1724 = vadd.f32 %v1454, %v1712
  %v1725 = vadd.f32 %v1455, %v1715
  %v1726 = vadd.f32 %v1456, %v1717
  %v1735 = vunpack.c.l.b16 %v636
  %v1736 = vunpack.c.l.b16 %v637
  %v1737 = vunpack.c.l.b16 %v638
  %v1738 = vunpack.c.l.b16 %v639
  %v1739 = vunpack.c.l.b16 %v640
  %v1740 = vunpack.c.l.b16 %v641
  %v1741 = vunpack.c.l.b16 %v642
  %v1742 = vunpack.c.l.b16 %v643
  %v1743 = vpack.c.b16 %v1736, %v1735
  %v1744 = vpack.c.b16 %v1738, %v1737
  %v1745 = vpack.c.b16 %v1740, %v1739
  %v1746 = vpack.c.b16 %v1742, %v1741
  %1747 = vrot.lane.b32.xlu0 %v1743, 96
  %v1748 = vpop.permute.xlu0 %1747
  %1749 = vrot.lane.b32.xlu0 %v1744, 96
  %v1750 = vpop.permute.xlu0 %1749
  %1751 = vrot.lane.b32.xlu0 %v1745, 96
  %v1752 = vpop.permute.xlu0 %1751
  %1753 = vrot.lane.b32.xlu0 %v1746, 96
  %v1754 = vpop.permute.xlu0 %1753
  %v1756 = vsel %vm676, %v1743, 0
  %v1759 = vsel %vm676, %v1744, 0
  %v1762 = vsel %vm676, %v1745, 0
  %v1765 = vsel %vm676, %v1746, 0
  %v1768 = vsel %vm676, %v1748, 0
  %v1771 = vsel %vm676, %v1750, 0
  %v1774 = vsel %vm676, %v1752, 0
  %v1777 = vsel %vm676, %v1754, 0
  %1779 = vmatpush.bf16.xpose.msra.mxu0 0
  %1780 = vmatpush.bf16.xpose.msra.mxu0 0
  %1781 = vmatpush.bf16.xpose.msra.mxu0 0
  %1782 = vmatpush.bf16.xpose.msra.mxu0 0
  %1783 = vmatpush.bf16.xpose.msra.mxu0 %v1777
  %1784 = vmatpush.bf16.xpose.msra.mxu0 %v1774
  %1785 = vmatpush.bf16.xpose.msra.mxu0 %v1771
  %1786 = vmatpush.bf16.xpose.msra.mxu0 %v1768
  %1787 = vmatmul.bf16.gmra.mxu0 %v1756
  %v1788 = vpop.f32.mrf.mxu0
  %v1789 = vadd.f32 0.0, %v1788
  %v1790 = vpop.f32.mrf.mxu0
  %v1791 = vadd.f32 0.0, %v1790
  %1792 = vmatmul.bf16.gmra.mxu0 %v1759
  %v1793 = vpop.f32.mrf.mxu0
  %v1794 = vadd.f32 0.0, %v1793
  %v1795 = vpop.f32.mrf.mxu0
  %v1796 = vadd.f32 0.0, %v1795
  %1797 = vmatmul.bf16.gmra.mxu0 %v1762
  %v1798 = vpop.f32.mrf.mxu0
  %v1799 = vadd.f32 0.0, %v1798
  %v1800 = vpop.f32.mrf.mxu0
  %v1801 = vadd.f32 0.0, %v1800
  %1802 = vmatmul.bf16.gmra.mxu0 %v1765
  %v1803 = vpop.f32.mrf.mxu0
  %v1804 = vadd.f32 0.0, %v1803
  %v1805 = vpop.f32.mrf.mxu0
  %v1806 = vadd.f32 0.0, %v1805
  %1807 = vdwg.mxu0
  %v1808 = vsel %vm730, %v1789, -inf
  %1809 = vmax.xlane.f32.xlu0 %v1808
  %v1810 = vpop.xlane.xlu0 %1809
  %v1811 = vsel %vm730, %v1791, -inf
  %1812 = vmax.xlane.f32.xlu0 %v1811
  %v1813 = vpop.xlane.xlu0 %1812
  %v1814 = vsel %vm730, %v1794, -inf
  %1815 = vmax.xlane.f32.xlu0 %v1814
  %v1816 = vpop.xlane.xlu0 %1815
  %v1817 = vsel %vm730, %v1796, -inf
  %1818 = vmax.xlane.f32.xlu0 %v1817
  %v1819 = vpop.xlane.xlu0 %1818
  %v1820 = vsel %vm730, %v1799, -inf
  %1821 = vmax.xlane.f32.xlu0 %v1820
  %v1822 = vpop.xlane.xlu0 %1821
  %v1823 = vsel %vm730, %v1801, -inf
  %1824 = vmax.xlane.f32.xlu0 %v1823
  %v1825 = vpop.xlane.xlu0 %1824
  %v1826 = vsel %vm730, %v1804, -inf
  %1827 = vmax.xlane.f32.xlu0 %v1826
  %v1828 = vpop.xlane.xlu0 %1827
  %v1829 = vsel %vm730, %v1806, -inf
  %1830 = vmax.xlane.f32.xlu0 %v1829
  %v1831 = vpop.xlane.xlu0 %1830
  %v1832 = vsub.f32 %v1789, %v1810
  %v1833 = vsub.f32 %v1791, %v1813
  %v1834 = vsub.f32 %v1794, %v1816
  %v1835 = vsub.f32 %v1796, %v1819
  %v1836 = vsub.f32 %v1799, %v1822
  %v1837 = vsub.f32 %v1801, %v1825
  %v1838 = vsub.f32 %v1804, %v1828
  %v1839 = vsub.f32 %v1806, %v1831
  %v1840 = vmul.f32 %v1832, 1.442695
  %v1841 = vpow.pop %v1840
  %v1842 = vmul.f32 %v1833, 1.442695
  %v1843 = vpow.pop %v1842
  %v1844 = vmul.f32 %v1834, 1.442695
  %v1845 = vpow.pop %v1844
  %v1846 = vmul.f32 %v1835, 1.442695
  %v1847 = vpow.pop %v1846
  %v1848 = vmul.f32 %v1836, 1.442695
  %v1849 = vpow.pop %v1848
  %v1850 = vmul.f32 %v1837, 1.442695
  %v1851 = vpow.pop %v1850
  %v1852 = vmul.f32 %v1838, 1.442695
  %v1853 = vpow.pop %v1852
  %v1854 = vmul.f32 %v1839, 1.442695
  %v1855 = vpow.pop %v1854
  %v1856 = vsel %vm730, %v1841, 0.0
  %1857 = vadd.xlane.f32.xlu0 %v1856
  %v1858 = vpop.xlane.xlu0 %1857
  %v1859 = vsel %vm730, %v1843, 0.0
  %1860 = vadd.xlane.f32.xlu0 %v1859
  %v1861 = vpop.xlane.xlu0 %1860
  %v1862 = vsel %vm730, %v1845, 0.0
  %1863 = vadd.xlane.f32.xlu0 %v1862
  %v1864 = vpop.xlane.xlu0 %1863
  %v1865 = vsel %vm730, %v1847, 0.0
  %1866 = vadd.xlane.f32.xlu0 %v1865
  %v1867 = vpop.xlane.xlu0 %1866
  %v1868 = vsel %vm730, %v1849, 0.0
  %1869 = vadd.xlane.f32.xlu0 %v1868
  %v1870 = vpop.xlane.xlu0 %1869
  %v1871 = vsel %vm730, %v1851, 0.0
  %1872 = vadd.xlane.f32.xlu0 %v1871
  %v1873 = vpop.xlane.xlu0 %1872
  %v1874 = vsel %vm730, %v1853, 0.0
  %1875 = vadd.xlane.f32.xlu0 %v1874
  %v1876 = vpop.xlane.xlu0 %1875
  %v1877 = vsel %vm730, %v1855, 0.0
  %1878 = vadd.xlane.f32.xlu0 %v1877
  %v1879 = vpop.xlane.xlu0 %1878
  %v1880 = vrcp.pop %v1858
  %v1881 = vrcp.pop %v1861
  %v1882 = vrcp.pop %v1864
  %v1883 = vrcp.pop %v1867
  %v1884 = vrcp.pop %v1870
  %v1885 = vrcp.pop %v1873
  %v1886 = vrcp.pop %v1876
  %v1887 = vrcp.pop %v1879
  %v1888 = vmul.f32 %v1841, %v1880
  %v1889 = vmul.f32 %v1843, %v1881
  %v1890 = vmul.f32 %v1845, %v1882
  %v1891 = vmul.f32 %v1847, %v1883
  %v1892 = vmul.f32 %v1849, %v1884
  %v1893 = vmul.f32 %v1851, %v1885
  %v1894 = vmul.f32 %v1853, %v1886
  %v1895 = vmul.f32 %v1855, %v1887
  %v1896 = vpack.c.bf16 %v1889, %v1888
  %v1897 = vpack.c.bf16 %v1891, %v1890
  %v1898 = vpack.c.bf16 %v1893, %v1892
  %v1899 = vpack.c.bf16 %v1895, %v1894
  %1900 = vrot.lane.b32.xlu0 %v1743, 64
  %v1901 = vpop.permute.xlu0 %1900
  %1902 = vrot.lane.b32.xlu0 %v1744, 64
  %v1903 = vpop.permute.xlu0 %1902
  %1904 = vrot.lane.b32.xlu0 %v1745, 64
  %v1905 = vpop.permute.xlu0 %1904
  %1906 = vrot.lane.b32.xlu0 %v1746, 64
  %v1907 = vpop.permute.xlu0 %1906
  %v1913 = vsel %vm730, %v1896, 0
  %v1916 = vsel %vm730, %v1897, 0
  %v1919 = vsel %vm730, %v1898, 0
  %v1922 = vsel %vm730, %v1899, 0
  %1924 = vmatpush.bf16.msra.mxu0 0
  %1925 = vmatpush.bf16.msra.mxu0 0
  %1926 = vmatpush.bf16.msra.mxu0 0
  %1927 = vmatpush.bf16.msra.mxu0 0
  %1928 = vmatpush.bf16.msra.mxu0 %v1907
  %1929 = vmatpush.bf16.msra.mxu0 %v1905
  %1930 = vmatpush.bf16.msra.mxu0 %v1903
  %1931 = vmatpush.bf16.msra.mxu0 %v1901
  %1932 = vmatmul.bf16.gmra.mxu0 %v1913
  %v1933 = vpop.f32.mrf.mxu0
  %v1934 = vadd.f32 0.0, %v1933
  %v1935 = vpop.f32.mrf.mxu0
  %v1936 = vadd.f32 0.0, %v1935
  %1937 = vmatmul.bf16.gmra.mxu0 %v1916
  %v1938 = vpop.f32.mrf.mxu0
  %v1939 = vadd.f32 0.0, %v1938
  %v1940 = vpop.f32.mrf.mxu0
  %v1941 = vadd.f32 0.0, %v1940
  %1942 = vmatmul.bf16.gmra.mxu0 %v1919
  %v1943 = vpop.f32.mrf.mxu0
  %v1944 = vadd.f32 0.0, %v1943
  %v1945 = vpop.f32.mrf.mxu0
  %v1946 = vadd.f32 0.0, %v1945
  %1947 = vmatmul.bf16.gmra.mxu0 %v1922
  %v1948 = vpop.f32.mrf.mxu0
  %v1949 = vadd.f32 0.0, %v1948
  %v1950 = vpop.f32.mrf.mxu0
  %v1951 = vadd.f32 0.0, %v1950
  %1952 = vdwg.mxu0
  %v1953 = vpack.c.bf16 %v1936, %v1934
  %v1954 = vpack.c.bf16 %v1941, %v1939
  %v1955 = vpack.c.bf16 %v1946, %v1944
  %v1956 = vpack.c.bf16 %v1951, %v1949
  %1957 = vrot.lane.b32.xlu0 %v1743, 120
  %v1958 = vpop.permute.xlu0 %1957
  %1959 = vrot.lane.b32.xlu0 %v1744, 120
  %v1960 = vpop.permute.xlu0 %1959
  %1961 = vrot.lane.b32.xlu0 %v1745, 120
  %v1962 = vpop.permute.xlu0 %1961
  %1963 = vrot.lane.b32.xlu0 %v1746, 120
  %v1964 = vpop.permute.xlu0 %1963
  %1965 = vrot.lane.b32.xlu0 %v1743, 88
  %v1966 = vpop.permute.xlu0 %1965
  %1967 = vrot.lane.b32.xlu0 %v1744, 88
  %v1968 = vpop.permute.xlu0 %1967
  %1969 = vrot.lane.b32.xlu0 %v1745, 88
  %v1970 = vpop.permute.xlu0 %1969
  %1971 = vrot.lane.b32.xlu0 %v1746, 88
  %v1972 = vpop.permute.xlu0 %1971
  %v1974 = vsel %vm676, %v1958, 0
  %v1977 = vsel %vm676, %v1960, 0
  %v1980 = vsel %vm676, %v1962, 0
  %v1983 = vsel %vm676, %v1964, 0
  %v1986 = vsel %vm676, %v1966, 0
  %v1989 = vsel %vm676, %v1968, 0
  %v1992 = vsel %vm676, %v1970, 0
  %v1995 = vsel %vm676, %v1972, 0
  %1997 = vmatpush.bf16.xpose.msra.mxu0 0
  %1998 = vmatpush.bf16.xpose.msra.mxu0 0
  %1999 = vmatpush.bf16.xpose.msra.mxu0 0
  %2000 = vmatpush.bf16.xpose.msra.mxu0 0
  %2001 = vmatpush.bf16.xpose.msra.mxu0 %v1995
  %2002 = vmatpush.bf16.xpose.msra.mxu0 %v1992
  %2003 = vmatpush.bf16.xpose.msra.mxu0 %v1989
  %2004 = vmatpush.bf16.xpose.msra.mxu0 %v1986
  %2005 = vmatmul.bf16.gmra.mxu0 %v1974
  %v2006 = vpop.f32.mrf.mxu0
  %v2007 = vadd.f32 0.0, %v2006
  %v2008 = vpop.f32.mrf.mxu0
  %v2009 = vadd.f32 0.0, %v2008
  %2010 = vmatmul.bf16.gmra.mxu0 %v1977
  %v2011 = vpop.f32.mrf.mxu0
  %v2012 = vadd.f32 0.0, %v2011
  %v2013 = vpop.f32.mrf.mxu0
  %v2014 = vadd.f32 0.0, %v2013
  %2015 = vmatmul.bf16.gmra.mxu0 %v1980
  %v2016 = vpop.f32.mrf.mxu0
  %v2017 = vadd.f32 0.0, %v2016
  %v2018 = vpop.f32.mrf.mxu0
  %v2019 = vadd.f32 0.0, %v2018
  %2020 = vmatmul.bf16.gmra.mxu0 %v1983
  %v2021 = vpop.f32.mrf.mxu0
  %v2022 = vadd.f32 0.0, %v2021
  %v2023 = vpop.f32.mrf.mxu0
  %v2024 = vadd.f32 0.0, %v2023
  %2025 = vdwg.mxu0
  %v2026 = vsel %vm730, %v2007, -inf
  %2027 = vmax.xlane.f32.xlu0 %v2026
  %v2028 = vpop.xlane.xlu0 %2027
  %v2029 = vsel %vm730, %v2009, -inf
  %2030 = vmax.xlane.f32.xlu0 %v2029
  %v2031 = vpop.xlane.xlu0 %2030
  %v2032 = vsel %vm730, %v2012, -inf
  %2033 = vmax.xlane.f32.xlu0 %v2032
  %v2034 = vpop.xlane.xlu0 %2033
  %v2035 = vsel %vm730, %v2014, -inf
  %2036 = vmax.xlane.f32.xlu0 %v2035
  %v2037 = vpop.xlane.xlu0 %2036
  %v2038 = vsel %vm730, %v2017, -inf
  %2039 = vmax.xlane.f32.xlu0 %v2038
  %v2040 = vpop.xlane.xlu0 %2039
  %v2041 = vsel %vm730, %v2019, -inf
  %2042 = vmax.xlane.f32.xlu0 %v2041
  %v2043 = vpop.xlane.xlu0 %2042
  %v2044 = vsel %vm730, %v2022, -inf
  %2045 = vmax.xlane.f32.xlu0 %v2044
  %v2046 = vpop.xlane.xlu0 %2045
  %v2047 = vsel %vm730, %v2024, -inf
  %2048 = vmax.xlane.f32.xlu0 %v2047
  %v2049 = vpop.xlane.xlu0 %2048
  %v2050 = vsub.f32 %v2007, %v2028
  %v2051 = vsub.f32 %v2009, %v2031
  %v2052 = vsub.f32 %v2012, %v2034
  %v2053 = vsub.f32 %v2014, %v2037
  %v2054 = vsub.f32 %v2017, %v2040
  %v2055 = vsub.f32 %v2019, %v2043
  %v2056 = vsub.f32 %v2022, %v2046
  %v2057 = vsub.f32 %v2024, %v2049
  %v2058 = vmul.f32 %v2050, 1.442695
  %v2059 = vpow.pop %v2058
  %v2060 = vmul.f32 %v2051, 1.442695
  %v2061 = vpow.pop %v2060
  %v2062 = vmul.f32 %v2052, 1.442695
  %v2063 = vpow.pop %v2062
  %v2064 = vmul.f32 %v2053, 1.442695
  %v2065 = vpow.pop %v2064
  %v2066 = vmul.f32 %v2054, 1.442695
  %v2067 = vpow.pop %v2066
  %v2068 = vmul.f32 %v2055, 1.442695
  %v2069 = vpow.pop %v2068
  %v2070 = vmul.f32 %v2056, 1.442695
  %v2071 = vpow.pop %v2070
  %v2072 = vmul.f32 %v2057, 1.442695
  %v2073 = vpow.pop %v2072
  %v2074 = vsel %vm730, %v2059, 0.0
  %2075 = vadd.xlane.f32.xlu0 %v2074
  %v2076 = vpop.xlane.xlu0 %2075
  %v2077 = vsel %vm730, %v2061, 0.0
  %2078 = vadd.xlane.f32.xlu0 %v2077
  %v2079 = vpop.xlane.xlu0 %2078
  %v2080 = vsel %vm730, %v2063, 0.0
  %2081 = vadd.xlane.f32.xlu0 %v2080
  %v2082 = vpop.xlane.xlu0 %2081
  %v2083 = vsel %vm730, %v2065, 0.0
  %2084 = vadd.xlane.f32.xlu0 %v2083
  %v2085 = vpop.xlane.xlu0 %2084
  %v2086 = vsel %vm730, %v2067, 0.0
  %2087 = vadd.xlane.f32.xlu0 %v2086
  %v2088 = vpop.xlane.xlu0 %2087
  %v2089 = vsel %vm730, %v2069, 0.0
  %2090 = vadd.xlane.f32.xlu0 %v2089
  %v2091 = vpop.xlane.xlu0 %2090
  %v2092 = vsel %vm730, %v2071, 0.0
  %2093 = vadd.xlane.f32.xlu0 %v2092
  %v2094 = vpop.xlane.xlu0 %2093
  %v2095 = vsel %vm730, %v2073, 0.0
  %2096 = vadd.xlane.f32.xlu0 %v2095
  %v2097 = vpop.xlane.xlu0 %2096
  %v2098 = vrcp.pop %v2076
  %v2099 = vrcp.pop %v2079
  %v2100 = vrcp.pop %v2082
  %v2101 = vrcp.pop %v2085
  %v2102 = vrcp.pop %v2088
  %v2103 = vrcp.pop %v2091
  %v2104 = vrcp.pop %v2094
  %v2105 = vrcp.pop %v2097
  %v2106 = vmul.f32 %v2059, %v2098
  %v2107 = vmul.f32 %v2061, %v2099
  %v2108 = vmul.f32 %v2063, %v2100
  %v2109 = vmul.f32 %v2065, %v2101
  %v2110 = vmul.f32 %v2067, %v2102
  %v2111 = vmul.f32 %v2069, %v2103
  %v2112 = vmul.f32 %v2071, %v2104
  %v2113 = vmul.f32 %v2073, %v2105
  %v2114 = vpack.c.bf16 %v2107, %v2106
  %v2115 = vpack.c.bf16 %v2109, %v2108
  %v2116 = vpack.c.bf16 %v2111, %v2110
  %v2117 = vpack.c.bf16 %v2113, %v2112
  %2118 = vrot.lane.b32.xlu0 %v1743, 56
  %v2119 = vpop.permute.xlu0 %2118
  %2120 = vrot.lane.b32.xlu0 %v1744, 56
  %v2121 = vpop.permute.xlu0 %2120
  %2122 = vrot.lane.b32.xlu0 %v1745, 56
  %v2123 = vpop.permute.xlu0 %2122
  %2124 = vrot.lane.b32.xlu0 %v1746, 56
  %v2125 = vpop.permute.xlu0 %2124
  %v2131 = vsel %vm730, %v2114, 0
  %v2134 = vsel %vm730, %v2115, 0
  %v2137 = vsel %vm730, %v2116, 0
  %v2140 = vsel %vm730, %v2117, 0
  %2142 = vmatpush.bf16.msra.mxu0 0
  %2143 = vmatpush.bf16.msra.mxu0 0
  %2144 = vmatpush.bf16.msra.mxu0 0
  %2145 = vmatpush.bf16.msra.mxu0 0
  %2146 = vmatpush.bf16.msra.mxu0 %v2125
  %2147 = vmatpush.bf16.msra.mxu0 %v2123
  %2148 = vmatpush.bf16.msra.mxu0 %v2121
  %2149 = vmatpush.bf16.msra.mxu0 %v2119
  %2150 = vmatmul.bf16.gmra.mxu0 %v2131
  %v2151 = vpop.f32.mrf.mxu0
  %v2152 = vadd.f32 0.0, %v2151
  %v2153 = vpop.f32.mrf.mxu0
  %v2154 = vadd.f32 0.0, %v2153
  %2155 = vmatmul.bf16.gmra.mxu0 %v2134
  %v2156 = vpop.f32.mrf.mxu0
  %v2157 = vadd.f32 0.0, %v2156
  %v2158 = vpop.f32.mrf.mxu0
  %v2159 = vadd.f32 0.0, %v2158
  %2160 = vmatmul.bf16.gmra.mxu0 %v2137
  %v2161 = vpop.f32.mrf.mxu0
  %v2162 = vadd.f32 0.0, %v2161
  %v2163 = vpop.f32.mrf.mxu0
  %v2164 = vadd.f32 0.0, %v2163
  %2165 = vmatmul.bf16.gmra.mxu0 %v2140
  %v2166 = vpop.f32.mrf.mxu0
  %v2167 = vadd.f32 0.0, %v2166
  %v2168 = vpop.f32.mrf.mxu0
  %v2169 = vadd.f32 0.0, %v2168
  %2170 = vdwg.mxu0
  %v2171 = vpack.c.bf16 %v2154, %v2152
  %v2172 = vpack.c.bf16 %v2159, %v2157
  %v2173 = vpack.c.bf16 %v2164, %v2162
  %v2174 = vpack.c.bf16 %v2169, %v2167
  %v2176 = vsel %vm676, %v2171, 0
  %v2179 = vsel %vm676, %v2172, 0
  %v2182 = vsel %vm676, %v2173, 0
  %v2185 = vsel %vm676, %v2174, 0
  %2187 = vmatpush.bf16.msra.mxu0 0
  %2188 = vmatpush.bf16.msra.mxu0 0
  %2189 = vmatpush.bf16.msra.mxu0 0
  %2190 = vmatpush.bf16.msra.mxu0 0
  %2191 = vmatpush.bf16.msra.mxu0 0
  %2192 = vmatpush.bf16.msra.mxu0 0
  %2193 = vmatpush.bf16.msra.mxu0 0
  %2194 = vmatpush.bf16.msra.mxu0 %v1112
  %2195 = vmatmul.bf16.gmra.mxu0 %v2176
  %v2196 = vpop.f32.mrf.mxu0
  %v2197 = vadd.f32 0.0, %v2196
  %v2198 = vpop.f32.mrf.mxu0
  %v2199 = vadd.f32 0.0, %v2198
  %2200 = vmatmul.bf16.gmra.mxu0 %v2179
  %v2201 = vpop.f32.mrf.mxu0
  %v2202 = vadd.f32 0.0, %v2201
  %v2203 = vpop.f32.mrf.mxu0
  %v2204 = vadd.f32 0.0, %v2203
  %2205 = vmatmul.bf16.gmra.mxu0 %v2182
  %v2206 = vpop.f32.mrf.mxu0
  %v2207 = vadd.f32 0.0, %v2206
  %v2208 = vpop.f32.mrf.mxu0
  %v2209 = vadd.f32 0.0, %v2208
  %2210 = vmatmul.bf16.gmra.mxu0 %v2185
  %v2211 = vpop.f32.mrf.mxu0
  %v2212 = vadd.f32 0.0, %v2211
  %v2213 = vpop.f32.mrf.mxu0
  %v2214 = vadd.f32 0.0, %v2213
  %2215 = vdwg.mxu0
  %v2217 = vsel %vm676, %v1953, 0
  %v2220 = vsel %vm676, %v1954, 0
  %v2223 = vsel %vm676, %v1955, 0
  %v2226 = vsel %vm676, %v1956, 0
  %2228 = vmatpush.bf16.msra.mxu0 0
  %2229 = vmatpush.bf16.msra.mxu0 0
  %2230 = vmatpush.bf16.msra.mxu0 0
  %2231 = vmatpush.bf16.msra.mxu0 0
  %2232 = vmatpush.bf16.msra.mxu0 0
  %2233 = vmatpush.bf16.msra.mxu0 0
  %2234 = vmatpush.bf16.msra.mxu0 0
  %2235 = vmatpush.bf16.msra.mxu0 %v1156
  %2236 = vmatmul.bf16.gmra.mxu0 %v2217
  %v2237 = vpop.f32.mrf.mxu0
  %v2238 = vadd.f32 %v2197, %v2237
  %v2239 = vpop.f32.mrf.mxu0
  %v2240 = vadd.f32 %v2199, %v2239
  %2241 = vmatmul.bf16.gmra.mxu0 %v2220
  %v2242 = vpop.f32.mrf.mxu0
  %v2243 = vadd.f32 %v2202, %v2242
  %v2244 = vpop.f32.mrf.mxu0
  %v2245 = vadd.f32 %v2204, %v2244
  %2246 = vmatmul.bf16.gmra.mxu0 %v2223
  %v2247 = vpop.f32.mrf.mxu0
  %v2248 = vadd.f32 %v2207, %v2247
  %v2249 = vpop.f32.mrf.mxu0
  %v2250 = vadd.f32 %v2209, %v2249
  %2251 = vmatmul.bf16.gmra.mxu0 %v2226
  %v2252 = vpop.f32.mrf.mxu0
  %v2253 = vadd.f32 %v2212, %v2252
  %v2254 = vpop.f32.mrf.mxu0
  %v2255 = vadd.f32 %v2214, %v2254
  %2256 = vdwg.mxu0
  %2257 = vrot.lane.b32.xlu0 %v1743, 112
  %v2258 = vpop.permute.xlu0 %2257
  %2259 = vrot.lane.b32.xlu0 %v1744, 112
  %v2260 = vpop.permute.xlu0 %2259
  %2261 = vrot.lane.b32.xlu0 %v1745, 112
  %v2262 = vpop.permute.xlu0 %2261
  %2263 = vrot.lane.b32.xlu0 %v1746, 112
  %v2264 = vpop.permute.xlu0 %2263
  %2265 = vrot.lane.b32.xlu0 %v1743, 80
  %v2266 = vpop.permute.xlu0 %2265
  %2267 = vrot.lane.b32.xlu0 %v1744, 80
  %v2268 = vpop.permute.xlu0 %2267
  %2269 = vrot.lane.b32.xlu0 %v1745, 80
  %v2270 = vpop.permute.xlu0 %2269
  %2271 = vrot.lane.b32.xlu0 %v1746, 80
  %v2272 = vpop.permute.xlu0 %2271
  %v2274 = vsel %vm676, %v2258, 0
  %v2277 = vsel %vm676, %v2260, 0
  %v2280 = vsel %vm676, %v2262, 0
  %v2283 = vsel %vm676, %v2264, 0
  %v2286 = vsel %vm676, %v2266, 0
  %v2289 = vsel %vm676, %v2268, 0
  %v2292 = vsel %vm676, %v2270, 0
  %v2295 = vsel %vm676, %v2272, 0
  %2297 = vmatpush.bf16.xpose.msra.mxu0 0
  %2298 = vmatpush.bf16.xpose.msra.mxu0 0
  %2299 = vmatpush.bf16.xpose.msra.mxu0 0
  %2300 = vmatpush.bf16.xpose.msra.mxu0 0
  %2301 = vmatpush.bf16.xpose.msra.mxu0 %v2295
  %2302 = vmatpush.bf16.xpose.msra.mxu0 %v2292
  %2303 = vmatpush.bf16.xpose.msra.mxu0 %v2289
  %2304 = vmatpush.bf16.xpose.msra.mxu0 %v2286
  %2305 = vmatmul.bf16.gmra.mxu0 %v2274
  %v2306 = vpop.f32.mrf.mxu0
  %v2307 = vadd.f32 0.0, %v2306
  %v2308 = vpop.f32.mrf.mxu0
  %v2309 = vadd.f32 0.0, %v2308
  %2310 = vmatmul.bf16.gmra.mxu0 %v2277
  %v2311 = vpop.f32.mrf.mxu0
  %v2312 = vadd.f32 0.0, %v2311
  %v2313 = vpop.f32.mrf.mxu0
  %v2314 = vadd.f32 0.0, %v2313
  %2315 = vmatmul.bf16.gmra.mxu0 %v2280
  %v2316 = vpop.f32.mrf.mxu0
  %v2317 = vadd.f32 0.0, %v2316
  %v2318 = vpop.f32.mrf.mxu0
  %v2319 = vadd.f32 0.0, %v2318
  %2320 = vmatmul.bf16.gmra.mxu0 %v2283
  %v2321 = vpop.f32.mrf.mxu0
  %v2322 = vadd.f32 0.0, %v2321
  %v2323 = vpop.f32.mrf.mxu0
  %v2324 = vadd.f32 0.0, %v2323
  %2325 = vdwg.mxu0
  %v2326 = vsel %vm730, %v2307, -inf
  %2327 = vmax.xlane.f32.xlu0 %v2326
  %v2328 = vpop.xlane.xlu0 %2327
  %v2329 = vsel %vm730, %v2309, -inf
  %2330 = vmax.xlane.f32.xlu0 %v2329
  %v2331 = vpop.xlane.xlu0 %2330
  %v2332 = vsel %vm730, %v2312, -inf
  %2333 = vmax.xlane.f32.xlu0 %v2332
  %v2334 = vpop.xlane.xlu0 %2333
  %v2335 = vsel %vm730, %v2314, -inf
  %2336 = vmax.xlane.f32.xlu0 %v2335
  %v2337 = vpop.xlane.xlu0 %2336
  %v2338 = vsel %vm730, %v2317, -inf
  %2339 = vmax.xlane.f32.xlu0 %v2338
  %v2340 = vpop.xlane.xlu0 %2339
  %v2341 = vsel %vm730, %v2319, -inf
  %2342 = vmax.xlane.f32.xlu0 %v2341
  %v2343 = vpop.xlane.xlu0 %2342
  %v2344 = vsel %vm730, %v2322, -inf
  %2345 = vmax.xlane.f32.xlu0 %v2344
  %v2346 = vpop.xlane.xlu0 %2345
  %v2347 = vsel %vm730, %v2324, -inf
  %2348 = vmax.xlane.f32.xlu0 %v2347
  %v2349 = vpop.xlane.xlu0 %2348
  %v2350 = vsub.f32 %v2307, %v2328
  %v2351 = vsub.f32 %v2309, %v2331
  %v2352 = vsub.f32 %v2312, %v2334
  %v2353 = vsub.f32 %v2314, %v2337
  %v2354 = vsub.f32 %v2317, %v2340
  %v2355 = vsub.f32 %v2319, %v2343
  %v2356 = vsub.f32 %v2322, %v2346
  %v2357 = vsub.f32 %v2324, %v2349
  %v2358 = vmul.f32 %v2350, 1.442695
  %v2359 = vpow.pop %v2358
  %v2360 = vmul.f32 %v2351, 1.442695
  %v2361 = vpow.pop %v2360
  %v2362 = vmul.f32 %v2352, 1.442695
  %v2363 = vpow.pop %v2362
  %v2364 = vmul.f32 %v2353, 1.442695
  %v2365 = vpow.pop %v2364
  %v2366 = vmul.f32 %v2354, 1.442695
  %v2367 = vpow.pop %v2366
  %v2368 = vmul.f32 %v2355, 1.442695
  %v2369 = vpow.pop %v2368
  %v2370 = vmul.f32 %v2356, 1.442695
  %v2371 = vpow.pop %v2370
  %v2372 = vmul.f32 %v2357, 1.442695
  %v2373 = vpow.pop %v2372
  %v2374 = vsel %vm730, %v2359, 0.0
  %2375 = vadd.xlane.f32.xlu0 %v2374
  %v2376 = vpop.xlane.xlu0 %2375
  %v2377 = vsel %vm730, %v2361, 0.0
  %2378 = vadd.xlane.f32.xlu0 %v2377
  %v2379 = vpop.xlane.xlu0 %2378
  %v2380 = vsel %vm730, %v2363, 0.0
  %2381 = vadd.xlane.f32.xlu0 %v2380
  %v2382 = vpop.xlane.xlu0 %2381
  %v2383 = vsel %vm730, %v2365, 0.0
  %2384 = vadd.xlane.f32.xlu0 %v2383
  %v2385 = vpop.xlane.xlu0 %2384
  %v2386 = vsel %vm730, %v2367, 0.0
  %2387 = vadd.xlane.f32.xlu0 %v2386
  %v2388 = vpop.xlane.xlu0 %2387
  %v2389 = vsel %vm730, %v2369, 0.0
  %2390 = vadd.xlane.f32.xlu0 %v2389
  %v2391 = vpop.xlane.xlu0 %2390
  %v2392 = vsel %vm730, %v2371, 0.0
  %2393 = vadd.xlane.f32.xlu0 %v2392
  %v2394 = vpop.xlane.xlu0 %2393
  %v2395 = vsel %vm730, %v2373, 0.0
  %2396 = vadd.xlane.f32.xlu0 %v2395
  %v2397 = vpop.xlane.xlu0 %2396
  %v2398 = vrcp.pop %v2376
  %v2399 = vrcp.pop %v2379
  %v2400 = vrcp.pop %v2382
  %v2401 = vrcp.pop %v2385
  %v2402 = vrcp.pop %v2388
  %v2403 = vrcp.pop %v2391
  %v2404 = vrcp.pop %v2394
  %v2405 = vrcp.pop %v2397
  %v2406 = vmul.f32 %v2359, %v2398
  %v2407 = vmul.f32 %v2361, %v2399
  %v2408 = vmul.f32 %v2363, %v2400
  %v2409 = vmul.f32 %v2365, %v2401
  %v2410 = vmul.f32 %v2367, %v2402
  %v2411 = vmul.f32 %v2369, %v2403
  %v2412 = vmul.f32 %v2371, %v2404
  %v2413 = vmul.f32 %v2373, %v2405
  %v2414 = vpack.c.bf16 %v2407, %v2406
  %v2415 = vpack.c.bf16 %v2409, %v2408
  %v2416 = vpack.c.bf16 %v2411, %v2410
  %v2417 = vpack.c.bf16 %v2413, %v2412
  %2418 = vrot.lane.b32.xlu0 %v1743, 48
  %v2419 = vpop.permute.xlu0 %2418
  %2420 = vrot.lane.b32.xlu0 %v1744, 48
  %v2421 = vpop.permute.xlu0 %2420
  %2422 = vrot.lane.b32.xlu0 %v1745, 48
  %v2423 = vpop.permute.xlu0 %2422
  %2424 = vrot.lane.b32.xlu0 %v1746, 48
  %v2425 = vpop.permute.xlu0 %2424
  %v2431 = vsel %vm730, %v2414, 0
  %v2434 = vsel %vm730, %v2415, 0
  %v2437 = vsel %vm730, %v2416, 0
  %v2440 = vsel %vm730, %v2417, 0
  %2442 = vmatpush.bf16.msra.mxu0 0
  %2443 = vmatpush.bf16.msra.mxu0 0
  %2444 = vmatpush.bf16.msra.mxu0 0
  %2445 = vmatpush.bf16.msra.mxu0 0
  %2446 = vmatpush.bf16.msra.mxu0 %v2425
  %2447 = vmatpush.bf16.msra.mxu0 %v2423
  %2448 = vmatpush.bf16.msra.mxu0 %v2421
  %2449 = vmatpush.bf16.msra.mxu0 %v2419
  %2450 = vmatmul.bf16.gmra.mxu0 %v2431
  %v2451 = vpop.f32.mrf.mxu0
  %v2452 = vadd.f32 0.0, %v2451
  %v2453 = vpop.f32.mrf.mxu0
  %v2454 = vadd.f32 0.0, %v2453
  %2455 = vmatmul.bf16.gmra.mxu0 %v2434
  %v2456 = vpop.f32.mrf.mxu0
  %v2457 = vadd.f32 0.0, %v2456
  %v2458 = vpop.f32.mrf.mxu0
  %v2459 = vadd.f32 0.0, %v2458
  %2460 = vmatmul.bf16.gmra.mxu0 %v2437
  %v2461 = vpop.f32.mrf.mxu0
  %v2462 = vadd.f32 0.0, %v2461
  %v2463 = vpop.f32.mrf.mxu0
  %v2464 = vadd.f32 0.0, %v2463
  %2465 = vmatmul.bf16.gmra.mxu0 %v2440
  %v2466 = vpop.f32.mrf.mxu0
  %v2467 = vadd.f32 0.0, %v2466
  %v2468 = vpop.f32.mrf.mxu0
  %v2469 = vadd.f32 0.0, %v2468
  %2470 = vdwg.mxu0
  %v2471 = vpack.c.bf16 %v2454, %v2452
  %v2472 = vpack.c.bf16 %v2459, %v2457
  %v2473 = vpack.c.bf16 %v2464, %v2462
  %v2474 = vpack.c.bf16 %v2469, %v2467
  %v2476 = vsel %vm676, %v2471, 0
  %v2479 = vsel %vm676, %v2472, 0
  %v2482 = vsel %vm676, %v2473, 0
  %v2485 = vsel %vm676, %v2474, 0
  %2487 = vmatpush.bf16.msra.mxu0 0
  %2488 = vmatpush.bf16.msra.mxu0 0
  %2489 = vmatpush.bf16.msra.mxu0 0
  %2490 = vmatpush.bf16.msra.mxu0 0
  %2491 = vmatpush.bf16.msra.mxu0 0
  %2492 = vmatpush.bf16.msra.mxu0 0
  %2493 = vmatpush.bf16.msra.mxu0 0
  %2494 = vmatpush.bf16.msra.mxu0 %v1418
  %2495 = vmatmul.bf16.gmra.mxu0 %v2476
  %v2496 = vpop.f32.mrf.mxu0
  %v2497 = vadd.f32 0.0, %v2496
  %v2498 = vpop.f32.mrf.mxu0
  %v2499 = vadd.f32 0.0, %v2498
  %2500 = vmatmul.bf16.gmra.mxu0 %v2479
  %v2501 = vpop.f32.mrf.mxu0
  %v2502 = vadd.f32 0.0, %v2501
  %v2503 = vpop.f32.mrf.mxu0
  %v2504 = vadd.f32 0.0, %v2503
  %2505 = vmatmul.bf16.gmra.mxu0 %v2482
  %v2506 = vpop.f32.mrf.mxu0
  %v2507 = vadd.f32 0.0, %v2506
  %v2508 = vpop.f32.mrf.mxu0
  %v2509 = vadd.f32 0.0, %v2508
  %2510 = vmatmul.bf16.gmra.mxu0 %v2485
  %v2511 = vpop.f32.mrf.mxu0
  %v2512 = vadd.f32 0.0, %v2511
  %v2513 = vpop.f32.mrf.mxu0
  %v2514 = vadd.f32 0.0, %v2513
  %2515 = vdwg.mxu0
  %v2516 = vadd.f32 %v2238, %v2497
  %v2517 = vadd.f32 %v2240, %v2499
  %v2518 = vadd.f32 %v2243, %v2502
  %v2519 = vadd.f32 %v2245, %v2504
  %v2520 = vadd.f32 %v2248, %v2507
  %v2521 = vadd.f32 %v2250, %v2509
  %v2522 = vadd.f32 %v2253, %v2512
  %v2523 = vadd.f32 %v2255, %v2514
  %2524 = vrot.lane.b32.xlu0 %v1743, 104
  %v2525 = vpop.permute.xlu0 %2524
  %2526 = vrot.lane.b32.xlu0 %v1744, 104
  %v2527 = vpop.permute.xlu0 %2526
  %2528 = vrot.lane.b32.xlu0 %v1745, 104
  %v2529 = vpop.permute.xlu0 %2528
  %2530 = vrot.lane.b32.xlu0 %v1746, 104
  %v2531 = vpop.permute.xlu0 %2530
  %2532 = vrot.lane.b32.xlu0 %v1743, 72
  %v2533 = vpop.permute.xlu0 %2532
  %2534 = vrot.lane.b32.xlu0 %v1744, 72
  %v2535 = vpop.permute.xlu0 %2534
  %2536 = vrot.lane.b32.xlu0 %v1745, 72
  %v2537 = vpop.permute.xlu0 %2536
  %2538 = vrot.lane.b32.xlu0 %v1746, 72
  %v2539 = vpop.permute.xlu0 %2538
  %v2541 = vsel %vm676, %v2525, 0
  %v2544 = vsel %vm676, %v2527, 0
  %v2547 = vsel %vm676, %v2529, 0
  %v2550 = vsel %vm676, %v2531, 0
  %v2553 = vsel %vm676, %v2533, 0
  %v2556 = vsel %vm676, %v2535, 0
  %v2559 = vsel %vm676, %v2537, 0
  %v2562 = vsel %vm676, %v2539, 0
  %2564 = vmatpush.bf16.xpose.msra.mxu0 0
  %2565 = vmatpush.bf16.xpose.msra.mxu0 0
  %2566 = vmatpush.bf16.xpose.msra.mxu0 0
  %2567 = vmatpush.bf16.xpose.msra.mxu0 0
  %2568 = vmatpush.bf16.xpose.msra.mxu0 %v2562
  %2569 = vmatpush.bf16.xpose.msra.mxu0 %v2559
  %2570 = vmatpush.bf16.xpose.msra.mxu0 %v2556
  %2571 = vmatpush.bf16.xpose.msra.mxu0 %v2553
  %2572 = vmatmul.bf16.gmra.mxu0 %v2541
  %v2573 = vpop.f32.mrf.mxu0
  %v2574 = vadd.f32 0.0, %v2573
  %v2575 = vpop.f32.mrf.mxu0
  %v2576 = vadd.f32 0.0, %v2575
  %2577 = vmatmul.bf16.gmra.mxu0 %v2544
  %v2578 = vpop.f32.mrf.mxu0
  %v2579 = vadd.f32 0.0, %v2578
  %v2580 = vpop.f32.mrf.mxu0
  %v2581 = vadd.f32 0.0, %v2580
  %2582 = vmatmul.bf16.gmra.mxu0 %v2547
  %v2583 = vpop.f32.mrf.mxu0
  %v2584 = vadd.f32 0.0, %v2583
  %v2585 = vpop.f32.mrf.mxu0
  %v2586 = vadd.f32 0.0, %v2585
  %2587 = vmatmul.bf16.gmra.mxu0 %v2550
  %v2588 = vpop.f32.mrf.mxu0
  %v2589 = vadd.f32 0.0, %v2588
  %v2590 = vpop.f32.mrf.mxu0
  %v2591 = vadd.f32 0.0, %v2590
  %2592 = vdwg.mxu0
  %v2593 = vsel %vm730, %v2574, -inf
  %2594 = vmax.xlane.f32.xlu0 %v2593
  %v2595 = vpop.xlane.xlu0 %2594
  %v2596 = vsel %vm730, %v2576, -inf
  %2597 = vmax.xlane.f32.xlu0 %v2596
  %v2598 = vpop.xlane.xlu0 %2597
  %v2599 = vsel %vm730, %v2579, -inf
  %2600 = vmax.xlane.f32.xlu0 %v2599
  %v2601 = vpop.xlane.xlu0 %2600
  %v2602 = vsel %vm730, %v2581, -inf
  %2603 = vmax.xlane.f32.xlu0 %v2602
  %v2604 = vpop.xlane.xlu0 %2603
  %v2605 = vsel %vm730, %v2584, -inf
  %2606 = vmax.xlane.f32.xlu0 %v2605
  %v2607 = vpop.xlane.xlu0 %2606
  %v2608 = vsel %vm730, %v2586, -inf
  %2609 = vmax.xlane.f32.xlu0 %v2608
  %v2610 = vpop.xlane.xlu0 %2609
  %v2611 = vsel %vm730, %v2589, -inf
  %2612 = vmax.xlane.f32.xlu0 %v2611
  %v2613 = vpop.xlane.xlu0 %2612
  %v2614 = vsel %vm730, %v2591, -inf
  %2615 = vmax.xlane.f32.xlu0 %v2614
  %v2616 = vpop.xlane.xlu0 %2615
  %v2617 = vsub.f32 %v2574, %v2595
  %v2618 = vsub.f32 %v2576, %v2598
  %v2619 = vsub.f32 %v2579, %v2601
  %v2620 = vsub.f32 %v2581, %v2604
  %v2621 = vsub.f32 %v2584, %v2607
  %v2622 = vsub.f32 %v2586, %v2610
  %v2623 = vsub.f32 %v2589, %v2613
  %v2624 = vsub.f32 %v2591, %v2616
  %v2625 = vmul.f32 %v2617, 1.442695
  %v2626 = vpow.pop %v2625
  %v2627 = vmul.f32 %v2618, 1.442695
  %v2628 = vpow.pop %v2627
  %v2629 = vmul.f32 %v2619, 1.442695
  %v2630 = vpow.pop %v2629
  %v2631 = vmul.f32 %v2620, 1.442695
  %v2632 = vpow.pop %v2631
  %v2633 = vmul.f32 %v2621, 1.442695
  %v2634 = vpow.pop %v2633
  %v2635 = vmul.f32 %v2622, 1.442695
  %v2636 = vpow.pop %v2635
  %v2637 = vmul.f32 %v2623, 1.442695
  %v2638 = vpow.pop %v2637
  %v2639 = vmul.f32 %v2624, 1.442695
  %v2640 = vpow.pop %v2639
  %v2641 = vsel %vm730, %v2626, 0.0
  %2642 = vadd.xlane.f32.xlu0 %v2641
  %v2643 = vpop.xlane.xlu0 %2642
  %v2644 = vsel %vm730, %v2628, 0.0
  %2645 = vadd.xlane.f32.xlu0 %v2644
  %v2646 = vpop.xlane.xlu0 %2645
  %v2647 = vsel %vm730, %v2630, 0.0
  %2648 = vadd.xlane.f32.xlu0 %v2647
  %v2649 = vpop.xlane.xlu0 %2648
  %v2650 = vsel %vm730, %v2632, 0.0
  %2651 = vadd.xlane.f32.xlu0 %v2650
  %v2652 = vpop.xlane.xlu0 %2651
  %v2653 = vsel %vm730, %v2634, 0.0
  %2654 = vadd.xlane.f32.xlu0 %v2653
  %v2655 = vpop.xlane.xlu0 %2654
  %v2656 = vsel %vm730, %v2636, 0.0
  %2657 = vadd.xlane.f32.xlu0 %v2656
  %v2658 = vpop.xlane.xlu0 %2657
  %v2659 = vsel %vm730, %v2638, 0.0
  %2660 = vadd.xlane.f32.xlu0 %v2659
  %v2661 = vpop.xlane.xlu0 %2660
  %v2662 = vsel %vm730, %v2640, 0.0
  %2663 = vadd.xlane.f32.xlu0 %v2662
  %v2664 = vpop.xlane.xlu0 %2663
  %v2665 = vrcp.pop %v2643
  %v2666 = vrcp.pop %v2646
  %v2667 = vrcp.pop %v2649
  %v2668 = vrcp.pop %v2652
  %v2669 = vrcp.pop %v2655
  %v2670 = vrcp.pop %v2658
  %v2671 = vrcp.pop %v2661
  %v2672 = vrcp.pop %v2664
  %v2673 = vmul.f32 %v2626, %v2665
  %v2674 = vmul.f32 %v2628, %v2666
  %v2675 = vmul.f32 %v2630, %v2667
  %v2676 = vmul.f32 %v2632, %v2668
  %v2677 = vmul.f32 %v2634, %v2669
  %v2678 = vmul.f32 %v2636, %v2670
  %v2679 = vmul.f32 %v2638, %v2671
  %v2680 = vmul.f32 %v2640, %v2672
  %v2681 = vpack.c.bf16 %v2674, %v2673
  %v2682 = vpack.c.bf16 %v2676, %v2675
  %v2683 = vpack.c.bf16 %v2678, %v2677
  %v2684 = vpack.c.bf16 %v2680, %v2679
  %2685 = vrot.lane.b32.xlu0 %v1743, 40
  %v2686 = vpop.permute.xlu0 %2685
  %2687 = vrot.lane.b32.xlu0 %v1744, 40
  %v2688 = vpop.permute.xlu0 %2687
  %2689 = vrot.lane.b32.xlu0 %v1745, 40
  %v2690 = vpop.permute.xlu0 %2689
  %2691 = vrot.lane.b32.xlu0 %v1746, 40
  %v2692 = vpop.permute.xlu0 %2691
  %v2698 = vsel %vm730, %v2681, 0
  %v2701 = vsel %vm730, %v2682, 0
  %v2704 = vsel %vm730, %v2683, 0
  %v2707 = vsel %vm730, %v2684, 0
  %2709 = vmatpush.bf16.msra.mxu0 0
  %2710 = vmatpush.bf16.msra.mxu0 0
  %2711 = vmatpush.bf16.msra.mxu0 0
  %2712 = vmatpush.bf16.msra.mxu0 0
  %2713 = vmatpush.bf16.msra.mxu0 %v2692
  %2714 = vmatpush.bf16.msra.mxu0 %v2690
  %2715 = vmatpush.bf16.msra.mxu0 %v2688
  %2716 = vmatpush.bf16.msra.mxu0 %v2686
  %2717 = vmatmul.bf16.gmra.mxu0 %v2698
  %v2718 = vpop.f32.mrf.mxu0
  %v2719 = vadd.f32 0.0, %v2718
  %v2720 = vpop.f32.mrf.mxu0
  %v2721 = vadd.f32 0.0, %v2720
  %2722 = vmatmul.bf16.gmra.mxu0 %v2701
  %v2723 = vpop.f32.mrf.mxu0
  %v2724 = vadd.f32 0.0, %v2723
  %v2725 = vpop.f32.mrf.mxu0
  %v2726 = vadd.f32 0.0, %v2725
  %2727 = vmatmul.bf16.gmra.mxu0 %v2704
  %v2728 = vpop.f32.mrf.mxu0
  %v2729 = vadd.f32 0.0, %v2728
  %v2730 = vpop.f32.mrf.mxu0
  %v2731 = vadd.f32 0.0, %v2730
  %2732 = vmatmul.bf16.gmra.mxu0 %v2707
  %v2733 = vpop.f32.mrf.mxu0
  %v2734 = vadd.f32 0.0, %v2733
  %v2735 = vpop.f32.mrf.mxu0
  %v2736 = vadd.f32 0.0, %v2735
  %2737 = vdwg.mxu0
  %v2738 = vpack.c.bf16 %v2721, %v2719
  %v2739 = vpack.c.bf16 %v2726, %v2724
  %v2740 = vpack.c.bf16 %v2731, %v2729
  %v2741 = vpack.c.bf16 %v2736, %v2734
  %v2743 = vsel %vm676, %v2738, 0
  %v2746 = vsel %vm676, %v2739, 0
  %v2749 = vsel %vm676, %v2740, 0
  %v2752 = vsel %vm676, %v2741, 0
  %2754 = vmatpush.bf16.msra.mxu0 0
  %2755 = vmatpush.bf16.msra.mxu0 0
  %2756 = vmatpush.bf16.msra.mxu0 0
  %2757 = vmatpush.bf16.msra.mxu0 0
  %2758 = vmatpush.bf16.msra.mxu0 0
  %2759 = vmatpush.bf16.msra.mxu0 0
  %2760 = vmatpush.bf16.msra.mxu0 0
  %2761 = vmatpush.bf16.msra.mxu0 %v1688
  %2762 = vmatmul.bf16.gmra.mxu0 %v2743
  %v2763 = vpop.f32.mrf.mxu0
  %v2764 = vadd.f32 0.0, %v2763
  %v2765 = vpop.f32.mrf.mxu0
  %v2766 = vadd.f32 0.0, %v2765
  %2767 = vmatmul.bf16.gmra.mxu0 %v2746
  %v2768 = vpop.f32.mrf.mxu0
  %v2769 = vadd.f32 0.0, %v2768
  %v2770 = vpop.f32.mrf.mxu0
  %v2771 = vadd.f32 0.0, %v2770
  %2772 = vmatmul.bf16.gmra.mxu0 %v2749
  %v2773 = vpop.f32.mrf.mxu0
  %v2774 = vadd.f32 0.0, %v2773
  %v2775 = vpop.f32.mrf.mxu0
  %v2776 = vadd.f32 0.0, %v2775
  %2777 = vmatmul.bf16.gmra.mxu0 %v2752
  %v2778 = vpop.f32.mrf.mxu0
  %v2779 = vadd.f32 0.0, %v2778
  %v2780 = vpop.f32.mrf.mxu0
  %v2781 = vadd.f32 0.0, %v2780
  %2782 = vdwg.mxu0
  %v2783 = vadd.f32 %v2516, %v2764
  %v2784 = vadd.f32 %v2517, %v2766
  %v2785 = vadd.f32 %v2518, %v2769
  %v2786 = vadd.f32 %v2519, %v2771
  %v2787 = vadd.f32 %v2520, %v2774
  %v2788 = vadd.f32 %v2521, %v2776
  %v2789 = vadd.f32 %v2522, %v2779
  %v2790 = vadd.f32 %v2523, %v2781
  %v2791 = vperm.slane %v27, 4
  %v2792 = vadd.f32 %v1719, %v2791
  %v2793 = vadd.f32 %v1720, %v2791
  %v2794 = vadd.f32 %v1721, %v2791
  %v2795 = vadd.f32 %v1722, %v2791
  %v2796 = vadd.f32 %v1723, %v2791
  %v2797 = vadd.f32 %v1724, %v2791
  %v2798 = vadd.f32 %v1725, %v2791
  %v2799 = vadd.f32 %v1726, %v2791
  %v2800 = vadd.f32 %v2783, %v2791
  %v2801 = vadd.f32 %v2784, %v2791
  %v2802 = vadd.f32 %v2785, %v2791
  %v2803 = vadd.f32 %v2786, %v2791
  %v2804 = vadd.f32 %v2787, %v2791
  %v2805 = vadd.f32 %v2788, %v2791
  %v2806 = vadd.f32 %v2789, %v2791
  %v2807 = vadd.f32 %v2790, %v2791
  %v2808 = vadd.f32 %v2792, %v48
  %v2809 = vadd.f32 %v2793, %v49
  %v2810 = vadd.f32 %v2794, %v50
  %v2811 = vadd.f32 %v2795, %v51
  %v2812 = vadd.f32 %v2796, %v52
  %v2813 = vadd.f32 %v2797, %v53
  %v2814 = vadd.f32 %v2798, %v54
  %v2815 = vadd.f32 %v2799, %v55
  %v2816 = vadd.f32 %v2800, %v85
  %v2817 = vadd.f32 %v2801, %v86
  %v2818 = vadd.f32 %v2802, %v87
  %v2819 = vadd.f32 %v2803, %v88
  %v2820 = vadd.f32 %v2804, %v89
  %v2821 = vadd.f32 %v2805, %v90
  %v2822 = vadd.f32 %v2806, %v91
  %v2823 = vadd.f32 %v2807, %v92
  %v2824 = vsel %vm101, %v2808, 0.0
  %2825 = vadd.xlane.f32.xlu0 %v2824
  %v2826 = vpop.xlane.xlu0 %2825
  %v2827 = vsel %vm101, %v2809, 0.0
  %2828 = vadd.xlane.f32.xlu0 %v2827
  %v2829 = vpop.xlane.xlu0 %2828
  %v2830 = vsel %vm101, %v2810, 0.0
  %2831 = vadd.xlane.f32.xlu0 %v2830
  %v2832 = vpop.xlane.xlu0 %2831
  %v2833 = vsel %vm101, %v2811, 0.0
  %2834 = vadd.xlane.f32.xlu0 %v2833
  %v2835 = vpop.xlane.xlu0 %2834
  %v2836 = vsel %vm101, %v2812, 0.0
  %2837 = vadd.xlane.f32.xlu0 %v2836
  %v2838 = vpop.xlane.xlu0 %2837
  %v2839 = vsel %vm101, %v2813, 0.0
  %2840 = vadd.xlane.f32.xlu0 %v2839
  %v2841 = vpop.xlane.xlu0 %2840
  %v2842 = vsel %vm101, %v2814, 0.0
  %2843 = vadd.xlane.f32.xlu0 %v2842
  %v2844 = vpop.xlane.xlu0 %2843
  %v2845 = vsel %vm101, %v2815, 0.0
  %2846 = vadd.xlane.f32.xlu0 %v2845
  %v2847 = vpop.xlane.xlu0 %2846
  %v2848 = vsel %vm101, %v2816, 0.0
  %2849 = vadd.xlane.f32.xlu0 %v2848
  %v2850 = vpop.xlane.xlu0 %2849
  %v2851 = vsel %vm101, %v2817, 0.0
  %2852 = vadd.xlane.f32.xlu0 %v2851
  %v2853 = vpop.xlane.xlu0 %2852
  %v2854 = vsel %vm101, %v2818, 0.0
  %2855 = vadd.xlane.f32.xlu0 %v2854
  %v2856 = vpop.xlane.xlu0 %2855
  %v2857 = vsel %vm101, %v2819, 0.0
  %2858 = vadd.xlane.f32.xlu0 %v2857
  %v2859 = vpop.xlane.xlu0 %2858
  %v2860 = vsel %vm101, %v2820, 0.0
  %2861 = vadd.xlane.f32.xlu0 %v2860
  %v2862 = vpop.xlane.xlu0 %2861
  %v2863 = vsel %vm101, %v2821, 0.0
  %2864 = vadd.xlane.f32.xlu0 %v2863
  %v2865 = vpop.xlane.xlu0 %2864
  %v2866 = vsel %vm101, %v2822, 0.0
  %2867 = vadd.xlane.f32.xlu0 %v2866
  %v2868 = vpop.xlane.xlu0 %2867
  %v2869 = vsel %vm101, %v2823, 0.0
  %2870 = vadd.xlane.f32.xlu0 %v2869
  %v2871 = vpop.xlane.xlu0 %2870
  %v2872 = vmul.f32 %v2826, %v156
  %v2873 = vmul.f32 %v2829, %v156
  %v2874 = vmul.f32 %v2832, %v156
  %v2875 = vmul.f32 %v2835, %v156
  %v2876 = vmul.f32 %v2838, %v156
  %v2877 = vmul.f32 %v2841, %v156
  %v2878 = vmul.f32 %v2844, %v156
  %v2879 = vmul.f32 %v2847, %v156
  %v2880 = vmul.f32 %v2850, %v156
  %v2881 = vmul.f32 %v2853, %v156
  %v2882 = vmul.f32 %v2856, %v156
  %v2883 = vmul.f32 %v2859, %v156
  %v2884 = vmul.f32 %v2862, %v156
  %v2885 = vmul.f32 %v2865, %v156
  %v2886 = vmul.f32 %v2868, %v156
  %v2887 = vmul.f32 %v2871, %v156
  %v2888 = vmul.f32 %v2808, %v2808
  %v2889 = vmul.f32 %v2809, %v2809
  %v2890 = vmul.f32 %v2810, %v2810
  %v2891 = vmul.f32 %v2811, %v2811
  %v2892 = vmul.f32 %v2812, %v2812
  %v2893 = vmul.f32 %v2813, %v2813
  %v2894 = vmul.f32 %v2814, %v2814
  %v2895 = vmul.f32 %v2815, %v2815
  %v2896 = vmul.f32 %v2816, %v2816
  %v2897 = vmul.f32 %v2817, %v2817
  %v2898 = vmul.f32 %v2818, %v2818
  %v2899 = vmul.f32 %v2819, %v2819
  %v2900 = vmul.f32 %v2820, %v2820
  %v2901 = vmul.f32 %v2821, %v2821
  %v2902 = vmul.f32 %v2822, %v2822
  %v2903 = vmul.f32 %v2823, %v2823
  %v2904 = vsel %vm101, %v2888, 0.0
  %2905 = vadd.xlane.f32.xlu0 %v2904
  %v2906 = vpop.xlane.xlu0 %2905
  %v2907 = vsel %vm101, %v2889, 0.0
  %2908 = vadd.xlane.f32.xlu0 %v2907
  %v2909 = vpop.xlane.xlu0 %2908
  %v2910 = vsel %vm101, %v2890, 0.0
  %2911 = vadd.xlane.f32.xlu0 %v2910
  %v2912 = vpop.xlane.xlu0 %2911
  %v2913 = vsel %vm101, %v2891, 0.0
  %2914 = vadd.xlane.f32.xlu0 %v2913
  %v2915 = vpop.xlane.xlu0 %2914
  %v2916 = vsel %vm101, %v2892, 0.0
  %2917 = vadd.xlane.f32.xlu0 %v2916
  %v2918 = vpop.xlane.xlu0 %2917
  %v2919 = vsel %vm101, %v2893, 0.0
  %2920 = vadd.xlane.f32.xlu0 %v2919
  %v2921 = vpop.xlane.xlu0 %2920
  %v2922 = vsel %vm101, %v2894, 0.0
  %2923 = vadd.xlane.f32.xlu0 %v2922
  %v2924 = vpop.xlane.xlu0 %2923
  %v2925 = vsel %vm101, %v2895, 0.0
  %2926 = vadd.xlane.f32.xlu0 %v2925
  %v2927 = vpop.xlane.xlu0 %2926
  %v2928 = vsel %vm101, %v2896, 0.0
  %2929 = vadd.xlane.f32.xlu0 %v2928
  %v2930 = vpop.xlane.xlu0 %2929
  %v2931 = vsel %vm101, %v2897, 0.0
  %2932 = vadd.xlane.f32.xlu0 %v2931
  %v2933 = vpop.xlane.xlu0 %2932
  %v2934 = vsel %vm101, %v2898, 0.0
  %2935 = vadd.xlane.f32.xlu0 %v2934
  %v2936 = vpop.xlane.xlu0 %2935
  %v2937 = vsel %vm101, %v2899, 0.0
  %2938 = vadd.xlane.f32.xlu0 %v2937
  %v2939 = vpop.xlane.xlu0 %2938
  %v2940 = vsel %vm101, %v2900, 0.0
  %2941 = vadd.xlane.f32.xlu0 %v2940
  %v2942 = vpop.xlane.xlu0 %2941
  %v2943 = vsel %vm101, %v2901, 0.0
  %2944 = vadd.xlane.f32.xlu0 %v2943
  %v2945 = vpop.xlane.xlu0 %2944
  %v2946 = vsel %vm101, %v2902, 0.0
  %2947 = vadd.xlane.f32.xlu0 %v2946
  %v2948 = vpop.xlane.xlu0 %2947
  %v2949 = vsel %vm101, %v2903, 0.0
  %2950 = vadd.xlane.f32.xlu0 %v2949
  %v2951 = vpop.xlane.xlu0 %2950
  %v2952 = vmul.f32 %v2906, %v156
  %v2953 = vmul.f32 %v2909, %v156
  %v2954 = vmul.f32 %v2912, %v156
  %v2955 = vmul.f32 %v2915, %v156
  %v2956 = vmul.f32 %v2918, %v156
  %v2957 = vmul.f32 %v2921, %v156
  %v2958 = vmul.f32 %v2924, %v156
  %v2959 = vmul.f32 %v2927, %v156
  %v2960 = vmul.f32 %v2930, %v156
  %v2961 = vmul.f32 %v2933, %v156
  %v2962 = vmul.f32 %v2936, %v156
  %v2963 = vmul.f32 %v2939, %v156
  %v2964 = vmul.f32 %v2942, %v156
  %v2965 = vmul.f32 %v2945, %v156
  %v2966 = vmul.f32 %v2948, %v156
  %v2967 = vmul.f32 %v2951, %v156
  %v2968 = vmul.f32 %v2872, %v2872
  %v2969 = vmul.f32 %v2873, %v2873
  %v2970 = vmul.f32 %v2874, %v2874
  %v2971 = vmul.f32 %v2875, %v2875
  %v2972 = vmul.f32 %v2876, %v2876
  %v2973 = vmul.f32 %v2877, %v2877
  %v2974 = vmul.f32 %v2878, %v2878
  %v2975 = vmul.f32 %v2879, %v2879
  %v2976 = vmul.f32 %v2880, %v2880
  %v2977 = vmul.f32 %v2881, %v2881
  %v2978 = vmul.f32 %v2882, %v2882
  %v2979 = vmul.f32 %v2883, %v2883
  %v2980 = vmul.f32 %v2884, %v2884
  %v2981 = vmul.f32 %v2885, %v2885
  %v2982 = vmul.f32 %v2886, %v2886
  %v2983 = vmul.f32 %v2887, %v2887
  %v2984 = vsub.f32 %v2952, %v2968
  %v2985 = vsub.f32 %v2953, %v2969
  %v2986 = vsub.f32 %v2954, %v2970
  %v2987 = vsub.f32 %v2955, %v2971
  %v2988 = vsub.f32 %v2956, %v2972
  %v2989 = vsub.f32 %v2957, %v2973
  %v2990 = vsub.f32 %v2958, %v2974
  %v2991 = vsub.f32 %v2959, %v2975
  %v2992 = vsub.f32 %v2960, %v2976
  %v2993 = vsub.f32 %v2961, %v2977
  %v2994 = vsub.f32 %v2962, %v2978
  %v2995 = vsub.f32 %v2963, %v2979
  %v2996 = vsub.f32 %v2964, %v2980
  %v2997 = vsub.f32 %v2965, %v2981
  %v2998 = vsub.f32 %v2966, %v2982
  %v2999 = vsub.f32 %v2967, %v2983
  %v3000 = vsub.f32 %v2808, %v2872
  %v3001 = vsub.f32 %v2809, %v2873
  %v3002 = vsub.f32 %v2810, %v2874
  %v3003 = vsub.f32 %v2811, %v2875
  %v3004 = vsub.f32 %v2812, %v2876
  %v3005 = vsub.f32 %v2813, %v2877
  %v3006 = vsub.f32 %v2814, %v2878
  %v3007 = vsub.f32 %v2815, %v2879
  %v3008 = vsub.f32 %v2816, %v2880
  %v3009 = vsub.f32 %v2817, %v2881
  %v3010 = vsub.f32 %v2818, %v2882
  %v3011 = vsub.f32 %v2819, %v2883
  %v3012 = vsub.f32 %v2820, %v2884
  %v3013 = vsub.f32 %v2821, %v2885
  %v3014 = vsub.f32 %v2822, %v2886
  %v3015 = vsub.f32 %v2823, %v2887
  %v3016 = vadd.f32 %v2984, 1e-05
  %v3017 = vadd.f32 %v2985, 1e-05
  %v3018 = vadd.f32 %v2986, 1e-05
  %v3019 = vadd.f32 %v2987, 1e-05
  %v3020 = vadd.f32 %v2988, 1e-05
  %v3021 = vadd.f32 %v2989, 1e-05
  %v3022 = vadd.f32 %v2990, 1e-05
  %v3023 = vadd.f32 %v2991, 1e-05
  %v3024 = vadd.f32 %v2992, 1e-05
  %v3025 = vadd.f32 %v2993, 1e-05
  %v3026 = vadd.f32 %v2994, 1e-05
  %v3027 = vadd.f32 %v2995, 1e-05
  %v3028 = vadd.f32 %v2996, 1e-05
  %v3029 = vadd.f32 %v2997, 1e-05
  %v3030 = vadd.f32 %v2998, 1e-05
  %v3031 = vadd.f32 %v2999, 1e-05
  %v3032 = vrsqrt.pop %v3016
  %v3033 = vmul.f32 %v3032, %v3016
  %v3034 = vmul.f32 %v3033, %v3032
  %v3035 = vmul.f32 0.5, %v3034
  %v3036 = vsub.f32 1.5, %v3035
  %v3037 = vmul.f32 %v3032, %v3036
  %vm3038 = vweird.f32 %v3016
  %vm3039 = vweird.f32 %v3032
  %vm3040 = vmor %vm3038, %vm3039
  %v3041 = vsel %vm3040, %v3032, %v3037
  %v3042 = vrsqrt.pop %v3017
  %v3043 = vmul.f32 %v3042, %v3017
  %v3044 = vmul.f32 %v3043, %v3042
  %v3045 = vmul.f32 0.5, %v3044
  %v3046 = vsub.f32 1.5, %v3045
  %v3047 = vmul.f32 %v3042, %v3046
  %vm3048 = vweird.f32 %v3017
  %vm3049 = vweird.f32 %v3042
  %vm3050 = vmor %vm3048, %vm3049
  %v3051 = vsel %vm3050, %v3042, %v3047
  %v3052 = vrsqrt.pop %v3018
  %v3053 = vmul.f32 %v3052, %v3018
  %v3054 = vmul.f32 %v3053, %v3052
  %v3055 = vmul.f32 0.5, %v3054
  %v3056 = vsub.f32 1.5, %v3055
  %v3057 = vmul.f32 %v3052, %v3056
  %vm3058 = vweird.f32 %v3018
  %vm3059 = vweird.f32 %v3052
  %vm3060 = vmor %vm3058, %vm3059
  %v3061 = vsel %vm3060, %v3052, %v3057
  %v3062 = vrsqrt.pop %v3019
  %v3063 = vmul.f32 %v3062, %v3019
  %v3064 = vmul.f32 %v3063, %v3062
  %v3065 = vmul.f32 0.5, %v3064
  %v3066 = vsub.f32 1.5, %v3065
  %v3067 = vmul.f32 %v3062, %v3066
  %vm3068 = vweird.f32 %v3019
  %vm3069 = vweird.f32 %v3062
  %vm3070 = vmor %vm3068, %vm3069
  %v3071 = vsel %vm3070, %v3062, %v3067
  %v3072 = vrsqrt.pop %v3020
  %v3073 = vmul.f32 %v3072, %v3020
  %v3074 = vmul.f32 %v3073, %v3072
  %v3075 = vmul.f32 0.5, %v3074
  %v3076 = vsub.f32 1.5, %v3075
  %v3077 = vmul.f32 %v3072, %v3076
  %vm3078 = vweird.f32 %v3020
  %vm3079 = vweird.f32 %v3072
  %vm3080 = vmor %vm3078, %vm3079
  %v3081 = vsel %vm3080, %v3072, %v3077
  %v3082 = vrsqrt.pop %v3021
  %v3083 = vmul.f32 %v3082, %v3021
  %v3084 = vmul.f32 %v3083, %v3082
  %v3085 = vmul.f32 0.5, %v3084
  %v3086 = vsub.f32 1.5, %v3085
  %v3087 = vmul.f32 %v3082, %v3086
  %vm3088 = vweird.f32 %v3021
  %vm3089 = vweird.f32 %v3082
  %vm3090 = vmor %vm3088, %vm3089
  %v3091 = vsel %vm3090, %v3082, %v3087
  %v3092 = vrsqrt.pop %v3022
  %v3093 = vmul.f32 %v3092, %v3022
  %v3094 = vmul.f32 %v3093, %v3092
  %v3095 = vmul.f32 0.5, %v3094
  %v3096 = vsub.f32 1.5, %v3095
  %v3097 = vmul.f32 %v3092, %v3096
  %vm3098 = vweird.f32 %v3022
  %vm3099 = vweird.f32 %v3092
  %vm3100 = vmor %vm3098, %vm3099
  %v3101 = vsel %vm3100, %v3092, %v3097
  %v3102 = vrsqrt.pop %v3023
  %v3103 = vmul.f32 %v3102, %v3023
  %v3104 = vmul.f32 %v3103, %v3102
  %v3105 = vmul.f32 0.5, %v3104
  %v3106 = vsub.f32 1.5, %v3105
  %v3107 = vmul.f32 %v3102, %v3106
  %vm3108 = vweird.f32 %v3023
  %vm3109 = vweird.f32 %v3102
  %vm3110 = vmor %vm3108, %vm3109
  %v3111 = vsel %vm3110, %v3102, %v3107
  %v3112 = vrsqrt.pop %v3024
  %v3113 = vmul.f32 %v3112, %v3024
  %v3114 = vmul.f32 %v3113, %v3112
  %v3115 = vmul.f32 0.5, %v3114
  %v3116 = vsub.f32 1.5, %v3115
  %v3117 = vmul.f32 %v3112, %v3116
  %vm3118 = vweird.f32 %v3024
  %vm3119 = vweird.f32 %v3112
  %vm3120 = vmor %vm3118, %vm3119
  %v3121 = vsel %vm3120, %v3112, %v3117
  %v3122 = vrsqrt.pop %v3025
  %v3123 = vmul.f32 %v3122, %v3025
  %v3124 = vmul.f32 %v3123, %v3122
  %v3125 = vmul.f32 0.5, %v3124
  %v3126 = vsub.f32 1.5, %v3125
  %v3127 = vmul.f32 %v3122, %v3126
  %vm3128 = vweird.f32 %v3025
  %vm3129 = vweird.f32 %v3122
  %vm3130 = vmor %vm3128, %vm3129
  %v3131 = vsel %vm3130, %v3122, %v3127
  %v3132 = vrsqrt.pop %v3026
  %v3133 = vmul.f32 %v3132, %v3026
  %v3134 = vmul.f32 %v3133, %v3132
  %v3135 = vmul.f32 0.5, %v3134
  %v3136 = vsub.f32 1.5, %v3135
  %v3137 = vmul.f32 %v3132, %v3136
  %vm3138 = vweird.f32 %v3026
  %vm3139 = vweird.f32 %v3132
  %vm3140 = vmor %vm3138, %vm3139
  %v3141 = vsel %vm3140, %v3132, %v3137
  %v3142 = vrsqrt.pop %v3027
  %v3143 = vmul.f32 %v3142, %v3027
  %v3144 = vmul.f32 %v3143, %v3142
  %v3145 = vmul.f32 0.5, %v3144
  %v3146 = vsub.f32 1.5, %v3145
  %v3147 = vmul.f32 %v3142, %v3146
  %vm3148 = vweird.f32 %v3027
  %vm3149 = vweird.f32 %v3142
  %vm3150 = vmor %vm3148, %vm3149
  %v3151 = vsel %vm3150, %v3142, %v3147
  %v3152 = vrsqrt.pop %v3028
  %v3153 = vmul.f32 %v3152, %v3028
  %v3154 = vmul.f32 %v3153, %v3152
  %v3155 = vmul.f32 0.5, %v3154
  %v3156 = vsub.f32 1.5, %v3155
  %v3157 = vmul.f32 %v3152, %v3156
  %vm3158 = vweird.f32 %v3028
  %vm3159 = vweird.f32 %v3152
  %vm3160 = vmor %vm3158, %vm3159
  %v3161 = vsel %vm3160, %v3152, %v3157
  %v3162 = vrsqrt.pop %v3029
  %v3163 = vmul.f32 %v3162, %v3029
  %v3164 = vmul.f32 %v3163, %v3162
  %v3165 = vmul.f32 0.5, %v3164
  %v3166 = vsub.f32 1.5, %v3165
  %v3167 = vmul.f32 %v3162, %v3166
  %vm3168 = vweird.f32 %v3029
  %vm3169 = vweird.f32 %v3162
  %vm3170 = vmor %vm3168, %vm3169
  %v3171 = vsel %vm3170, %v3162, %v3167
  %v3172 = vrsqrt.pop %v3030
  %v3173 = vmul.f32 %v3172, %v3030
  %v3174 = vmul.f32 %v3173, %v3172
  %v3175 = vmul.f32 0.5, %v3174
  %v3176 = vsub.f32 1.5, %v3175
  %v3177 = vmul.f32 %v3172, %v3176
  %vm3178 = vweird.f32 %v3030
  %vm3179 = vweird.f32 %v3172
  %vm3180 = vmor %vm3178, %vm3179
  %v3181 = vsel %vm3180, %v3172, %v3177
  %v3182 = vrsqrt.pop %v3031
  %v3183 = vmul.f32 %v3182, %v3031
  %v3184 = vmul.f32 %v3183, %v3182
  %v3185 = vmul.f32 0.5, %v3184
  %v3186 = vsub.f32 1.5, %v3185
  %v3187 = vmul.f32 %v3182, %v3186
  %vm3188 = vweird.f32 %v3031
  %vm3189 = vweird.f32 %v3182
  %vm3190 = vmor %vm3188, %vm3189
  %v3191 = vsel %vm3190, %v3182, %v3187
  %v3192 = vmul.f32 %v3000, %v3041
  %v3193 = vmul.f32 %v3001, %v3051
  %v3194 = vmul.f32 %v3002, %v3061
  %v3195 = vmul.f32 %v3003, %v3071
  %v3196 = vmul.f32 %v3004, %v3081
  %v3197 = vmul.f32 %v3005, %v3091
  %v3198 = vmul.f32 %v3006, %v3101
  %v3199 = vmul.f32 %v3007, %v3111
  %v3200 = vmul.f32 %v3008, %v3121
  %v3201 = vmul.f32 %v3009, %v3131
  %v3202 = vmul.f32 %v3010, %v3141
  %v3203 = vmul.f32 %v3011, %v3151
  %v3204 = vmul.f32 %v3012, %v3161
  %v3205 = vmul.f32 %v3013, %v3171
  %v3206 = vmul.f32 %v3014, %v3181
  %v3207 = vmul.f32 %v3015, %v3191
  %v3208 = vperm.slane %v27, 2
  %v3209 = vmul.f32 %v3192, %v3208
  %v3210 = vmul.f32 %v3193, %v3208
  %v3211 = vmul.f32 %v3194, %v3208
  %v3212 = vmul.f32 %v3195, %v3208
  %v3213 = vmul.f32 %v3196, %v3208
  %v3214 = vmul.f32 %v3197, %v3208
  %v3215 = vmul.f32 %v3198, %v3208
  %v3216 = vmul.f32 %v3199, %v3208
  %v3217 = vmul.f32 %v3200, %v3208
  %v3218 = vmul.f32 %v3201, %v3208
  %v3219 = vmul.f32 %v3202, %v3208
  %v3220 = vmul.f32 %v3203, %v3208
  %v3221 = vmul.f32 %v3204, %v3208
  %v3222 = vmul.f32 %v3205, %v3208
  %v3223 = vmul.f32 %v3206, %v3208
  %v3224 = vmul.f32 %v3207, %v3208
  %v3225 = vperm.slane %v27, 3
  %v3226 = vadd.f32 %v3209, %v3225
  %v3227 = vadd.f32 %v3210, %v3225
  %v3228 = vadd.f32 %v3211, %v3225
  %v3229 = vadd.f32 %v3212, %v3225
  %v3230 = vadd.f32 %v3213, %v3225
  %v3231 = vadd.f32 %v3214, %v3225
  %v3232 = vadd.f32 %v3215, %v3225
  %v3233 = vadd.f32 %v3216, %v3225
  %v3234 = vadd.f32 %v3217, %v3225
  %v3235 = vadd.f32 %v3218, %v3225
  %v3236 = vadd.f32 %v3219, %v3225
  %v3237 = vadd.f32 %v3220, %v3225
  %v3238 = vadd.f32 %v3221, %v3225
  %v3239 = vadd.f32 %v3222, %v3225
  %v3240 = vadd.f32 %v3223, %v3225
  %v3241 = vadd.f32 %v3224, %v3225
  %v3242 = vpack.c.bf16 %v3227, %v3226
  %v3243 = vpack.c.bf16 %v3229, %v3228
  %v3244 = vpack.c.bf16 %v3231, %v3230
  %v3245 = vpack.c.bf16 %v3233, %v3232
  %v3246 = vpack.c.bf16 %v3235, %v3234
  %v3247 = vpack.c.bf16 %v3237, %v3236
  %v3248 = vpack.c.bf16 %v3239, %v3238
  %v3249 = vpack.c.bf16 %v3241, %v3240
  %v3250 = vld [vmem:[%s5] sm:$0xf]
  %v3251 = vld [vmem:[%s5 + $0x4] sm:$0xf]
  %v3252 = vld [vmem:[%s5 + $0x8] sm:$0xf]
  %v3253 = vld [vmem:[%s5 + $0xc] sm:$0xf]
  %v3254 = vperm.slane %v27, 5
  %v3259 = vunpack.c.l.b16 %v3250
  %v3260 = vunpack.c.l.b16 %v3251
  %v3261 = vunpack.c.l.b16 %v3252
  %v3262 = vunpack.c.l.b16 %v3253
  %v3263 = vpack.c.b16 %v3260, %v3259
  %v3264 = vpack.c.b16 %v3262, %v3261
  %v3268 = vsel %vm101, %v3242, 0
  %v3271 = vsel %vm101, %v3243, 0
  %v3274 = vsel %vm101, %v3244, 0
  %v3277 = vsel %vm101, %v3245, 0
  %v3280 = vsel %vm101, %v3246, 0
  %v3283 = vsel %vm101, %v3247, 0
  %v3286 = vsel %vm101, %v3248, 0
  %v3289 = vsel %vm101, %v3249, 0
  %3291 = vmatpush.bf16.msra.mxu0 0
  %3292 = vmatpush.bf16.msra.mxu0 0
  %3293 = vmatpush.bf16.msra.mxu0 0
  %3294 = vmatpush.bf16.msra.mxu0 0
  %3295 = vmatpush.bf16.msra.mxu0 0
  %3296 = vmatpush.bf16.msra.mxu0 0
  %3297 = vmatpush.bf16.msra.mxu0 %v3264
  %3298 = vmatpush.bf16.msra.mxu0 %v3263
  %3299 = vmatmul.bf16.gmra.mxu0 %v3268
  %v3300 = vpop.f32.mrf.mxu0
  %v3301 = vadd.f32 %v3254, %v3300
  %v3302 = vpop.f32.mrf.mxu0
  %v3303 = vadd.f32 %v3254, %v3302
  %3304 = vmatmul.bf16.gmra.mxu0 %v3271
  %v3305 = vpop.f32.mrf.mxu0
  %v3306 = vadd.f32 %v3254, %v3305
  %v3307 = vpop.f32.mrf.mxu0
  %v3308 = vadd.f32 %v3254, %v3307
  %3309 = vmatmul.bf16.gmra.mxu0 %v3274
  %v3310 = vpop.f32.mrf.mxu0
  %v3311 = vadd.f32 %v3254, %v3310
  %v3312 = vpop.f32.mrf.mxu0
  %v3313 = vadd.f32 %v3254, %v3312
  %3314 = vmatmul.bf16.gmra.mxu0 %v3277
  %v3315 = vpop.f32.mrf.mxu0
  %v3316 = vadd.f32 %v3254, %v3315
  %v3317 = vpop.f32.mrf.mxu0
  %v3318 = vadd.f32 %v3254, %v3317
  %3319 = vmatmul.bf16.gmra.mxu0 %v3280
  %v3320 = vpop.f32.mrf.mxu0
  %v3321 = vadd.f32 %v3254, %v3320
  %v3322 = vpop.f32.mrf.mxu0
  %v3323 = vadd.f32 %v3254, %v3322
  %3324 = vmatmul.bf16.gmra.mxu0 %v3283
  %v3325 = vpop.f32.mrf.mxu0
  %v3326 = vadd.f32 %v3254, %v3325
  %v3327 = vpop.f32.mrf.mxu0
  %v3328 = vadd.f32 %v3254, %v3327
  %3329 = vmatmul.bf16.gmra.mxu0 %v3286
  %v3330 = vpop.f32.mrf.mxu0
  %v3331 = vadd.f32 %v3254, %v3330
  %v3332 = vpop.f32.mrf.mxu0
  %v3333 = vadd.f32 %v3254, %v3332
  %3334 = vmatmul.bf16.gmra.mxu0 %v3289
  %v3335 = vpop.f32.mrf.mxu0
  %v3336 = vadd.f32 %v3254, %v3335
  %v3337 = vpop.f32.mrf.mxu0
  %v3338 = vadd.f32 %v3254, %v3337
  %3339 = vdwg.mxu0
  %v3340 = vmax.f32 %v3301, 0.0
  %v3341 = vmax.f32 %v3303, 0.0
  %v3342 = vmax.f32 %v3306, 0.0
  %v3343 = vmax.f32 %v3308, 0.0
  %v3344 = vmax.f32 %v3311, 0.0
  %v3345 = vmax.f32 %v3313, 0.0
  %v3346 = vmax.f32 %v3316, 0.0
  %v3347 = vmax.f32 %v3318, 0.0
  %v3348 = vmax.f32 %v3321, 0.0
  %v3349 = vmax.f32 %v3323, 0.0
  %v3350 = vmax.f32 %v3326, 0.0
  %v3351 = vmax.f32 %v3328, 0.0
  %v3352 = vmax.f32 %v3331, 0.0
  %v3353 = vmax.f32 %v3333, 0.0
  %v3354 = vmax.f32 %v3336, 0.0
  %v3355 = vmax.f32 %v3338, 0.0
  %v3356 = vpack.c.bf16 %v3341, %v3340
  %v3357 = vpack.c.bf16 %v3343, %v3342
  %v3358 = vpack.c.bf16 %v3345, %v3344
  %v3359 = vpack.c.bf16 %v3347, %v3346
  %v3360 = vpack.c.bf16 %v3349, %v3348
  %v3361 = vpack.c.bf16 %v3351, %v3350
  %v3362 = vpack.c.bf16 %v3353, %v3352
  %v3363 = vpack.c.bf16 %v3355, %v3354
  %v3364 = vld [vmem:[%s6] sm:$0xf]
  %v3365 = vld [vmem:[%s6 + $0x4] sm:$0xf]
  %v3366 = vld [vmem:[%s6 + $0x8] sm:$0xf]
  %v3367 = vld [vmem:[%s6 + $0xc] sm:$0xf]
  %v3368 = vperm.slane %v27, 6
  %v3373 = vunpack.c.l.b16 %v3364
  %v3374 = vunpack.c.l.b16 %v3365
  %v3375 = vunpack.c.l.b16 %v3366
  %v3376 = vunpack.c.l.b16 %v3367
  %v3377 = vpack.c.b16 %v3374, %v3373
  %v3378 = vpack.c.b16 %v3376, %v3375
  %v3382 = vsel %vm101, %v3356, 0
  %v3385 = vsel %vm101, %v3357, 0
  %v3388 = vsel %vm101, %v3358, 0
  %v3391 = vsel %vm101, %v3359, 0
  %v3394 = vsel %vm101, %v3360, 0
  %v3397 = vsel %vm101, %v3361, 0
  %v3400 = vsel %vm101, %v3362, 0
  %v3403 = vsel %vm101, %v3363, 0
  %3405 = vmatpush.bf16.msra.mxu0 0
  %3406 = vmatpush.bf16.msra.mxu0 0
  %3407 = vmatpush.bf16.msra.mxu0 0
  %3408 = vmatpush.bf16.msra.mxu0 0
  %3409 = vmatpush.bf16.msra.mxu0 0
  %3410 = vmatpush.bf16.msra.mxu0 0
  %3411 = vmatpush.bf16.msra.mxu0 %v3378
  %3412 = vmatpush.bf16.msra.mxu0 %v3377
  %3413 = vmatmul.bf16.gmra.mxu0 %v3382
  %v3414 = vpop.f32.mrf.mxu0
  %v3415 = vadd.f32 %v3368, %v3414
  %v3416 = vpop.f32.mrf.mxu0
  %v3417 = vadd.f32 %v3368, %v3416
  %3418 = vmatmul.bf16.gmra.mxu0 %v3385
  %v3419 = vpop.f32.mrf.mxu0
  %v3420 = vadd.f32 %v3368, %v3419
  %v3421 = vpop.f32.mrf.mxu0
  %v3422 = vadd.f32 %v3368, %v3421
  %3423 = vmatmul.bf16.gmra.mxu0 %v3388
  %v3424 = vpop.f32.mrf.mxu0
  %v3425 = vadd.f32 %v3368, %v3424
  %v3426 = vpop.f32.mrf.mxu0
  %v3427 = vadd.f32 %v3368, %v3426
  %3428 = vmatmul.bf16.gmra.mxu0 %v3391
  %v3429 = vpop.f32.mrf.mxu0
  %v3430 = vadd.f32 %v3368, %v3429
  %v3431 = vpop.f32.mrf.mxu0
  %v3432 = vadd.f32 %v3368, %v3431
  %3433 = vmatmul.bf16.gmra.mxu0 %v3394
  %v3434 = vpop.f32.mrf.mxu0
  %v3435 = vadd.f32 %v3368, %v3434
  %v3436 = vpop.f32.mrf.mxu0
  %v3437 = vadd.f32 %v3368, %v3436
  %3438 = vmatmul.bf16.gmra.mxu0 %v3397
  %v3439 = vpop.f32.mrf.mxu0
  %v3440 = vadd.f32 %v3368, %v3439
  %v3441 = vpop.f32.mrf.mxu0
  %v3442 = vadd.f32 %v3368, %v3441
  %3443 = vmatmul.bf16.gmra.mxu0 %v3400
  %v3444 = vpop.f32.mrf.mxu0
  %v3445 = vadd.f32 %v3368, %v3444
  %v3446 = vpop.f32.mrf.mxu0
  %v3447 = vadd.f32 %v3368, %v3446
  %3448 = vmatmul.bf16.gmra.mxu0 %v3403
  %v3449 = vpop.f32.mrf.mxu0
  %v3450 = vadd.f32 %v3368, %v3449
  %v3451 = vpop.f32.mrf.mxu0
  %v3452 = vadd.f32 %v3368, %v3451
  %3453 = vdwg.mxu0
  %v3454 = vadd.f32 %v3415, %v2808
  %v3455 = vadd.f32 %v3417, %v2809
  %v3456 = vadd.f32 %v3420, %v2810
  %v3457 = vadd.f32 %v3422, %v2811
  %v3458 = vadd.f32 %v3425, %v2812
  %v3459 = vadd.f32 %v3427, %v2813
  %v3460 = vadd.f32 %v3430, %v2814
  %v3461 = vadd.f32 %v3432, %v2815
  %v3462 = vadd.f32 %v3435, %v2816
  %v3463 = vadd.f32 %v3437, %v2817
  %v3464 = vadd.f32 %v3440, %v2818
  %v3465 = vadd.f32 %v3442, %v2819
  %v3466 = vadd.f32 %v3445, %v2820
  %v3467 = vadd.f32 %v3447, %v2821
  %v3468 = vadd.f32 %v3450, %v2822
  %v3469 = vadd.f32 %v3452, %v2823
  %3470 = vxpose.xlu0.b32.start [1/16] %v3454, 128
  %3471 = vxpose.xlu0.b32.cont [2/16] %v3455, 128
  %3472 = vxpose.xlu0.b32.cont [3/16] %v3456, 128
  %3473 = vxpose.xlu0.b32.cont [4/16] %v3457, 128
  %3474 = vxpose.xlu0.b32.cont [5/16] %v3458, 128
  %3475 = vxpose.xlu0.b32.cont [6/16] %v3459, 128
  %3476 = vxpose.xlu0.b32.cont [7/16] %v3460, 128
  %3477 = vxpose.xlu0.b32.cont [8/16] %v3461, 128
  %3478 = vxpose.xlu0.b32.cont [9/16] 0.0, 128
  %3479 = vxpose.xlu0.b32.cont [10/16] 0.0, 128
  %3480 = vxpose.xlu0.b32.cont [11/16] 0.0, 128
  %3481 = vxpose.xlu0.b32.cont [12/16] 0.0, 128
  %3482 = vxpose.xlu0.b32.cont [13/16] 0.0, 128
  %3483 = vxpose.xlu0.b32.cont [14/16] 0.0, 128
  %3484 = vxpose.xlu0.b32.cont [15/16] 0.0, 128
  %3485 = vxpose.xlu0.b32.end [16/16] 0.0, 128
  %v3486 = vpop.trf.xlu0
  %v3487 = vpop.trf.xlu0
  %v3488 = vpop.trf.xlu0
  %v3489 = vpop.trf.xlu0
  %v3490 = vpop.trf.xlu0
  %v3491 = vpop.trf.xlu0
  %v3492 = vpop.trf.xlu0
  %v3493 = vpop.trf.xlu0
  %v3494 = vpop.trf.xlu0
  %v3495 = vpop.trf.xlu0
  %v3496 = vpop.trf.xlu0
  %v3497 = vpop.trf.xlu0
  %v3498 = vpop.trf.xlu0
  %v3499 = vpop.trf.xlu0
  %v3500 = vpop.trf.xlu0
  %v3501 = vpop.trf.xlu0
  %3502 = vst.msk [vmem:[%s7] sm:$0xff] %vm730, %v3486
  %3503 = vst.msk [vmem:[%s7 + $0x8] sm:$0xff] %vm730, %v3487
  %3504 = vst.msk [vmem:[%s7 + $0x10] sm:$0xff] %vm730, %v3488
  %3505 = vst.msk [vmem:[%s7 + $0x18] sm:$0xff] %vm730, %v3489
  %3506 = vxpose.xlu0.b32.start [1/16] %v3462, 128
  %3507 = vxpose.xlu0.b32.cont [2/16] %v3463, 128
  %3508 = vxpose.xlu0.b32.cont [3/16] %v3464, 128
  %3509 = vxpose.xlu0.b32.cont [4/16] %v3465, 128
  %3510 = vxpose.xlu0.b32.cont [5/16] %v3466, 128
  %3511 = vxpose.xlu0.b32.cont [6/16] %v3467, 128
  %3512 = vxpose.xlu0.b32.cont [7/16] %v3468, 128
  %3513 = vxpose.xlu0.b32.cont [8/16] %v3469, 128
  %3514 = vxpose.xlu0.b32.cont [9/16] 0.0, 128
  %3515 = vxpose.xlu0.b32.cont [10/16] 0.0, 128
  %3516 = vxpose.xlu0.b32.cont [11/16] 0.0, 128
  %3517 = vxpose.xlu0.b32.cont [12/16] 0.0, 128
  %3518 = vxpose.xlu0.b32.cont [13/16] 0.0, 128
  %3519 = vxpose.xlu0.b32.cont [14/16] 0.0, 128
  %3520 = vxpose.xlu0.b32.cont [15/16] 0.0, 128
  %3521 = vxpose.xlu0.b32.end [16/16] 0.0, 128
  %v3522 = vpop.trf.xlu0
  %v3523 = vpop.trf.xlu0
  %v3524 = vpop.trf.xlu0
  %v3525 = vpop.trf.xlu0
  %v3526 = vpop.trf.xlu0
  %v3527 = vpop.trf.xlu0
  %v3528 = vpop.trf.xlu0
  %v3529 = vpop.trf.xlu0
  %v3530 = vpop.trf.xlu0
  %v3531 = vpop.trf.xlu0
  %v3532 = vpop.trf.xlu0
  %v3533 = vpop.trf.xlu0
  %v3534 = vpop.trf.xlu0
  %v3535 = vpop.trf.xlu0
  %v3536 = vpop.trf.xlu0
  %v3537 = vpop.trf.xlu0
  %s3538 = scalar_lea.vmem %s7, 32
  %3539 = vst.msk [vmem:[%s3538] sm:$0xff] %vm730, %v3522
  %3540 = vst.msk [vmem:[%s3538 + $0x8] sm:$0xff] %vm730, %v3523
  %3541 = vst.msk [vmem:[%s3538 + $0x10] sm:$0xff] %vm730, %v3524
  %3542 = vst.msk [vmem:[%s3538 + $0x18] sm:$0xff] %vm730, %v3525
  // Predicated region
  $region30: #{self_attention_forward.1} parent=0 // pred_check
    _
  $region31: #{self_attention_forward.1} parent=0 // pred_check_branch
    %3544 = sbr.rel (0) target = $region33
  $region32: #{self_attention_forward.1} parent=0 // pred_region
    _
  $region33: #{self_attention_forward.1} parent=0 // pred_fallthru
    _
  // Predicated region
  $region34: #{self_attention_forward.1} parent=0 // pred_check
    _
  $region35: #{self_attention_forward.1} parent=0 // pred_check_branch
    %3546 = sbr.rel (0) target = $region37
  $region36: #{self_attention_forward.1} parent=0 // pred_region
    _
  $region37: #{self_attention_forward.1} parent=0 // pred_fallthru
    _

</llo_original>
